<compile_context>
chip_gen: v7x
topology: tpu7x:2x2x1
jax: 0.10.0
libtpu: 0.0.40
codegen_flags: <defaults>
</compile_context>

<pallas_src>
import functools

import jax
import jax.numpy as jnp
from jax import lax
from jax.experimental import pallas as pl
from jax.experimental.pallas import tpu as pltpu

# MXU operand dtype (accumulation is always f32).  bf16 doubles MXU throughput and halves
# weight DMA on v5e/v6e/v7x; set to jnp.float32 for a bit-exact f32 reference path.
MXU_DTYPE = jnp.bfloat16

# Softmax denominator: EUP approximate reciprocal (free slot, ~1e-2 rel. err.) vs exact
# divide.  Keep an exact fallback for strict comparisons against the PyTorch reference.
APPROX_SOFTMAX_RECIPROCAL = True


# ------------------------------ capability probe ------------------------------

def _probe_single_buffered_weights():
    """Return pl.Buffered(1) if this build accepts single-buffered constant-index blocks
    (grid-invariant weights need no double buffer -> halves their VMEM), else None."""
    def copy_kernel(x_ref, o_ref):
        o_ref[...] = x_ref[...]

    try:
        mode = pl.Buffered(buffer_count=1)
        fn = pl.pallas_call(
            copy_kernel,
            out_shape=jax.ShapeDtypeStruct((8, 128), jnp.float32),
            grid=(2,),
            in_specs=[pl.BlockSpec((8, 128), lambda i: (0, 0), pipeline_mode=mode)],
            out_specs=pl.BlockSpec((8, 128), lambda i: (0, 0)),
        )
        jax.block_until_ready(fn(jnp.zeros((8, 128), jnp.float32)))
        return mode
    except Exception:
        return None


def _const_spec(shape, weight_mode):
    """BlockSpec for a grid-invariant operand (weights): same block every grid step, so
    single-buffer it when supported."""
    zeros = (0,) * len(shape)
    index_map = lambda *_: zeros
    if weight_mode is None:
        return pl.BlockSpec(shape, index_map)
    return pl.BlockSpec(shape, index_map, pipeline_mode=weight_mode)


def _compiler_params(vmem_limit_bytes):
    kwargs = dict(dimension_semantics=("parallel",))
    if vmem_limit_bytes is not None:
        kwargs["vmem_limit_bytes"] = vmem_limit_bytes
    return pltpu.CompilerParams(**kwargs)


# ------------------------------ in-kernel helpers ------------------------------

def _moving_avg(x, kernel_size):
    """Replicate-padded moving average over axis 0 (the sequence axis) via (k-1) XLU
    sublane rolls plus masked edge fixups.  x: (L, D) f32."""
    L = x.shape[0]
    half = (kernel_size - 1) // 2
    if half == 0:
        return x
    row = lax.broadcasted_iota(jnp.int32, x.shape, 0)
    first = jnp.broadcast_to(x[0:1, :], x.shape)      # hoisted: broadcast is not CSE'd
    last = jnp.broadcast_to(x[L - 1:L, :], x.shape)
    acc = x
    for j in range(1, half + 1):
        fwd = pltpu.roll(x, shift=(L - j) % L, axis=0)   # fwd[l] = x[(l + j) % L]
        fwd = jnp.where(row >= L - j, last, fwd)          # replicate bottom edge
        bwd = pltpu.roll(x, shift=j, axis=0)              # bwd[l] = x[(l - j) % L]
        bwd = jnp.where(row < j, first, bwd)              # replicate top edge
        acc = acc + fwd + bwd
    return acc * (1.0 / kernel_size)


def _series_decomp(x, kernel_size):
    """series_decomp: (seasonal residual, trend)."""
    ma = _moving_avg(x, kernel_size)
    return x - ma, ma


def _mha_context(q, k, v, *, n_heads, dh):
    """Per-head softmax attention; returns the (Lq, D) concatenated context in f32.

    q must already include its bias and the 1/sqrt(dh) scale.  Heads are static lane
    slices; the concatenation is pure lane placement, so the caller can apply ONE
    full-contraction-depth (Lq, D) @ (D, D) output projection afterwards.
    """
    qb = q.astype(MXU_DTYPE)
    kb = k.astype(MXU_DTYPE)
    vb = v.astype(MXU_DTYPE)
    ctxs = []
    for h in range(n_heads):
        lo = h * dh
        hi = lo + dh
        s = lax.dot_general(qb[:, lo:hi], kb[:, lo:hi], (((1,), (1,)), ((), ())),
                            preferred_element_type=jnp.float32)
        s = s - jnp.max(s, axis=-1, keepdims=True)
        p = jnp.exp(s)
        denom = jnp.sum(p, axis=-1, keepdims=True)
        if APPROX_SOFTMAX_RECIPROCAL:
            p = p * pl.reciprocal(denom, approx=True)
        else:
            p = p / denom
        ctxs.append(jnp.dot(p.astype(MXU_DTYPE), vb[:, lo:hi],
                            preferred_element_type=jnp.float32))
    return jnp.concatenate(ctxs, axis=-1)


# ----------------------------- fused decoder-layer kernel -----------------------------

def _decoder_layer_kernel(
        x_ref, cross_ref, trend_ref,
        wqkv_s_ref, bqkv_s_ref, wo_s_ref, bo_s_ref,
        wq_c_ref, bq_c_ref, wkv_c_ref, bkv_c_ref, wo_c_ref, bo_c_ref,
        w1_ref, w2_ref, wt_ref,
        x_out_ref, trend_out_ref,
        *, n_heads, moving_avg):
    f32 = jnp.float32
    x = x_ref[0].astype(f32)            # (Ld, D)
    cross = cross_ref[0].astype(f32)    # (Le, D)
    Ld, D = x.shape
    dh = D // n_heads
    scale = 1.0 / float(dh) ** 0.5

    # ---- self attention (x attends to x), fused QKV projection ----
    qkv = jnp.dot(x.astype(MXU_DTYPE), wqkv_s_ref[...],
                  preferred_element_type=f32) + bqkv_s_ref[...]
    q = qkv[:, :D] * scale                                 # scale folded into q once
    ctx = _mha_context(q, qkv[:, D:2 * D], qkv[:, 2 * D:], n_heads=n_heads, dh=dh)
    attn = jnp.dot(ctx.astype(MXU_DTYPE), wo_s_ref[...],
                   preferred_element_type=f32) + bo_s_ref[...]
    x1 = x + attn                                          # residual (dropout == identity)
    res1, trend1 = _series_decomp(x1, moving_avg)
    t = trend1                                             # incremental trend accumulation

    # ---- cross attention (res1 attends to cross), fused KV projection ----
    qc = (jnp.dot(res1.astype(MXU_DTYPE), wq_c_ref[...],
                  preferred_element_type=f32) + bq_c_ref[...]) * scale
    kvc = jnp.dot(cross.astype(MXU_DTYPE), wkv_c_ref[...],
                  preferred_element_type=f32) + bkv_c_ref[...]
    ctx_c = _mha_context(qc, kvc[:, :D], kvc[:, D:], n_heads=n_heads, dh=dh)
    attn_c = jnp.dot(ctx_c.astype(MXU_DTYPE), wo_c_ref[...],
                     preferred_element_type=f32) + bo_c_ref[...]
    x2 = res1 + attn_c
    res2, trend2 = _series_decomp(x2, moving_avg)
    t = t + trend2

    # ---- position-wise FFN: two kernel-size-1 convs (matmuls), ReLU, bias-free ----
    hidden = jnp.maximum(jnp.dot(res2.astype(MXU_DTYPE), w1_ref[...],
                                 preferred_element_type=f32), 0.0)
    y = jnp.dot(hidden.astype(MXU_DTYPE), w2_ref[...], preferred_element_type=f32)
    x3 = res2 + y
    res3, trend3 = _series_decomp(x3, moving_avg)
    t = t + trend3

    # ---- trend branch: circular kernel-3 Conv1d projection as ONE (Ld,3D)@(3D,C) matmul,
    #      +/-1 shifts via XLU rolls, accumulated in place into the running trend ----
    t_m1 = pltpu.roll(t, shift=1, axis=0)               # t[(l - 1) % L]
    t_p1 = pltpu.roll(t, shift=(Ld - 1) % Ld, axis=0)   # t[(l + 1) % L]
    t_cat = jnp.concatenate([t_m1, t, t_p1], axis=-1).astype(MXU_DTYPE)   # (Ld, 3D)
    conv = jnp.dot(t_cat, wt_ref[...], preferred_element_type=f32)        # (Ld, C)

    x_out_ref[0] = res3.astype(x_out_ref.dtype)
    trend_out_ref[0] = (trend_ref[0].astype(f32) + conv).astype(trend_out_ref.dtype)


def decoder_layer(x, cross, trend, p, n_heads, moving_avg,
                  weight_mode=None, vmem_limit_bytes=None):
    B, Ld, D = x.shape
    Le = cross.shape[1]
    C = trend.shape[2]
    F = p["w1"].shape[1]
    assert moving_avg % 2 == 1, "moving_avg kernel size must be odd"
    assert (moving_avg - 1) // 2 < Ld, "moving_avg half-window must be < decoder length"

    bmap = lambda b: (b, 0, 0)
    ws = lambda shape: _const_spec(shape, weight_mode)

    in_specs = [
        pl.BlockSpec((1, Ld, D), bmap),            # x
        pl.BlockSpec((1, Le, D), bmap),            # cross
        pl.BlockSpec((1, Ld, C), bmap),            # trend (aliased to output 1)
        ws((D, 3 * D)), ws((1, 3 * D)),            # wqkv / bqkv (self)
        ws((D, D)), ws((1, D)),                    # wo / bo (self)
        ws((D, D)), ws((1, D)),                    # wq / bq (cross)
        ws((D, 2 * D)), ws((1, 2 * D)),            # wkv / bkv (cross)
        ws((D, D)), ws((1, D)),                    # wo / bo (cross)
        ws((D, F)), ws((F, D)),                    # ffn w1, w2
        ws((3 * D, C)),                            # trend conv weight, 3 taps stacked on K
    ]
    out_specs = (
        pl.BlockSpec((1, Ld, D), bmap),
        pl.BlockSpec((1, Ld, C), bmap),
    )

    kernel = functools.partial(_decoder_layer_kernel, n_heads=n_heads,
                               moving_avg=moving_avg)
    x_out, trend_out = pl.pallas_call(
        kernel,
        out_shape=(jax.ShapeDtypeStruct((B, Ld, D), x.dtype),
                   jax.ShapeDtypeStruct((B, Ld, C), trend.dtype)),
        grid=(B,),
        in_specs=in_specs,
        out_specs=out_specs,
        input_output_aliases={2: 1},   # accumulate residual_trend into `trend` in place
        compiler_params=_compiler_params(vmem_limit_bytes),
    )(x, cross, trend,
      p["wqkv_s"], p["bqkv_s"], p["wo_s"], p["bo_s"],
      p["wq_c"], p["bq_c"], p["wkv_c"], p["bkv_c"], p["wo_c"], p["bo_c"],
      p["w1"], p["w2"], p["trend_w3"])
    return x_out, trend_out


# ----------------------- fused my_Layernorm + projection kernel -----------------------

def _norm_project_kernel(x_ref, g_ref, b_ref, w_ref, pb_ref, o_ref):
    # my_Layernorm: LayerNorm over channels, subtract the seq-mean, then Linear.  By
    # linearity, (xh - mean_seq(xh)) @ W + b == xh @ W - mean_seq(xh @ W) + b, so the
    # seq-mean subtraction runs on the much narrower (L, C) projected tensor.
    x = x_ref[0].astype(jnp.float32)
    mu = jnp.mean(x, axis=-1, keepdims=True)
    var = jnp.mean(jnp.square(x - mu), axis=-1, keepdims=True)
    xh = (x - mu) * lax.rsqrt(var + 1e-5) * g_ref[...] + b_ref[...]
    z = jnp.dot(xh.astype(MXU_DTYPE), w_ref[...], preferred_element_type=jnp.float32)
    o_ref[0] = (z - jnp.mean(z, axis=0, keepdims=True) + pb_ref[...]).astype(o_ref.dtype)


def norm_project(x, gamma, beta, w, b, weight_mode=None, vmem_limit_bytes=None):
    B, Ld, D = x.shape
    C = w.shape[1]
    ws = lambda shape: _const_spec(shape, weight_mode)
    return pl.pallas_call(
        _norm_project_kernel,
        out_shape=jax.ShapeDtypeStruct((B, Ld, C), x.dtype),
        grid=(B,),
        in_specs=[pl.BlockSpec((1, Ld, D), lambda bb: (bb, 0, 0)),
                  ws((1, D)), ws((1, D)), ws((D, C)), ws((1, C))],
        out_specs=pl.BlockSpec((1, Ld, C), lambda bb: (bb, 0, 0)),
        compiler_params=_compiler_params(vmem_limit_bytes),
    )(x, gamma, beta, w, b)


# ----------------------------------- model glue -----------------------------------

def decoder_forward(x, cross, trend, params, n_heads, moving_avg,
                    x_mask=None, cross_mask=None,
                    weight_mode=None, vmem_limit_bytes=None):
    # only None masks are supported (attention is unmasked); dropout == identity (eval)
    for p in params["layers"]:
        x, trend = decoder_layer(x, cross, trend, p, n_heads, moving_avg,
                                 weight_mode=weight_mode,
                                 vmem_limit_bytes=vmem_limit_bytes)
    x = norm_project(x, params["norm_gamma"], params["norm_beta"],
                     params["proj_w"], params["proj_b"],
                     weight_mode=weight_mode, vmem_limit_bytes=vmem_limit_bytes)
    return x, trend


# ----------------------------- deterministic params -----------------------------

def init_layer_params(key, d_model, d_ff, c_out):
    ks = jax.random.split(key, 13)
    s = 0.05

    def w(k, din, dout):
        return (jax.random.normal(k, (din, dout), jnp.float32) * s).astype(MXU_DTYPE)

    def b(k, dout):
        return jax.random.normal(k, (1, dout), jnp.float32) * 0.01

    # Kernel-3 circular Conv1d taps stacked along the contraction axis: rows [0:D) act on
    # x[l-1], [D:2D) on x[l], [2D:3D) on x[l+1] (cross-correlation, circular pad=1).
    # TODO(synk): PyTorch Conv1d weights are (c_out, d_model, 3); permute to (3, D, c_out)
    #             with that tap order before reshaping if loading a real checkpoint.
    trend_w = jax.random.normal(ks[12], (3, d_model, c_out), jnp.float32) * s
    return dict(
        wqkv_s=w(ks[0], d_model, 3 * d_model), bqkv_s=b(ks[1], 3 * d_model),
        wo_s=w(ks[2], d_model, d_model), bo_s=b(ks[3], d_model),
        wq_c=w(ks[4], d_model, d_model), bq_c=b(ks[5], d_model),
        wkv_c=w(ks[6], d_model, 2 * d_model), bkv_c=b(ks[7], 2 * d_model),
        wo_c=w(ks[8], d_model, d_model), bo_c=b(ks[9], d_model),
        w1=w(ks[10], d_model, d_ff),
        w2=w(ks[11], d_ff, d_model),
        trend_w3=trend_w.reshape(3 * d_model, c_out).astype(MXU_DTYPE),
    )


def init_decoder_params(key, n_layers, d_model, d_ff, c_out):
    keys = jax.random.split(key, n_layers + 2)
    return dict(
        layers=[init_layer_params(keys[i], d_model, d_ff, c_out)
                for i in range(n_layers)],
        norm_gamma=jnp.ones((1, d_model), jnp.float32),
        norm_beta=jnp.zeros((1, d_model), jnp.float32),
        proj_w=(jax.random.normal(keys[-2], (d_model, c_out), jnp.float32)
                * 0.05).astype(MXU_DTYPE),
        proj_b=jax.random.normal(keys[-1], (1, c_out), jnp.float32) * 0.01,
    )


# ----------------------------------- main -----------------------------------

if __name__ == "__main__":
    # Small smoke-test shapes.  Perf tuning (L-tiling, Buffered sweeps, vmem_limit_bytes)
    # must be redone at production Autoformer sizes (d_model=512, L=96-720, d_ff=2048).
    B, L_dec, L_enc = 2, 8, 16
    d_model, n_heads, d_ff, c_out = 32, 4, 64, 4
    moving_avg = 5
    n_layers = 2

    root = jax.random.PRNGKey(0)
    k_x, k_cross, k_trend, k_params = jax.random.split(root, 4)

    x = jax.random.normal(k_x, (B, L_dec, d_model), jnp.float32)
    cross = jax.random.normal(k_cross, (B, L_enc, d_model), jnp.float32)
    trend = jax.random.normal(k_trend, (B, L_dec, c_out), jnp.float32)

    params = init_decoder_params(k_params, n_layers, d_model, d_ff, c_out)

    weight_mode = _probe_single_buffered_weights()   # pl.Buffered(1) or None

    fwd = jax.jit(functools.partial(decoder_forward, n_heads=n_heads,
                                    moving_avg=moving_avg, weight_mode=weight_mode))
    out_x, out_trend = fwd(x, cross, trend, params)
    jax.block_until_ready((out_x, out_trend))

    assert out_x.shape == (B, L_dec, c_out)
    assert out_trend.shape == (B, L_dec, c_out)
    assert out_x.dtype == jnp.float32 and out_trend.dtype == jnp.float32
    assert bool(jnp.all(jnp.isfinite(out_x))) and bool(jnp.all(jnp.isfinite(out_trend)))

    print("KERNEL_OK")
</pallas_src>

<mosaic_0001>
module attributes {stable_mosaic.version = 11 : i64} {
  func.func @copy_kernel(%arg0: i32, %arg1: memref<8x128xf32, #tpu.memory_space<vmem>>, %arg2: memref<8x128xf32, #tpu.memory_space<vmem>>) attributes {dimension_semantics = [#tpu.dimension_semantics<arbitrary>], iteration_bounds = array<i64: 2>, scalar_prefetch = 0 : i64, scratch_operands = 0 : i64, tpu.core_type = #tpu.core_type<tc>, window_params = [{pipeline_mode = #tpu.pipeline_mode<synchronous>, transform_indices = @transform_0, window_bounds = array<i64: 8, 128>}, {pipeline_mode = #tpu.pipeline_mode<synchronous>, transform_indices = @transform_1, window_bounds = array<i64: 8, 128>}]} {
    %c0 = arith.constant 0 : index
    %c0_0 = arith.constant 0 : index
    %0 = vector.load %arg1[%c0, %c0_0] : memref<8x128xf32, #tpu.memory_space<vmem>>, vector<8x128xf32>
    %c0_1 = arith.constant 0 : index
    %c0_2 = arith.constant 0 : index
    %1 = vector.load %arg2[%c0_1, %c0_2] : memref<8x128xf32, #tpu.memory_space<vmem>>, vector<8x128xf32>
    tpu.vector_store %arg2[%c0_1, %c0_2], %0 {strides = array<i32>} : memref<8x128xf32, #tpu.memory_space<vmem>>, vector<8x128xf32>,
    return
  }
  func.func @transform_0(%arg0: i32) -> (i32, i32) {
    %c0_i32 = arith.constant 0 : i32
    %c0_i32_0 = arith.constant 0 : i32
    %c0_i32_1 = arith.constant 0 : i32
    return %c0_i32, %c0_i32_0 : i32, i32
  }
  func.func @transform_1(%arg0: i32) -> (i32, i32) {
    %c0_i32 = arith.constant 0 : i32
    %c0_i32_0 = arith.constant 0 : i32
    %c0_i32_1 = arith.constant 0 : i32
    return %c0_i32, %c0_i32_0 : i32, i32
  }
}

module attributes {stable_mosaic.version = 11 : i64} {
  func.func @_decoder_layer_kernel(%arg0: i32, %arg1: memref<1x8x32xf32, #tpu.memory_space<vmem>>, %arg2: memref<1x16x32xf32, #tpu.memory_space<vmem>>, %arg3: memref<1x8x4xf32, #tpu.memory_space<vmem>>, %arg4: memref<32x96xbf16, #tpu.memory_space<vmem>>, %arg5: memref<1x96xf32, #tpu.memory_space<vmem>>, %arg6: memref<32x32xbf16, #tpu.memory_space<vmem>>, %arg7: memref<1x32xf32, #tpu.memory_space<vmem>>, %arg8: memref<32x32xbf16, #tpu.memory_space<vmem>>, %arg9: memref<1x32xf32, #tpu.memory_space<vmem>>, %arg10: memref<32x64xbf16, #tpu.memory_space<vmem>>, %arg11: memref<1x64xf32, #tpu.memory_space<vmem>>, %arg12: memref<32x32xbf16, #tpu.memory_space<vmem>>, %arg13: memref<1x32xf32, #tpu.memory_space<vmem>>, %arg14: memref<32x64xbf16, #tpu.memory_space<vmem>>, %arg15: memref<64x32xbf16, #tpu.memory_space<vmem>>, %arg16: memref<96x4xbf16, #tpu.memory_space<vmem>>, %arg17: memref<1x8x32xf32, #tpu.memory_space<vmem>>, %arg18: memref<1x8x4xf32, #tpu.memory_space<vmem>>) attributes {dimension_semantics = [#tpu.dimension_semantics<parallel>], iteration_bounds = array<i64: 2>, scalar_prefetch = 0 : i64, scratch_operands = 0 : i64, tpu.core_type = #tpu.core_type<tc>, window_params = [{transform_indices = @transform_0, window_bounds = array<i64: 1, 8, 32>}, {transform_indices = @transform_1, window_bounds = array<i64: 1, 16, 32>}, {transform_indices = @transform_2, window_bounds = array<i64: 1, 8, 4>}, {pipeline_mode = #tpu.pipeline_mode<synchronous>, transform_indices = @transform_3, window_bounds = array<i64: 32, 96>}, {pipeline_mode = #tpu.pipeline_mode<synchronous>, transform_indices = @transform_4, window_bounds = array<i64: 1, 96>}, {pipeline_mode = #tpu.pipeline_mode<synchronous>, transform_indices = @transform_5, window_bounds = array<i64: 32, 32>}, {pipeline_mode = #tpu.pipeline_mode<synchronous>, transform_indices = @transform_6, window_bounds = array<i64: 1, 32>}, {pipeline_mode = #tpu.pipeline_mode<synchronous>, transform_indices = @transform_7, window_bounds = array<i64: 32, 32>}, {pipeline_mode = #tpu.pipeline_mode<synchronous>, transform_indices = @transform_8, window_bounds = array<i64: 1, 32>}, {pipeline_mode = #tpu.pipeline_mode<synchronous>, transform_indices = @transform_9, window_bounds = array<i64: 32, 64>}, {pipeline_mode = #tpu.pipeline_mode<synchronous>, transform_indices = @transform_10, window_bounds = array<i64: 1, 64>}, {pipeline_mode = #tpu.pipeline_mode<synchronous>, transform_indices = @transform_11, window_bounds = array<i64: 32, 32>}, {pipeline_mode = #tpu.pipeline_mode<synchronous>, transform_indices = @transform_12, window_bounds = array<i64: 1, 32>}, {pipeline_mode = #tpu.pipeline_mode<synchronous>, transform_indices = @transform_13, window_bounds = array<i64: 32, 64>}, {pipeline_mode = #tpu.pipeline_mode<synchronous>, transform_indices = @transform_14, window_bounds = array<i64: 64, 32>}, {pipeline_mode = #tpu.pipeline_mode<synchronous>, transform_indices = @transform_15, window_bounds = array<i64: 96, 4>}, {transform_indices = @transform_16, window_bounds = array<i64: 1, 8, 32>}, {transform_indices = @transform_17, window_bounds = array<i64: 1, 8, 4>}]} {
    %c0 = arith.constant 0 : index
    %c0_0 = arith.constant 0 : index
    %c0_1 = arith.constant 0 : index
    %0 = vector.load %arg1[%c0, %c0_0, %c0_1] : memref<1x8x32xf32, #tpu.memory_space<vmem>>, vector<1x8x32xf32>
    %1 = vector.shape_cast %0 : vector<1x8x32xf32> to vector<8x32xf32>
    %c0_2 = arith.constant 0 : index
    %c0_3 = arith.constant 0 : index
    %c0_4 = arith.constant 0 : index
    %2 = vector.load %arg2[%c0_2, %c0_3, %c0_4] : memref<1x16x32xf32, #tpu.memory_space<vmem>>, vector<1x16x32xf32>
    %3 = vector.shape_cast %2 : vector<1x16x32xf32> to vector<16x32xf32>
    %4 = arith.truncf %1 : vector<8x32xf32> to vector<8x32xbf16>
    %c0_5 = arith.constant 0 : index
    %c0_6 = arith.constant 0 : index
    %5 = vector.load %arg4[%c0_5, %c0_6] : memref<32x96xbf16, #tpu.memory_space<vmem>>, vector<32x96xbf16>
    %cst = arith.constant dense<0.000000e+00> : vector<8x96xf32>
    %6 = tpu.matmul %4, %5, %cst {dimension_numbers = #tpu.dot_dimension_numbers<[1], [0], [0], [1], [0, 0, 1, 1], [], []>} : vector<8x32xbf16>, vector<32x96xbf16>, vector<8x96xf32> -> vector<8x96xf32>
    %c0_7 = arith.constant 0 : index
    %c0_8 = arith.constant 0 : index
    %7 = vector.load %arg5[%c0_7, %c0_8] : memref<1x96xf32, #tpu.memory_space<vmem>>, vector<1x96xf32>
    %8 = vector.broadcast %7 : vector<1x96xf32> to vector<8x96xf32>
    %9 = arith.addf %6, %8 : vector<8x96xf32>
    %10 = vector.extract_strided_slice %9 {offsets = [0, 0], sizes = [8, 32], strides = [1, 1]} : vector<8x96xf32> to vector<8x32xf32>
    %cst_9 = arith.constant 0.353553385 : f32
    %11 = vector.broadcast %cst_9 : f32 to vector<8x32xf32>
    %12 = arith.mulf %10, %11 : vector<8x32xf32>
    %13 = vector.extract_strided_slice %9 {offsets = [0, 32], sizes = [8, 32], strides = [1, 1]} : vector<8x96xf32> to vector<8x32xf32>
    %14 = vector.extract_strided_slice %9 {offsets = [0, 64], sizes = [8, 32], strides = [1, 1]} : vector<8x96xf32> to vector<8x32xf32>
    %15 = arith.truncf %12 : vector<8x32xf32> to vector<8x32xbf16>
    %16 = arith.truncf %13 : vector<8x32xf32> to vector<8x32xbf16>
    %17 = arith.truncf %14 : vector<8x32xf32> to vector<8x32xbf16>
    %18 = vector.extract_strided_slice %15 {offsets = [0, 0], sizes = [8, 8], strides = [1, 1]} : vector<8x32xbf16> to vector<8x8xbf16>
    %19 = vector.extract_strided_slice %16 {offsets = [0, 0], sizes = [8, 8], strides = [1, 1]} : vector<8x32xbf16> to vector<8x8xbf16>
    %cst_10 = arith.constant dense<0.000000e+00> : vector<8x8xf32>
    %20 = tpu.matmul %18, %19, %cst_10 {dimension_numbers = #tpu.dot_dimension_numbers<[1], [1], [0], [0], [0, 0, 1, 0], [], []>} : vector<8x8xbf16>, vector<8x8xbf16>, vector<8x8xf32> -> vector<8x8xf32>
    %cst_11 = arith.constant dense<0xFF800000> : vector<8xf32>
    %21 = vector.multi_reduction <maximumf>, %20, %cst_11 [1] : vector<8x8xf32> to vector<8xf32>
    %22 = vector.shape_cast %21 : vector<8xf32> to vector<8x1xf32>
    %23 = vector.broadcast %22 : vector<8x1xf32> to vector<8x8xf32>
    %24 = arith.subf %20, %23 : vector<8x8xf32>
    %25 = math.exp %24 : vector<8x8xf32>
    %cst_12 = arith.constant dense<0.000000e+00> : vector<8xf32>
    %26 = vector.multi_reduction <add>, %25, %cst_12 [1] : vector<8x8xf32> to vector<8xf32>
    %27 = vector.shape_cast %26 : vector<8xf32> to vector<8x1xf32>
    %28 = tpu.reciprocal %27 {approx = true} : vector<8x1xf32> -> vector<8x1xf32>
    %29 = vector.broadcast %28 : vector<8x1xf32> to vector<8x8xf32>
    %30 = arith.mulf %25, %29 : vector<8x8xf32>
    %31 = arith.truncf %30 : vector<8x8xf32> to vector<8x8xbf16>
    %32 = vector.extract_strided_slice %17 {offsets = [0, 0], sizes = [8, 8], strides = [1, 1]} : vector<8x32xbf16> to vector<8x8xbf16>
    %cst_13 = arith.constant dense<0.000000e+00> : vector<8x8xf32>
    %33 = tpu.matmul %31, %32, %cst_13 {dimension_numbers = #tpu.dot_dimension_numbers<[1], [0], [0], [1], [0, 0, 1, 1], [], []>} : vector<8x8xbf16>, vector<8x8xbf16>, vector<8x8xf32> -> vector<8x8xf32>
    %34 = vector.extract_strided_slice %15 {offsets = [0, 8], sizes = [8, 8], strides = [1, 1]} : vector<8x32xbf16> to vector<8x8xbf16>
    %35 = vector.extract_strided_slice %16 {offsets = [0, 8], sizes = [8, 8], strides = [1, 1]} : vector<8x32xbf16> to vector<8x8xbf16>
    %cst_14 = arith.constant dense<0.000000e+00> : vector<8x8xf32>
    %36 = tpu.matmul %34, %35, %cst_14 {dimension_numbers = #tpu.dot_dimension_numbers<[1], [1], [0], [0], [0, 0, 1, 0], [], []>} : vector<8x8xbf16>, vector<8x8xbf16>, vector<8x8xf32> -> vector<8x8xf32>
    %cst_15 = arith.constant dense<0xFF800000> : vector<8xf32>
    %37 = vector.multi_reduction <maximumf>, %36, %cst_15 [1] : vector<8x8xf32> to vector<8xf32>
    %38 = vector.shape_cast %37 : vector<8xf32> to vector<8x1xf32>
    %39 = vector.broadcast %38 : vector<8x1xf32> to vector<8x8xf32>
    %40 = arith.subf %36, %39 : vector<8x8xf32>
    %41 = math.exp %40 : vector<8x8xf32>
    %cst_16 = arith.constant dense<0.000000e+00> : vector<8xf32>
    %42 = vector.multi_reduction <add>, %41, %cst_16 [1] : vector<8x8xf32> to vector<8xf32>
    %43 = vector.shape_cast %42 : vector<8xf32> to vector<8x1xf32>
    %44 = tpu.reciprocal %43 {approx = true} : vector<8x1xf32> -> vector<8x1xf32>
    %45 = vector.broadcast %44 : vector<8x1xf32> to vector<8x8xf32>
    %46 = arith.mulf %41, %45 : vector<8x8xf32>
    %47 = arith.truncf %46 : vector<8x8xf32> to vector<8x8xbf16>
    %48 = vector.extract_strided_slice %17 {offsets = [0, 8], sizes = [8, 8], strides = [1, 1]} : vector<8x32xbf16> to vector<8x8xbf16>
    %cst_17 = arith.constant dense<0.000000e+00> : vector<8x8xf32>
    %49 = tpu.matmul %47, %48, %cst_17 {dimension_numbers = #tpu.dot_dimension_numbers<[1], [0], [0], [1], [0, 0, 1, 1], [], []>} : vector<8x8xbf16>, vector<8x8xbf16>, vector<8x8xf32> -> vector<8x8xf32>
    %50 = vector.extract_strided_slice %15 {offsets = [0, 16], sizes = [8, 8], strides = [1, 1]} : vector<8x32xbf16> to vector<8x8xbf16>
    %51 = vector.extract_strided_slice %16 {offsets = [0, 16], sizes = [8, 8], strides = [1, 1]} : vector<8x32xbf16> to vector<8x8xbf16>
    %cst_18 = arith.constant dense<0.000000e+00> : vector<8x8xf32>
    %52 = tpu.matmul %50, %51, %cst_18 {dimension_numbers = #tpu.dot_dimension_numbers<[1], [1], [0], [0], [0, 0, 1, 0], [], []>} : vector<8x8xbf16>, vector<8x8xbf16>, vector<8x8xf32> -> vector<8x8xf32>
    %cst_19 = arith.constant dense<0xFF800000> : vector<8xf32>
    %53 = vector.multi_reduction <maximumf>, %52, %cst_19 [1] : vector<8x8xf32> to vector<8xf32>
    %54 = vector.shape_cast %53 : vector<8xf32> to vector<8x1xf32>
    %55 = vector.broadcast %54 : vector<8x1xf32> to vector<8x8xf32>
    %56 = arith.subf %52, %55 : vector<8x8xf32>
    %57 = math.exp %56 : vector<8x8xf32>
    %cst_20 = arith.constant dense<0.000000e+00> : vector<8xf32>
    %58 = vector.multi_reduction <add>, %57, %cst_20 [1] : vector<8x8xf32> to vector<8xf32>
    %59 = vector.shape_cast %58 : vector<8xf32> to vector<8x1xf32>
    %60 = tpu.reciprocal %59 {approx = true} : vector<8x1xf32> -> vector<8x1xf32>
    %61 = vector.broadcast %60 : vector<8x1xf32> to vector<8x8xf32>
    %62 = arith.mulf %57, %61 : vector<8x8xf32>
    %63 = arith.truncf %62 : vector<8x8xf32> to vector<8x8xbf16>
    %64 = vector.extract_strided_slice %17 {offsets = [0, 16], sizes = [8, 8], strides = [1, 1]} : vector<8x32xbf16> to vector<8x8xbf16>
    %cst_21 = arith.constant dense<0.000000e+00> : vector<8x8xf32>
    %65 = tpu.matmul %63, %64, %cst_21 {dimension_numbers = #tpu.dot_dimension_numbers<[1], [0], [0], [1], [0, 0, 1, 1], [], []>} : vector<8x8xbf16>, vector<8x8xbf16>, vector<8x8xf32> -> vector<8x8xf32>
    %66 = vector.extract_strided_slice %15 {offsets = [0, 24], sizes = [8, 8], strides = [1, 1]} : vector<8x32xbf16> to vector<8x8xbf16>
    %67 = vector.extract_strided_slice %16 {offsets = [0, 24], sizes = [8, 8], strides = [1, 1]} : vector<8x32xbf16> to vector<8x8xbf16>
    %cst_22 = arith.constant dense<0.000000e+00> : vector<8x8xf32>
    %68 = tpu.matmul %66, %67, %cst_22 {dimension_numbers = #tpu.dot_dimension_numbers<[1], [1], [0], [0], [0, 0, 1, 0], [], []>} : vector<8x8xbf16>, vector<8x8xbf16>, vector<8x8xf32> -> vector<8x8xf32>
    %cst_23 = arith.constant dense<0xFF800000> : vector<8xf32>
    %69 = vector.multi_reduction <maximumf>, %68, %cst_23 [1] : vector<8x8xf32> to vector<8xf32>
    %70 = vector.shape_cast %69 : vector<8xf32> to vector<8x1xf32>
    %71 = vector.broadcast %70 : vector<8x1xf32> to vector<8x8xf32>
    %72 = arith.subf %68, %71 : vector<8x8xf32>
    %73 = math.exp %72 : vector<8x8xf32>
    %cst_24 = arith.constant dense<0.000000e+00> : vector<8xf32>
    %74 = vector.multi_reduction <add>, %73, %cst_24 [1] : vector<8x8xf32> to vector<8xf32>
    %75 = vector.shape_cast %74 : vector<8xf32> to vector<8x1xf32>
    %76 = tpu.reciprocal %75 {approx = true} : vector<8x1xf32> -> vector<8x1xf32>
    %77 = vector.broadcast %76 : vector<8x1xf32> to vector<8x8xf32>
    %78 = arith.mulf %73, %77 : vector<8x8xf32>
    %79 = arith.truncf %78 : vector<8x8xf32> to vector<8x8xbf16>
    %80 = vector.extract_strided_slice %17 {offsets = [0, 24], sizes = [8, 8], strides = [1, 1]} : vector<8x32xbf16> to vector<8x8xbf16>
    %cst_25 = arith.constant dense<0.000000e+00> : vector<8x8xf32>
    %81 = tpu.matmul %79, %80, %cst_25 {dimension_numbers = #tpu.dot_dimension_numbers<[1], [0], [0], [1], [0, 0, 1, 1], [], []>} : vector<8x8xbf16>, vector<8x8xbf16>, vector<8x8xf32> -> vector<8x8xf32>
    %82 = tpu.concatenate %33, %49, %65, %81 in 1 : vector<8x8xf32>, vector<8x8xf32>, vector<8x8xf32>, vector<8x8xf32> -> vector<8x32xf32>
    %83 = arith.truncf %82 : vector<8x32xf32> to vector<8x32xbf16>
    %c0_26 = arith.constant 0 : index
    %c0_27 = arith.constant 0 : index
    %84 = vector.load %arg6[%c0_26, %c0_27] : memref<32x32xbf16, #tpu.memory_space<vmem>>, vector<32x32xbf16>
    %cst_28 = arith.constant dense<0.000000e+00> : vector<8x32xf32>
    %85 = tpu.matmul %83, %84, %cst_28 {dimension_numbers = #tpu.dot_dimension_numbers<[1], [0], [0], [1], [0, 0, 1, 1], [], []>} : vector<8x32xbf16>, vector<32x32xbf16>, vector<8x32xf32> -> vector<8x32xf32>
    %c0_29 = arith.constant 0 : index
    %c0_30 = arith.constant 0 : index
    %86 = vector.load %arg7[%c0_29, %c0_30] : memref<1x32xf32, #tpu.memory_space<vmem>>, vector<1x32xf32>
    %87 = vector.broadcast %86 : vector<1x32xf32> to vector<8x32xf32>
    %88 = arith.addf %85, %87 : vector<8x32xf32>
    %89 = arith.addf %1, %88 : vector<8x32xf32>
    %90 = tpu.iota {dimensions = array<i32: 0>} : vector<8x32xi32>
    %91 = vector.extract_strided_slice %89 {offsets = [0, 0], sizes = [1, 32], strides = [1, 1]} : vector<8x32xf32> to vector<1x32xf32>
    %92 = vector.shape_cast %91 : vector<1x32xf32> to vector<1x32xf32>
    %93 = vector.broadcast %92 : vector<1x32xf32> to vector<8x32xf32>
    %94 = vector.extract_strided_slice %89 {offsets = [7, 0], sizes = [1, 32], strides = [1, 1]} : vector<8x32xf32> to vector<1x32xf32>
    %95 = vector.shape_cast %94 : vector<1x32xf32> to vector<1x32xf32>
    %96 = vector.broadcast %95 : vector<1x32xf32> to vector<8x32xf32>
    %c7_i32 = arith.constant 7 : i32
    %97 = tpu.dynamic_rotate %89 by %c7_i32 dim 0 : vector<8x32xf32>, i32 -> vector<8x32xf32>
    %c7_i32_31 = arith.constant 7 : i32
    %98 = vector.broadcast %c7_i32_31 : i32 to vector<8x32xi32>
    %99 = arith.cmpi sge, %90, %98 : vector<8x32xi32>
    %100 = arith.select %99, %96, %97 : vector<8x32xi1>, vector<8x32xf32>
    %c1_i32 = arith.constant 1 : i32
    %101 = tpu.dynamic_rotate %89 by %c1_i32 dim 0 : vector<8x32xf32>, i32 -> vector<8x32xf32>
    %c1_i32_32 = arith.constant 1 : i32
    %102 = vector.broadcast %c1_i32_32 : i32 to vector<8x32xi32>
    %103 = arith.cmpi slt, %90, %102 : vector<8x32xi32>
    %104 = arith.select %103, %93, %101 : vector<8x32xi1>, vector<8x32xf32>
    %105 = arith.addf %89, %100 : vector<8x32xf32>
    %106 = arith.addf %105, %104 : vector<8x32xf32>
    %c6_i32 = arith.constant 6 : i32
    %107 = tpu.dynamic_rotate %89 by %c6_i32 dim 0 : vector<8x32xf32>, i32 -> vector<8x32xf32>
    %c6_i32_33 = arith.constant 6 : i32
    %108 = vector.broadcast %c6_i32_33 : i32 to vector<8x32xi32>
    %109 = arith.cmpi sge, %90, %108 : vector<8x32xi32>
    %110 = arith.select %109, %96, %107 : vector<8x32xi1>, vector<8x32xf32>
    %c2_i32 = arith.constant 2 : i32
    %111 = tpu.dynamic_rotate %89 by %c2_i32 dim 0 : vector<8x32xf32>, i32 -> vector<8x32xf32>
    %c2_i32_34 = arith.constant 2 : i32
    %112 = vector.broadcast %c2_i32_34 : i32 to vector<8x32xi32>
    %113 = arith.cmpi slt, %90, %112 : vector<8x32xi32>
    %114 = arith.select %113, %93, %111 : vector<8x32xi1>, vector<8x32xf32>
    %115 = arith.addf %106, %110 : vector<8x32xf32>
    %116 = arith.addf %115, %114 : vector<8x32xf32>
    %cst_35 = arith.constant 2.000000e-01 : f32
    %117 = vector.broadcast %cst_35 : f32 to vector<8x32xf32>
    %118 = arith.mulf %116, %117 : vector<8x32xf32>
    %119 = arith.subf %89, %118 : vector<8x32xf32>
    %120 = arith.truncf %119 : vector<8x32xf32> to vector<8x32xbf16>
    %c0_36 = arith.constant 0 : index
    %c0_37 = arith.constant 0 : index
    %121 = vector.load %arg8[%c0_36, %c0_37] : memref<32x32xbf16, #tpu.memory_space<vmem>>, vector<32x32xbf16>
    %cst_38 = arith.constant dense<0.000000e+00> : vector<8x32xf32>
    %122 = tpu.matmul %120, %121, %cst_38 {dimension_numbers = #tpu.dot_dimension_numbers<[1], [0], [0], [1], [0, 0, 1, 1], [], []>} : vector<8x32xbf16>, vector<32x32xbf16>, vector<8x32xf32> -> vector<8x32xf32>
    %c0_39 = arith.constant 0 : index
    %c0_40 = arith.constant 0 : index
    %123 = vector.load %arg9[%c0_39, %c0_40] : memref<1x32xf32, #tpu.memory_space<vmem>>, vector<1x32xf32>
    %124 = vector.broadcast %123 : vector<1x32xf32> to vector<8x32xf32>
    %125 = arith.addf %122, %124 : vector<8x32xf32>
    %cst_41 = arith.constant 0.353553385 : f32
    %126 = vector.broadcast %cst_41 : f32 to vector<8x32xf32>
    %127 = arith.mulf %125, %126 : vector<8x32xf32>
    %128 = arith.truncf %3 : vector<16x32xf32> to vector<16x32xbf16>
    %c0_42 = arith.constant 0 : index
    %c0_43 = arith.constant 0 : index
    %129 = vector.load %arg10[%c0_42, %c0_43] : memref<32x64xbf16, #tpu.memory_space<vmem>>, vector<32x64xbf16>
    %cst_44 = arith.constant dense<0.000000e+00> : vector<16x64xf32>
    %130 = tpu.matmul %128, %129, %cst_44 {dimension_numbers = #tpu.dot_dimension_numbers<[1], [0], [0], [1], [0, 0, 1, 1], [], []>} : vector<16x32xbf16>, vector<32x64xbf16>, vector<16x64xf32> -> vector<16x64xf32>
    %c0_45 = arith.constant 0 : index
    %c0_46 = arith.constant 0 : index
    %131 = vector.load %arg11[%c0_45, %c0_46] : memref<1x64xf32, #tpu.memory_space<vmem>>, vector<1x64xf32>
    %132 = vector.broadcast %131 : vector<1x64xf32> to vector<16x64xf32>
    %133 = arith.addf %130, %132 : vector<16x64xf32>
    %134 = vector.extract_strided_slice %133 {offsets = [0, 0], sizes = [16, 32], strides = [1, 1]} : vector<16x64xf32> to vector<16x32xf32>
    %135 = vector.extract_strided_slice %133 {offsets = [0, 32], sizes = [16, 32], strides = [1, 1]} : vector<16x64xf32> to vector<16x32xf32>
    %136 = arith.truncf %127 : vector<8x32xf32> to vector<8x32xbf16>
    %137 = arith.truncf %134 : vector<16x32xf32> to vector<16x32xbf16>
    %138 = arith.truncf %135 : vector<16x32xf32> to vector<16x32xbf16>
    %139 = vector.extract_strided_slice %136 {offsets = [0, 0], sizes = [8, 8], strides = [1, 1]} : vector<8x32xbf16> to vector<8x8xbf16>
    %140 = vector.extract_strided_slice %137 {offsets = [0, 0], sizes = [16, 8], strides = [1, 1]} : vector<16x32xbf16> to vector<16x8xbf16>
    %cst_47 = arith.constant dense<0.000000e+00> : vector<8x16xf32>
    %141 = tpu.matmul %139, %140, %cst_47 {dimension_numbers = #tpu.dot_dimension_numbers<[1], [1], [0], [0], [0, 0, 1, 0], [], []>} : vector<8x8xbf16>, vector<16x8xbf16>, vector<8x16xf32> -> vector<8x16xf32>
    %cst_48 = arith.constant dense<0xFF800000> : vector<8xf32>
    %142 = vector.multi_reduction <maximumf>, %141, %cst_48 [1] : vector<8x16xf32> to vector<8xf32>
    %143 = vector.shape_cast %142 : vector<8xf32> to vector<8x1xf32>
    %144 = vector.broadcast %143 : vector<8x1xf32> to vector<8x16xf32>
    %145 = arith.subf %141, %144 : vector<8x16xf32>
    %146 = math.exp %145 : vector<8x16xf32>
    %cst_49 = arith.constant dense<0.000000e+00> : vector<8xf32>
    %147 = vector.multi_reduction <add>, %146, %cst_49 [1] : vector<8x16xf32> to vector<8xf32>
    %148 = vector.shape_cast %147 : vector<8xf32> to vector<8x1xf32>
    %149 = tpu.reciprocal %148 {approx = true} : vector<8x1xf32> -> vector<8x1xf32>
    %150 = vector.broadcast %149 : vector<8x1xf32> to vector<8x16xf32>
    %151 = arith.mulf %146, %150 : vector<8x16xf32>
    %152 = arith.truncf %151 : vector<8x16xf32> to vector<8x16xbf16>
    %153 = vector.extract_strided_slice %138 {offsets = [0, 0], sizes = [16, 8], strides = [1, 1]} : vector<16x32xbf16> to vector<16x8xbf16>
    %cst_50 = arith.constant dense<0.000000e+00> : vector<8x8xf32>
    %154 = tpu.matmul %152, %153, %cst_50 {dimension_numbers = #tpu.dot_dimension_numbers<[1], [0], [0], [1], [0, 0, 1, 1], [], []>} : vector<8x16xbf16>, vector<16x8xbf16>, vector<8x8xf32> -> vector<8x8xf32>
    %155 = vector.extract_strided_slice %136 {offsets = [0, 8], sizes = [8, 8], strides = [1, 1]} : vector<8x32xbf16> to vector<8x8xbf16>
    %156 = vector.extract_strided_slice %137 {offsets = [0, 8], sizes = [16, 8], strides = [1, 1]} : vector<16x32xbf16> to vector<16x8xbf16>
    %cst_51 = arith.constant dense<0.000000e+00> : vector<8x16xf32>
    %157 = tpu.matmul %155, %156, %cst_51 {dimension_numbers = #tpu.dot_dimension_numbers<[1], [1], [0], [0], [0, 0, 1, 0], [], []>} : vector<8x8xbf16>, vector<16x8xbf16>, vector<8x16xf32> -> vector<8x16xf32>
    %cst_52 = arith.constant dense<0xFF800000> : vector<8xf32>
    %158 = vector.multi_reduction <maximumf>, %157, %cst_52 [1] : vector<8x16xf32> to vector<8xf32>
    %159 = vector.shape_cast %158 : vector<8xf32> to vector<8x1xf32>
    %160 = vector.broadcast %159 : vector<8x1xf32> to vector<8x16xf32>
    %161 = arith.subf %157, %160 : vector<8x16xf32>
    %162 = math.exp %161 : vector<8x16xf32>
    %cst_53 = arith.constant dense<0.000000e+00> : vector<8xf32>
    %163 = vector.multi_reduction <add>, %162, %cst_53 [1] : vector<8x16xf32> to vector<8xf32>
    %164 = vector.shape_cast %163 : vector<8xf32> to vector<8x1xf32>
    %165 = tpu.reciprocal %164 {approx = true} : vector<8x1xf32> -> vector<8x1xf32>
    %166 = vector.broadcast %165 : vector<8x1xf32> to vector<8x16xf32>
    %167 = arith.mulf %162, %166 : vector<8x16xf32>
    %168 = arith.truncf %167 : vector<8x16xf32> to vector<8x16xbf16>
    %169 = vector.extract_strided_slice %138 {offsets = [0, 8], sizes = [16, 8], strides = [1, 1]} : vector<16x32xbf16> to vector<16x8xbf16>
    %cst_54 = arith.constant dense<0.000000e+00> : vector<8x8xf32>
    %170 = tpu.matmul %168, %169, %cst_54 {dimension_numbers = #tpu.dot_dimension_numbers<[1], [0], [0], [1], [0, 0, 1, 1], [], []>} : vector<8x16xbf16>, vector<16x8xbf16>, vector<8x8xf32> -> vector<8x8xf32>
    %171 = vector.extract_strided_slice %136 {offsets = [0, 16], sizes = [8, 8], strides = [1, 1]} : vector<8x32xbf16> to vector<8x8xbf16>
    %172 = vector.extract_strided_slice %137 {offsets = [0, 16], sizes = [16, 8], strides = [1, 1]} : vector<16x32xbf16> to vector<16x8xbf16>
    %cst_55 = arith.constant dense<0.000000e+00> : vector<8x16xf32>
    %173 = tpu.matmul %171, %172, %cst_55 {dimension_numbers = #tpu.dot_dimension_numbers<[1], [1], [0], [0], [0, 0, 1, 0], [], []>} : vector<8x8xbf16>, vector<16x8xbf16>, vector<8x16xf32> -> vector<8x16xf32>
    %cst_56 = arith.constant dense<0xFF800000> : vector<8xf32>
    %174 = vector.multi_reduction <maximumf>, %173, %cst_56 [1] : vector<8x16xf32> to vector<8xf32>
    %175 = vector.shape_cast %174 : vector<8xf32> to vector<8x1xf32>
    %176 = vector.broadcast %175 : vector<8x1xf32> to vector<8x16xf32>
    %177 = arith.subf %173, %176 : vector<8x16xf32>
    %178 = math.exp %177 : vector<8x16xf32>
    %cst_57 = arith.constant dense<0.000000e+00> : vector<8xf32>
    %179 = vector.multi_reduction <add>, %178, %cst_57 [1] : vector<8x16xf32> to vector<8xf32>
    %180 = vector.shape_cast %179 : vector<8xf32> to vector<8x1xf32>
    %181 = tpu.reciprocal %180 {approx = true} : vector<8x1xf32> -> vector<8x1xf32>
    %182 = vector.broadcast %181 : vector<8x1xf32> to vector<8x16xf32>
    %183 = arith.mulf %178, %182 : vector<8x16xf32>
    %184 = arith.truncf %183 : vector<8x16xf32> to vector<8x16xbf16>
    %185 = vector.extract_strided_slice %138 {offsets = [0, 16], sizes = [16, 8], strides = [1, 1]} : vector<16x32xbf16> to vector<16x8xbf16>
    %cst_58 = arith.constant dense<0.000000e+00> : vector<8x8xf32>
    %186 = tpu.matmul %184, %185, %cst_58 {dimension_numbers = #tpu.dot_dimension_numbers<[1], [0], [0], [1], [0, 0, 1, 1], [], []>} : vector<8x16xbf16>, vector<16x8xbf16>, vector<8x8xf32> -> vector<8x8xf32>
    %187 = vector.extract_strided_slice %136 {offsets = [0, 24], sizes = [8, 8], strides = [1, 1]} : vector<8x32xbf16> to vector<8x8xbf16>
    %188 = vector.extract_strided_slice %137 {offsets = [0, 24], sizes = [16, 8], strides = [1, 1]} : vector<16x32xbf16> to vector<16x8xbf16>
    %cst_59 = arith.constant dense<0.000000e+00> : vector<8x16xf32>
    %189 = tpu.matmul %187, %188, %cst_59 {dimension_numbers = #tpu.dot_dimension_numbers<[1], [1], [0], [0], [0, 0, 1, 0], [], []>} : vector<8x8xbf16>, vector<16x8xbf16>, vector<8x16xf32> -> vector<8x16xf32>
    %cst_60 = arith.constant dense<0xFF800000> : vector<8xf32>
    %190 = vector.multi_reduction <maximumf>, %189, %cst_60 [1] : vector<8x16xf32> to vector<8xf32>
    %191 = vector.shape_cast %190 : vector<8xf32> to vector<8x1xf32>
    %192 = vector.broadcast %191 : vector<8x1xf32> to vector<8x16xf32>
    %193 = arith.subf %189, %192 : vector<8x16xf32>
    %194 = math.exp %193 : vector<8x16xf32>
    %cst_61 = arith.constant dense<0.000000e+00> : vector<8xf32>
    %195 = vector.multi_reduction <add>, %194, %cst_61 [1] : vector<8x16xf32> to vector<8xf32>
    %196 = vector.shape_cast %195 : vector<8xf32> to vector<8x1xf32>
    %197 = tpu.reciprocal %196 {approx = true} : vector<8x1xf32> -> vector<8x1xf32>
    %198 = vector.broadcast %197 : vector<8x1xf32> to vector<8x16xf32>
    %199 = arith.mulf %194, %198 : vector<8x16xf32>
    %200 = arith.truncf %199 : vector<8x16xf32> to vector<8x16xbf16>
    %201 = vector.extract_strided_slice %138 {offsets = [0, 24], sizes = [16, 8], strides = [1, 1]} : vector<16x32xbf16> to vector<16x8xbf16>
    %cst_62 = arith.constant dense<0.000000e+00> : vector<8x8xf32>
    %202 = tpu.matmul %200, %201, %cst_62 {dimension_numbers = #tpu.dot_dimension_numbers<[1], [0], [0], [1], [0, 0, 1, 1], [], []>} : vector<8x16xbf16>, vector<16x8xbf16>, vector<8x8xf32> -> vector<8x8xf32>
    %203 = tpu.concatenate %154, %170, %186, %202 in 1 : vector<8x8xf32>, vector<8x8xf32>, vector<8x8xf32>, vector<8x8xf32> -> vector<8x32xf32>
    %204 = arith.truncf %203 : vector<8x32xf32> to vector<8x32xbf16>
    %c0_63 = arith.constant 0 : index
    %c0_64 = arith.constant 0 : index
    %205 = vector.load %arg12[%c0_63, %c0_64] : memref<32x32xbf16, #tpu.memory_space<vmem>>, vector<32x32xbf16>
    %cst_65 = arith.constant dense<0.000000e+00> : vector<8x32xf32>
    %206 = tpu.matmul %204, %205, %cst_65 {dimension_numbers = #tpu.dot_dimension_numbers<[1], [0], [0], [1], [0, 0, 1, 1], [], []>} : vector<8x32xbf16>, vector<32x32xbf16>, vector<8x32xf32> -> vector<8x32xf32>
    %c0_66 = arith.constant 0 : index
    %c0_67 = arith.constant 0 : index
    %207 = vector.load %arg13[%c0_66, %c0_67] : memref<1x32xf32, #tpu.memory_space<vmem>>, vector<1x32xf32>
    %208 = vector.broadcast %207 : vector<1x32xf32> to vector<8x32xf32>
    %209 = arith.addf %206, %208 : vector<8x32xf32>
    %210 = arith.addf %119, %209 : vector<8x32xf32>
    %211 = tpu.iota {dimensions = array<i32: 0>} : vector<8x32xi32>
    %212 = vector.extract_strided_slice %210 {offsets = [0, 0], sizes = [1, 32], strides = [1, 1]} : vector<8x32xf32> to vector<1x32xf32>
    %213 = vector.shape_cast %212 : vector<1x32xf32> to vector<1x32xf32>
    %214 = vector.broadcast %213 : vector<1x32xf32> to vector<8x32xf32>
    %215 = vector.extract_strided_slice %210 {offsets = [7, 0], sizes = [1, 32], strides = [1, 1]} : vector<8x32xf32> to vector<1x32xf32>
    %216 = vector.shape_cast %215 : vector<1x32xf32> to vector<1x32xf32>
    %217 = vector.broadcast %216 : vector<1x32xf32> to vector<8x32xf32>
    %c7_i32_68 = arith.constant 7 : i32
    %218 = tpu.dynamic_rotate %210 by %c7_i32_68 dim 0 : vector<8x32xf32>, i32 -> vector<8x32xf32>
    %c7_i32_69 = arith.constant 7 : i32
    %219 = vector.broadcast %c7_i32_69 : i32 to vector<8x32xi32>
    %220 = arith.cmpi sge, %211, %219 : vector<8x32xi32>
    %221 = arith.select %220, %217, %218 : vector<8x32xi1>, vector<8x32xf32>
    %c1_i32_70 = arith.constant 1 : i32
    %222 = tpu.dynamic_rotate %210 by %c1_i32_70 dim 0 : vector<8x32xf32>, i32 -> vector<8x32xf32>
    %c1_i32_71 = arith.constant 1 : i32
    %223 = vector.broadcast %c1_i32_71 : i32 to vector<8x32xi32>
    %224 = arith.cmpi slt, %211, %223 : vector<8x32xi32>
    %225 = arith.select %224, %214, %222 : vector<8x32xi1>, vector<8x32xf32>
    %226 = arith.addf %210, %221 : vector<8x32xf32>
    %227 = arith.addf %226, %225 : vector<8x32xf32>
    %c6_i32_72 = arith.constant 6 : i32
    %228 = tpu.dynamic_rotate %210 by %c6_i32_72 dim 0 : vector<8x32xf32>, i32 -> vector<8x32xf32>
    %c6_i32_73 = arith.constant 6 : i32
    %229 = vector.broadcast %c6_i32_73 : i32 to vector<8x32xi32>
    %230 = arith.cmpi sge, %211, %229 : vector<8x32xi32>
    %231 = arith.select %230, %217, %228 : vector<8x32xi1>, vector<8x32xf32>
    %c2_i32_74 = arith.constant 2 : i32
    %232 = tpu.dynamic_rotate %210 by %c2_i32_74 dim 0 : vector<8x32xf32>, i32 -> vector<8x32xf32>
    %c2_i32_75 = arith.constant 2 : i32
    %233 = vector.broadcast %c2_i32_75 : i32 to vector<8x32xi32>
    %234 = arith.cmpi slt, %211, %233 : vector<8x32xi32>
    %235 = arith.select %234, %214, %232 : vector<8x32xi1>, vector<8x32xf32>
    %236 = arith.addf %227, %231 : vector<8x32xf32>
    %237 = arith.addf %236, %235 : vector<8x32xf32>
    %cst_76 = arith.constant 2.000000e-01 : f32
    %238 = vector.broadcast %cst_76 : f32 to vector<8x32xf32>
    %239 = arith.mulf %237, %238 : vector<8x32xf32>
    %240 = arith.subf %210, %239 : vector<8x32xf32>
    %241 = arith.addf %118, %239 : vector<8x32xf32>
    %242 = arith.truncf %240 : vector<8x32xf32> to vector<8x32xbf16>
    %c0_77 = arith.constant 0 : index
    %c0_78 = arith.constant 0 : index
    %243 = vector.load %arg14[%c0_77, %c0_78] : memref<32x64xbf16, #tpu.memory_space<vmem>>, vector<32x64xbf16>
    %cst_79 = arith.constant dense<0.000000e+00> : vector<8x64xf32>
    %244 = tpu.matmul %242, %243, %cst_79 {dimension_numbers = #tpu.dot_dimension_numbers<[1], [0], [0], [1], [0, 0, 1, 1], [], []>} : vector<8x32xbf16>, vector<32x64xbf16>, vector<8x64xf32> -> vector<8x64xf32>
    %cst_80 = arith.constant 0.000000e+00 : f32
    %245 = vector.broadcast %cst_80 : f32 to vector<8x64xf32>
    %246 = arith.maximumf %244, %245 : vector<8x64xf32>
    %247 = arith.truncf %246 : vector<8x64xf32> to vector<8x64xbf16>
    %c0_81 = arith.constant 0 : index
    %c0_82 = arith.constant 0 : index
    %248 = vector.load %arg15[%c0_81, %c0_82] : memref<64x32xbf16, #tpu.memory_space<vmem>>, vector<64x32xbf16>
    %cst_83 = arith.constant dense<0.000000e+00> : vector<8x32xf32>
    %249 = tpu.matmul %247, %248, %cst_83 {dimension_numbers = #tpu.dot_dimension_numbers<[1], [0], [0], [1], [0, 0, 1, 1], [], []>} : vector<8x64xbf16>, vector<64x32xbf16>, vector<8x32xf32> -> vector<8x32xf32>
    %250 = arith.addf %240, %249 : vector<8x32xf32>
    %251 = tpu.iota {dimensions = array<i32: 0>} : vector<8x32xi32>
    %252 = vector.extract_strided_slice %250 {offsets = [0, 0], sizes = [1, 32], strides = [1, 1]} : vector<8x32xf32> to vector<1x32xf32>
    %253 = vector.shape_cast %252 : vector<1x32xf32> to vector<1x32xf32>
    %254 = vector.broadcast %253 : vector<1x32xf32> to vector<8x32xf32>
    %255 = vector.extract_strided_slice %250 {offsets = [7, 0], sizes = [1, 32], strides = [1, 1]} : vector<8x32xf32> to vector<1x32xf32>
    %256 = vector.shape_cast %255 : vector<1x32xf32> to vector<1x32xf32>
    %257 = vector.broadcast %256 : vector<1x32xf32> to vector<8x32xf32>
    %c7_i32_84 = arith.constant 7 : i32
    %258 = tpu.dynamic_rotate %250 by %c7_i32_84 dim 0 : vector<8x32xf32>, i32 -> vector<8x32xf32>
    %c7_i32_85 = arith.constant 7 : i32
    %259 = vector.broadcast %c7_i32_85 : i32 to vector<8x32xi32>
    %260 = arith.cmpi sge, %251, %259 : vector<8x32xi32>
    %261 = arith.select %260, %257, %258 : vector<8x32xi1>, vector<8x32xf32>
    %c1_i32_86 = arith.constant 1 : i32
    %262 = tpu.dynamic_rotate %250 by %c1_i32_86 dim 0 : vector<8x32xf32>, i32 -> vector<8x32xf32>
    %c1_i32_87 = arith.constant 1 : i32
    %263 = vector.broadcast %c1_i32_87 : i32 to vector<8x32xi32>
    %264 = arith.cmpi slt, %251, %263 : vector<8x32xi32>
    %265 = arith.select %264, %254, %262 : vector<8x32xi1>, vector<8x32xf32>
    %266 = arith.addf %250, %261 : vector<8x32xf32>
    %267 = arith.addf %266, %265 : vector<8x32xf32>
    %c6_i32_88 = arith.constant 6 : i32
    %268 = tpu.dynamic_rotate %250 by %c6_i32_88 dim 0 : vector<8x32xf32>, i32 -> vector<8x32xf32>
    %c6_i32_89 = arith.constant 6 : i32
    %269 = vector.broadcast %c6_i32_89 : i32 to vector<8x32xi32>
    %270 = arith.cmpi sge, %251, %269 : vector<8x32xi32>
    %271 = arith.select %270, %257, %268 : vector<8x32xi1>, vector<8x32xf32>
    %c2_i32_90 = arith.constant 2 : i32
    %272 = tpu.dynamic_rotate %250 by %c2_i32_90 dim 0 : vector<8x32xf32>, i32 -> vector<8x32xf32>
    %c2_i32_91 = arith.constant 2 : i32
    %273 = vector.broadcast %c2_i32_91 : i32 to vector<8x32xi32>
    %274 = arith.cmpi slt, %251, %273 : vector<8x32xi32>
    %275 = arith.select %274, %254, %272 : vector<8x32xi1>, vector<8x32xf32>
    %276 = arith.addf %267, %271 : vector<8x32xf32>
    %277 = arith.addf %276, %275 : vector<8x32xf32>
    %cst_92 = arith.constant 2.000000e-01 : f32
    %278 = vector.broadcast %cst_92 : f32 to vector<8x32xf32>
    %279 = arith.mulf %277, %278 : vector<8x32xf32>
    %280 = arith.subf %250, %279 : vector<8x32xf32>
    %281 = arith.addf %241, %279 : vector<8x32xf32>
    %c1_i32_93 = arith.constant 1 : i32
    %282 = tpu.dynamic_rotate %281 by %c1_i32_93 dim 0 : vector<8x32xf32>, i32 -> vector<8x32xf32>
    %c7_i32_94 = arith.constant 7 : i32
    %283 = tpu.dynamic_rotate %281 by %c7_i32_94 dim 0 : vector<8x32xf32>, i32 -> vector<8x32xf32>
    %284 = tpu.concatenate %282, %281, %283 in 1 : vector<8x32xf32>, vector<8x32xf32>, vector<8x32xf32> -> vector<8x96xf32>
    %285 = arith.truncf %284 : vector<8x96xf32> to vector<8x96xbf16>
    %c0_95 = arith.constant 0 : index
    %c0_96 = arith.constant 0 : index
    %286 = vector.load %arg16[%c0_95, %c0_96] : memref<96x4xbf16, #tpu.memory_space<vmem>>, vector<96x4xbf16>
    %cst_97 = arith.constant dense<0.000000e+00> : vector<8x4xf32>
    %287 = tpu.matmul %285, %286, %cst_97 {dimension_numbers = #tpu.dot_dimension_numbers<[1], [0], [0], [1], [0, 0, 1, 1], [], []>} : vector<8x96xbf16>, vector<96x4xbf16>, vector<8x4xf32> -> vector<8x4xf32>
    %c0_98 = arith.constant 0 : index
    %c0_99 = arith.constant 0 : index
    %c0_100 = arith.constant 0 : index
    %288 = vector.load %arg17[%c0_98, %c0_99, %c0_100] : memref<1x8x32xf32, #tpu.memory_space<vmem>>, vector<1x8x32xf32>
    %289 = vector.shape_cast %288 : vector<1x8x32xf32> to vector<8x32xf32>
    %290 = vector.shape_cast %280 : vector<8x32xf32> to vector<1x8x32xf32>
    tpu.vector_store %arg17[%c0_98, %c0_99, %c0_100], %290 {strides = array<i32>} : memref<1x8x32xf32, #tpu.memory_space<vmem>>, vector<1x8x32xf32>,
    %c0_101 = arith.constant 0 : index
    %c0_102 = arith.constant 0 : index
    %c0_103 = arith.constant 0 : index
    %291 = vector.load %arg3[%c0_101, %c0_102, %c0_103] : memref<1x8x4xf32, #tpu.memory_space<vmem>>, vector<1x8x4xf32>
    %292 = vector.shape_cast %291 : vector<1x8x4xf32> to vector<8x4xf32>
    %293 = arith.addf %292, %287 : vector<8x4xf32>
    %c0_104 = arith.constant 0 : index
    %c0_105 = arith.constant 0 : index
    %c0_106 = arith.constant 0 : index
    %294 = vector.load %arg18[%c0_104, %c0_105, %c0_106] : memref<1x8x4xf32, #tpu.memory_space<vmem>>, vector<1x8x4xf32>
    %295 = vector.shape_cast %294 : vector<1x8x4xf32> to vector<8x4xf32>
    %296 = vector.shape_cast %293 : vector<8x4xf32> to vector<1x8x4xf32>
    tpu.vector_store %arg18[%c0_104, %c0_105, %c0_106], %296 {strides = array<i32>} : memref<1x8x4xf32, #tpu.memory_space<vmem>>, vector<1x8x4xf32>,
    return
  }
  func.func @transform_0(%arg0: i32) -> (i32, i32, i32) {
    %c0_i32 = arith.constant 0 : i32
    %c0_i32_0 = arith.constant 0 : i32
    %c0_i32_1 = arith.constant 0 : i32
    return %arg0, %c0_i32, %c0_i32_0 : i32, i32, i32
  }
  func.func @transform_1(%arg0: i32) -> (i32, i32, i32) {
    %c0_i32 = arith.constant 0 : i32
    %c0_i32_0 = arith.constant 0 : i32
    %c0_i32_1 = arith.constant 0 : i32
    return %arg0, %c0_i32, %c0_i32_0 : i32, i32, i32
  }
  func.func @transform_2(%arg0: i32) -> (i32, i32, i32) {
    %c0_i32 = arith.constant 0 : i32
    %c0_i32_0 = arith.constant 0 : i32
    %c0_i32_1 = arith.constant 0 : i32
    return %arg0, %c0_i32, %c0_i32_0 : i32, i32, i32
  }
  func.func @transform_3(%arg0: i32) -> (i32, i32) {
    %c0_i32 = arith.constant 0 : i32
    %c0_i32_0 = arith.constant 0 : i32
    %c0_i32_1 = arith.constant 0 : i32
    return %c0_i32, %c0_i32_0 : i32, i32
  }
  func.func @transform_4(%arg0: i32) -> (i32, i32) {
    %c0_i32 = arith.constant 0 : i32
    %c0_i32_0 = arith.constant 0 : i32
    %c0_i32_1 = arith.constant 0 : i32
    return %c0_i32, %c0_i32_0 : i32, i32
  }
  func.func @transform_5(%arg0: i32) -> (i32, i32) {
    %c0_i32 = arith.constant 0 : i32
    %c0_i32_0 = arith.constant 0 : i32
    %c0_i32_1 = arith.constant 0 : i32
    return %c0_i32, %c0_i32_0 : i32, i32
  }
  func.func @transform_6(%arg0: i32) -> (i32, i32) {
    %c0_i32 = arith.constant 0 : i32
    %c0_i32_0 = arith.constant 0 : i32
    %c0_i32_1 = arith.constant 0 : i32
    return %c0_i32, %c0_i32_0 : i32, i32
  }
  func.func @transform_7(%arg0: i32) -> (i32, i32) {
    %c0_i32 = arith.constant 0 : i32
    %c0_i32_0 = arith.constant 0 : i32
    %c0_i32_1 = arith.constant 0 : i32
    return %c0_i32, %c0_i32_0 : i32, i32
  }
  func.func @transform_8(%arg0: i32) -> (i32, i32) {
    %c0_i32 = arith.constant 0 : i32
    %c0_i32_0 = arith.constant 0 : i32
    %c0_i32_1 = arith.constant 0 : i32
    return %c0_i32, %c0_i32_0 : i32, i32
  }
  func.func @transform_9(%arg0: i32) -> (i32, i32) {
    %c0_i32 = arith.constant 0 : i32
    %c0_i32_0 = arith.constant 0 : i32
    %c0_i32_1 = arith.constant 0 : i32
    return %c0_i32, %c0_i32_0 : i32, i32
  }
  func.func @transform_10(%arg0: i32) -> (i32, i32) {
    %c0_i32 = arith.constant 0 : i32
    %c0_i32_0 = arith.constant 0 : i32
    %c0_i32_1 = arith.constant 0 : i32
    return %c0_i32, %c0_i32_0 : i32, i32
  }
  func.func @transform_11(%arg0: i32) -> (i32, i32) {
    %c0_i32 = arith.constant 0 : i32
    %c0_i32_0 = arith.constant 0 : i32
    %c0_i32_1 = arith.constant 0 : i32
    return %c0_i32, %c0_i32_0 : i32, i32
  }
  func.func @transform_12(%arg0: i32) -> (i32, i32) {
    %c0_i32 = arith.constant 0 : i32
    %c0_i32_0 = arith.constant 0 : i32
    %c0_i32_1 = arith.constant 0 : i32
    return %c0_i32, %c0_i32_0 : i32, i32
  }
  func.func @transform_13(%arg0: i32) -> (i32, i32) {
    %c0_i32 = arith.constant 0 : i32
    %c0_i32_0 = arith.constant 0 : i32
    %c0_i32_1 = arith.constant 0 : i32
    return %c0_i32, %c0_i32_0 : i32, i32
  }
  func.func @transform_14(%arg0: i32) -> (i32, i32) {
    %c0_i32 = arith.constant 0 : i32
    %c0_i32_0 = arith.constant 0 : i32
    %c0_i32_1 = arith.constant 0 : i32
    return %c0_i32, %c0_i32_0 : i32, i32
  }
  func.func @transform_15(%arg0: i32) -> (i32, i32) {
    %c0_i32 = arith.constant 0 : i32
    %c0_i32_0 = arith.constant 0 : i32
    %c0_i32_1 = arith.constant 0 : i32
    return %c0_i32, %c0_i32_0 : i32, i32
  }
  func.func @transform_16(%arg0: i32) -> (i32, i32, i32) {
    %c0_i32 = arith.constant 0 : i32
    %c0_i32_0 = arith.constant 0 : i32
    %c0_i32_1 = arith.constant 0 : i32
    return %arg0, %c0_i32, %c0_i32_0 : i32, i32, i32
  }
  func.func @transform_17(%arg0: i32) -> (i32, i32, i32) {
    %c0_i32 = arith.constant 0 : i32
    %c0_i32_0 = arith.constant 0 : i32
    %c0_i32_1 = arith.constant 0 : i32
    return %arg0, %c0_i32, %c0_i32_0 : i32, i32, i32
  }
}

module attributes {stable_mosaic.version = 11 : i64} {
  func.func @_norm_project_kernel(%arg0: i32, %arg1: memref<1x8x32xf32, #tpu.memory_space<vmem>>, %arg2: memref<1x32xf32, #tpu.memory_space<vmem>>, %arg3: memref<1x32xf32, #tpu.memory_space<vmem>>, %arg4: memref<32x4xbf16, #tpu.memory_space<vmem>>, %arg5: memref<1x4xf32, #tpu.memory_space<vmem>>, %arg6: memref<1x8x4xf32, #tpu.memory_space<vmem>>) attributes {dimension_semantics = [#tpu.dimension_semantics<parallel>], iteration_bounds = array<i64: 2>, scalar_prefetch = 0 : i64, scratch_operands = 0 : i64, tpu.core_type = #tpu.core_type<tc>, window_params = [{transform_indices = @transform_0, window_bounds = array<i64: 1, 8, 32>}, {pipeline_mode = #tpu.pipeline_mode<synchronous>, transform_indices = @transform_1, window_bounds = array<i64: 1, 32>}, {pipeline_mode = #tpu.pipeline_mode<synchronous>, transform_indices = @transform_2, window_bounds = array<i64: 1, 32>}, {pipeline_mode = #tpu.pipeline_mode<synchronous>, transform_indices = @transform_3, window_bounds = array<i64: 32, 4>}, {pipeline_mode = #tpu.pipeline_mode<synchronous>, transform_indices = @transform_4, window_bounds = array<i64: 1, 4>}, {transform_indices = @transform_5, window_bounds = array<i64: 1, 8, 4>}]} {
    %c0 = arith.constant 0 : index
    %c0_0 = arith.constant 0 : index
    %c0_1 = arith.constant 0 : index
    %0 = vector.load %arg1[%c0, %c0_0, %c0_1] : memref<1x8x32xf32, #tpu.memory_space<vmem>>, vector<1x8x32xf32>
    %1 = vector.shape_cast %0 : vector<1x8x32xf32> to vector<8x32xf32>
    %cst = arith.constant dense<0.000000e+00> : vector<8xf32>
    %2 = vector.multi_reduction <add>, %1, %cst [1] : vector<8x32xf32> to vector<8xf32>
    %3 = vector.shape_cast %2 : vector<8xf32> to vector<8x1xf32>
    %cst_2 = arith.constant 3.200000e+01 : f32
    %4 = vector.broadcast %cst_2 : f32 to vector<8x1xf32>
    %5 = arith.divf %3, %4 : vector<8x1xf32>
    %6 = vector.broadcast %5 : vector<8x1xf32> to vector<8x32xf32>
    %7 = arith.subf %1, %6 : vector<8x32xf32>
    %8 = arith.mulf %7, %7 : vector<8x32xf32>
    %cst_3 = arith.constant dense<0.000000e+00> : vector<8xf32>
    %9 = vector.multi_reduction <add>, %8, %cst_3 [1] : vector<8x32xf32> to vector<8xf32>
    %10 = vector.shape_cast %9 : vector<8xf32> to vector<8x1xf32>
    %cst_4 = arith.constant 3.200000e+01 : f32
    %11 = vector.broadcast %cst_4 : f32 to vector<8x1xf32>
    %12 = arith.divf %10, %11 : vector<8x1xf32>
    %13 = vector.broadcast %5 : vector<8x1xf32> to vector<8x32xf32>
    %14 = arith.subf %1, %13 : vector<8x32xf32>
    %cst_5 = arith.constant 9.99999974E-6 : f32
    %15 = vector.broadcast %cst_5 : f32 to vector<8x1xf32>
    %16 = arith.addf %12, %15 : vector<8x1xf32>
    %17 = math.rsqrt %16 : vector<8x1xf32>
    %18 = vector.broadcast %17 : vector<8x1xf32> to vector<8x32xf32>
    %19 = arith.mulf %14, %18 : vector<8x32xf32>
    %c0_6 = arith.constant 0 : index
    %c0_7 = arith.constant 0 : index
    %20 = vector.load %arg2[%c0_6, %c0_7] : memref<1x32xf32, #tpu.memory_space<vmem>>, vector<1x32xf32>
    %21 = vector.broadcast %20 : vector<1x32xf32> to vector<8x32xf32>
    %22 = arith.mulf %19, %21 : vector<8x32xf32>
    %c0_8 = arith.constant 0 : index
    %c0_9 = arith.constant 0 : index
    %23 = vector.load %arg3[%c0_8, %c0_9] : memref<1x32xf32, #tpu.memory_space<vmem>>, vector<1x32xf32>
    %24 = vector.broadcast %23 : vector<1x32xf32> to vector<8x32xf32>
    %25 = arith.addf %22, %24 : vector<8x32xf32>
    %26 = arith.truncf %25 : vector<8x32xf32> to vector<8x32xbf16>
    %c0_10 = arith.constant 0 : index
    %c0_11 = arith.constant 0 : index
    %27 = vector.load %arg4[%c0_10, %c0_11] : memref<32x4xbf16, #tpu.memory_space<vmem>>, vector<32x4xbf16>
    %cst_12 = arith.constant dense<0.000000e+00> : vector<8x4xf32>
    %28 = tpu.matmul %26, %27, %cst_12 {dimension_numbers = #tpu.dot_dimension_numbers<[1], [0], [0], [1], [0, 0, 1, 1], [], []>} : vector<8x32xbf16>, vector<32x4xbf16>, vector<8x4xf32> -> vector<8x4xf32>
    %cst_13 = arith.constant dense<0.000000e+00> : vector<4xf32>
    %29 = vector.multi_reduction <add>, %28, %cst_13 [0] : vector<8x4xf32> to vector<4xf32>
    %30 = vector.shape_cast %29 : vector<4xf32> to vector<1x4xf32>
    %cst_14 = arith.constant 8.000000e+00 : f32
    %31 = vector.broadcast %cst_14 : f32 to vector<1x4xf32>
    %32 = arith.divf %30, %31 : vector<1x4xf32>
    %33 = vector.broadcast %32 : vector<1x4xf32> to vector<8x4xf32>
    %34 = arith.subf %28, %33 : vector<8x4xf32>
    %c0_15 = arith.constant 0 : index
    %c0_16 = arith.constant 0 : index
    %35 = vector.load %arg5[%c0_15, %c0_16] : memref<1x4xf32, #tpu.memory_space<vmem>>, vector<1x4xf32>
    %36 = vector.broadcast %35 : vector<1x4xf32> to vector<8x4xf32>
    %37 = arith.addf %34, %36 : vector<8x4xf32>
    %c0_17 = arith.constant 0 : index
    %c0_18 = arith.constant 0 : index
    %c0_19 = arith.constant 0 : index
    %38 = vector.load %arg6[%c0_17, %c0_18, %c0_19] : memref<1x8x4xf32, #tpu.memory_space<vmem>>, vector<1x8x4xf32>
    %39 = vector.shape_cast %38 : vector<1x8x4xf32> to vector<8x4xf32>
    %40 = vector.shape_cast %37 : vector<8x4xf32> to vector<1x8x4xf32>
    tpu.vector_store %arg6[%c0_17, %c0_18, %c0_19], %40 {strides = array<i32>} : memref<1x8x4xf32, #tpu.memory_space<vmem>>, vector<1x8x4xf32>,
    return
  }
  func.func @transform_0(%arg0: i32) -> (i32, i32, i32) {
    %c0_i32 = arith.constant 0 : i32
    %c0_i32_0 = arith.constant 0 : i32
    %c0_i32_1 = arith.constant 0 : i32
    return %arg0, %c0_i32, %c0_i32_0 : i32, i32, i32
  }
  func.func @transform_1(%arg0: i32) -> (i32, i32) {
    %c0_i32 = arith.constant 0 : i32
    %c0_i32_0 = arith.constant 0 : i32
    %c0_i32_1 = arith.constant 0 : i32
    return %c0_i32, %c0_i32_0 : i32, i32
  }
  func.func @transform_2(%arg0: i32) -> (i32, i32) {
    %c0_i32 = arith.constant 0 : i32
    %c0_i32_0 = arith.constant 0 : i32
    %c0_i32_1 = arith.constant 0 : i32
    return %c0_i32, %c0_i32_0 : i32, i32
  }
  func.func @transform_3(%arg0: i32) -> (i32, i32) {
    %c0_i32 = arith.constant 0 : i32
    %c0_i32_0 = arith.constant 0 : i32
    %c0_i32_1 = arith.constant 0 : i32
    return %c0_i32, %c0_i32_0 : i32, i32
  }
  func.func @transform_4(%arg0: i32) -> (i32, i32) {
    %c0_i32 = arith.constant 0 : i32
    %c0_i32_0 = arith.constant 0 : i32
    %c0_i32_1 = arith.constant 0 : i32
    return %c0_i32, %c0_i32_0 : i32, i32
  }
  func.func @transform_5(%arg0: i32) -> (i32, i32, i32) {
    %c0_i32 = arith.constant 0 : i32
    %c0_i32_0 = arith.constant 0 : i32
    %c0_i32_1 = arith.constant 0 : i32
    return %arg0, %c0_i32, %c0_i32_0 : i32, i32, i32
  }
}

</mosaic_0001>

<llo_original>
// kernel: tpu_custom_call.1
$region0: #{tpu_custom_call.1}
  #allocation0 [shape = 'u32[]', space=smem, size = 0x4, offset = 0x4, fixed_abs, tag = 'smem constant byte address 0x4 - core index']
  #allocation1 [shape = 'u32[144,128]{1,0:T(1,128)}', space=vmem, size = 0x12000, scoped, tag = 'internal scratch']
  %s0 = inlined_call_operand.hbm [shape: f32[8,128], index: 0, kind: input, shape index: {}]
  %s1 = inlined_call_operand.hbm [shape: f32[8,128], index: 1, kind: output, shape index: {}]
  %s2 = sld [smem:[#allocation0]]
  $region41: #{tpu_custom_call.1} parent=0
    _
  %s4 = ssub.s32 1, %s2
  %s5 = scalar_select 0, %s4, %s2
  $region1: #{tpu_custom_call.1} parent=0
    #allocation2 [shape = 'u8[4096]{0}', space=vmem, size = 0x1000, scoped, tag = 'input window, operand 0, single buffered']
    #allocation3 [shape = 's32[2]{0}', space=sflag, size = 0x8, scoped, tag = 'scoped memory for tpu_custom_call.1']
    #allocation4 [shape = 's32[2]{0}', space=sflag, size = 0x8, scoped, tag = 'scoped memory for tpu_custom_call.1']
    #allocation5 [shape = 'u8[4096]{0}', space=vmem, size = 0x1000, scoped, tag = 'output window, operand 0, single buffered']
    %6 = vsyncpa [#allocation3], 0
    %7 = vsyncpa [#allocation4], 0
    loop: start=0, step=1, limit=4
    $region2: #{tpu_custom_call.1} parent=1 // loop_pre_header
      _
    $region3: #{tpu_custom_call.1} parent=1 // loop_header
      %s9 = sphi 0, %s13
      %p10 = scmp.ge.s32.totalorder %s9, 4
      %s17 = sphi 0, %s17
      %s19 = sphi 0, %s17
      %s20 = sphi 0, %s19
      %s34 = sphi 0, %s20
      %s38 = sphi 0, %s38
      %s40 = sphi 0, %s38
      %s41 = sphi 0, %s40
      %s55 = sphi 0, %s41
    $region4: #{tpu_custom_call.1} parent=1 // loop_header_branch
      %12 = sbr.rel (%p10) target = $region8
    $region5: #{tpu_custom_call.1} parent=1 // loop_body
      %s14 = ssub.s32 %s9, 1
      %s15 = ssub.s32 %s9, 2
      %s16 = sadd.s32 %s9, 1
      %s18 = sadd.s32 %s17, 1
      %p21 = scmp.eq.s32.totalorder %s9, 1
      %p22 = scmp.ne.s32.totalorder %s17, %s19
      %p23 = scmp.eq.s32.totalorder %s9, 0
      %p24 = por %p22, %p23
      %p25 = scmp.ne.s32.totalorder %s17, %s19
      %p26 = scmp.eq.s32.totalorder %s14, 1
      %p27 = por %p25, %p26
      %p28 = scmp.ne.s32.totalorder %s19, %s20
      %p29 = scmp.eq.s32.totalorder %s14, 0
      %p30 = por %p28, %p29
      %p31 = scmp.ne.s32.totalorder %s19, %s20
      %p32 = scmp.eq.s32.totalorder %s15, 1
      %p33 = por %p31, %p32
      %p35 = scmp.ne.s32.totalorder %s20, %s34
      %p36 = scmp.eq.s32.totalorder %s15, 0
      %p37 = por %p35, %p36
      %s39 = sadd.s32 %s38, 1
      %p42 = scmp.eq.s32.totalorder %s9, 1
      %p43 = scmp.ne.s32.totalorder %s38, %s40
      %p44 = scmp.eq.s32.totalorder %s9, 0
      %p45 = por %p43, %p44
      %p46 = scmp.ne.s32.totalorder %s38, %s40
      %p47 = scmp.eq.s32.totalorder %s14, 1
      %p48 = por %p46, %p47
      %p49 = scmp.ne.s32.totalorder %s40, %s41
      %p50 = scmp.eq.s32.totalorder %s14, 0
      %p51 = por %p49, %p50
      %p52 = scmp.ne.s32.totalorder %s40, %s41
      %p53 = scmp.eq.s32.totalorder %s15, 1
      %p54 = por %p52, %p53
      %p56 = scmp.ne.s32.totalorder %s41, %s55
      %p57 = scmp.eq.s32.totalorder %s15, 0
      %p58 = por %p56, %p57
      %p59 = scmp.le.s32.totalorder 1, %s9
      %p60 = scmp.lt.s32.totalorder %s9, 3
      %p61 = pnand %p59, %p60
      %p62 = pneg %p61
      // Predicated region
      $region9: #{tpu_custom_call.1} parent=5 // pred_check
        _
      $region10: #{tpu_custom_call.1} parent=5 // pred_check_branch
        %64 = sbr.rel (%p61) target = $region12
      $region11: #{tpu_custom_call.1} parent=5 // pred_region
        %s65 = ssub.s32 %s9, 1
        // Predicated region
        $region13: #{tpu_custom_call.1} parent=11 // pred_check
          %p66 = pneg %p30
        $region14: #{tpu_custom_call.1} parent=11 // pred_check_branch
          %68 = sbr.rel (%p66) target = $region16
        $region15: #{tpu_custom_call.1} parent=11 // pred_region
          %s70 = ssub.s32 128, 128
          %71 = vsyncadd [#allocation3], %s70
          %s73 = sshll.u32 [#allocation2], 4
          %s74 = int_to_ptr.vmem [resolvable:$true] %s73
          %76 = dma.hbm_to_vmem [thread:$0]  %s0, 128, %s74, [#allocation3]
        $region16: #{tpu_custom_call.1} parent=11 // pred_fallthru
          _
      $region12: #{tpu_custom_call.1} parent=5 // pred_fallthru
        _
      %p77 = scmp.lt.s32.totalorder %s9, 2
      // Predicated region
      $region17: #{tpu_custom_call.1} parent=5 // pred_check
        %p78 = pneg %p77
      $region18: #{tpu_custom_call.1} parent=5 // pred_check_branch
        %80 = sbr.rel (%p78) target = $region20
      $region19: #{tpu_custom_call.1} parent=5 // pred_region
        _
      $region20: #{tpu_custom_call.1} parent=5 // pred_fallthru
        _
      %p81 = scmp.le.s32.totalorder 1, %s9
      %p82 = scmp.lt.s32.totalorder %s9, 3
      %p83 = pnand %p81, %p82
      %p84 = pneg %p83
      // Predicated region
      $region21: #{tpu_custom_call.1} parent=5 // pred_check
        _
      $region22: #{tpu_custom_call.1} parent=5 // pred_check_branch
        %86 = sbr.rel (%p83) target = $region24
      $region23: #{tpu_custom_call.1} parent=5 // pred_region
        %s87 = ssub.s32 %s9, 1
        // Predicated region
        $region25: #{tpu_custom_call.1} parent=23 // pred_check
          %p88 = pneg %p30
        $region26: #{tpu_custom_call.1} parent=23 // pred_check_branch
          %90 = sbr.rel (%p88) target = $region28
        $region27: #{tpu_custom_call.1} parent=23 // pred_region
          %91 = dma.done [#allocation3], 128
        $region28: #{tpu_custom_call.1} parent=23 // pred_fallthru
          _
        %p92 = pneg %p30
        %p93 = pneg %p27
        %p94 = pneg %p51
        %p95 = pneg %p48
        %v96 = vld [vmem:[#allocation2] sm:$0xff]
        %97 = vst [vmem:[#allocation5] sm:$0xff] %v96
        // Predicated region
        $region29: #{tpu_custom_call.1} parent=23 // pred_check
          %p98 = pneg %p48
        $region30: #{tpu_custom_call.1} parent=23 // pred_check_branch
          %100 = sbr.rel (%p98) target = $region32
        $region31: #{tpu_custom_call.1} parent=23 // pred_region
          %s102 = ssub.s32 128, 128
          %103 = vsyncadd [#allocation4], %s102
          %s105 = sshll.u32 [#allocation5], 4
          %s106 = int_to_ptr.vmem [resolvable:$true] %s105
          %108 = dma.vmem_to_hbm [thread:$0]  %s106, 128, %s1, [#allocation4]
        $region32: #{tpu_custom_call.1} parent=23 // pred_fallthru
          _
        // Predicated region
        $region33: #{tpu_custom_call.1} parent=23 // pred_check
          %p109 = pneg %p48
        $region34: #{tpu_custom_call.1} parent=23 // pred_check_branch
          %111 = sbr.rel (%p109) target = $region36
        $region35: #{tpu_custom_call.1} parent=23 // pred_region
          %112 = dma.done [#allocation4], 128
        $region36: #{tpu_custom_call.1} parent=23 // pred_fallthru
          _
      $region24: #{tpu_custom_call.1} parent=5 // pred_fallthru
        _
      %p113 = scmp.le.s32.totalorder 2, %s9
      // Predicated region
      $region37: #{tpu_custom_call.1} parent=5 // pred_check
        %p114 = pneg %p113
      $region38: #{tpu_custom_call.1} parent=5 // pred_check_branch
        %116 = sbr.rel (%p114) target = $region40
      $region39: #{tpu_custom_call.1} parent=5 // pred_region
        %s117 = ssub.s32 %s9, 2
      $region40: #{tpu_custom_call.1} parent=5 // pred_fallthru
        _
    $region6: #{tpu_custom_call.1} parent=1 // loop_footer
      %s13 = sadd.s32 1, %s9
    $region7: #{tpu_custom_call.1} parent=1 // loop_footer_branch
      %8 = sbr.rel target = $region3
    $region8: #{tpu_custom_call.1} parent=1 // loop_exit
      _
    %118 = vsyncpa [#allocation3], 1
    %s119 = scalar_lea.sflag [#allocation3], 1
    %120 = vsyncpa %s119, 1
    %121 = vsyncpa [#allocation4], 1
    %s122 = scalar_lea.sflag [#allocation4], 1
    %123 = vsyncpa %s122, 1

// kernel: decoder_forward.5
$region0: #{decoder_forward.5}
  #allocation0 [shape = 'u32[]', space=smem, size = 0x4, offset = 0x4, fixed_abs, tag = 'smem constant byte address 0x4 - core index']
  #allocation1 [shape = 'u32[144,128]{1,0:T(1,128)}', space=vmem, size = 0x12000, scoped, tag = 'internal scratch']
  %s0 = inlined_call_operand.vmem [shape: f32[2,8,32], index: 0, kind: input, shape index: {}]
  %s1 = inlined_call_operand.vmem [shape: f32[1,32], index: 1, kind: input, shape index: {}]
  %s2 = inlined_call_operand.vmem [shape: f32[1,32], index: 2, kind: input, shape index: {}]
  %s3 = inlined_call_operand.vmem [shape: bf16[32,4], index: 3, kind: input, shape index: {}]
  %s4 = inlined_call_operand.vmem [shape: f32[1,4], index: 4, kind: input, shape index: {}]
  %s5 = inlined_call_operand.vmem [shape: f32[2,8,4], index: 5, kind: output, shape index: {}]
  %s6 = sld [smem:[#allocation0]]
  $region53: #{decoder_forward.5} parent=0
    _
  %s8 = ssub.s32 1, %s6
  %s9 = scalar_select 0, %s8, %s6
  loop: start=0, step=1, limit=4
  $region2: #{decoder_forward.5} parent=0 // loop_pre_header
    _
  $region3: #{decoder_forward.5} parent=0 // loop_header
    %s11 = sphi 0, %s15
    %p12 = scmp.ge.s32.totalorder %s11, 4
    %s21 = sphi 0, %s23
    %s24 = sphi 0, %s21
    %s25 = sphi 0, %s24
    %s41 = sphi 0, %s25
    %s45 = sphi 0, %s45
    %s47 = sphi 0, %s45
    %s48 = sphi 0, %s47
    %s62 = sphi 0, %s48
    %s66 = sphi 0, %s66
    %s68 = sphi 0, %s66
    %s69 = sphi 0, %s68
    %s83 = sphi 0, %s69
    %s87 = sphi 0, %s87
    %s89 = sphi 0, %s87
    %s90 = sphi 0, %s89
    %s104 = sphi 0, %s90
    %s108 = sphi 0, %s108
    %s110 = sphi 0, %s108
    %s111 = sphi 0, %s110
    %s125 = sphi 0, %s111
    %s131 = sphi 0, %s133
    %s134 = sphi 0, %s131
    %s135 = sphi 0, %s134
    %s151 = sphi 0, %s135
  $region4: #{decoder_forward.5} parent=0 // loop_header_branch
    %14 = sbr.rel (%p12) target = $region8
  $region5: #{decoder_forward.5} parent=0 // loop_body
    %s16 = ssub.s32 %s11, 1
    %s17 = ssub.s32 %s11, 2
    %s18 = sadd.s32 %s11, 1
    %s19 = ssub.s32 %s11, %s18
    %p20 = scmp.eq.s32.totalorder %s19, 0
    %s22 = sadd.s32 %s21, 1
    %s23 = scalar_select %p20, %s21, %s22
    %p26 = pneg %p20
    %p27 = scmp.eq.s32.totalorder %s11, 1
    %p28 = por %p26, %p27
    %p29 = scmp.ne.s32.totalorder %s21, %s24
    %p30 = scmp.eq.s32.totalorder %s11, 0
    %p31 = por %p29, %p30
    %p32 = scmp.ne.s32.totalorder %s21, %s24
    %p33 = scmp.eq.s32.totalorder %s16, 1
    %p34 = por %p32, %p33
    %p35 = scmp.ne.s32.totalorder %s24, %s25
    %p36 = scmp.eq.s32.totalorder %s16, 0
    %p37 = por %p35, %p36
    %p38 = scmp.ne.s32.totalorder %s24, %s25
    %p39 = scmp.eq.s32.totalorder %s17, 1
    %p40 = por %p38, %p39
    %p42 = scmp.ne.s32.totalorder %s25, %s41
    %p43 = scmp.eq.s32.totalorder %s17, 0
    %p44 = por %p42, %p43
    %s46 = sadd.s32 %s45, 1
    %p49 = scmp.eq.s32.totalorder %s11, 1
    %p50 = scmp.ne.s32.totalorder %s45, %s47
    %p51 = scmp.eq.s32.totalorder %s11, 0
    %p52 = por %p50, %p51
    %p53 = scmp.ne.s32.totalorder %s45, %s47
    %p54 = scmp.eq.s32.totalorder %s16, 1
    %p55 = por %p53, %p54
    %p56 = scmp.ne.s32.totalorder %s47, %s48
    %p57 = scmp.eq.s32.totalorder %s16, 0
    %p58 = por %p56, %p57
    %p59 = scmp.ne.s32.totalorder %s47, %s48
    %p60 = scmp.eq.s32.totalorder %s17, 1
    %p61 = por %p59, %p60
    %p63 = scmp.ne.s32.totalorder %s48, %s62
    %p64 = scmp.eq.s32.totalorder %s17, 0
    %p65 = por %p63, %p64
    %s67 = sadd.s32 %s66, 1
    %p70 = scmp.eq.s32.totalorder %s11, 1
    %p71 = scmp.ne.s32.totalorder %s66, %s68
    %p72 = scmp.eq.s32.totalorder %s11, 0
    %p73 = por %p71, %p72
    %p74 = scmp.ne.s32.totalorder %s66, %s68
    %p75 = scmp.eq.s32.totalorder %s16, 1
    %p76 = por %p74, %p75
    %p77 = scmp.ne.s32.totalorder %s68, %s69
    %p78 = scmp.eq.s32.totalorder %s16, 0
    %p79 = por %p77, %p78
    %p80 = scmp.ne.s32.totalorder %s68, %s69
    %p81 = scmp.eq.s32.totalorder %s17, 1
    %p82 = por %p80, %p81
    %p84 = scmp.ne.s32.totalorder %s69, %s83
    %p85 = scmp.eq.s32.totalorder %s17, 0
    %p86 = por %p84, %p85
    %s88 = sadd.s32 %s87, 1
    %p91 = scmp.eq.s32.totalorder %s11, 1
    %p92 = scmp.ne.s32.totalorder %s87, %s89
    %p93 = scmp.eq.s32.totalorder %s11, 0
    %p94 = por %p92, %p93
    %p95 = scmp.ne.s32.totalorder %s87, %s89
    %p96 = scmp.eq.s32.totalorder %s16, 1
    %p97 = por %p95, %p96
    %p98 = scmp.ne.s32.totalorder %s89, %s90
    %p99 = scmp.eq.s32.totalorder %s16, 0
    %p100 = por %p98, %p99
    %p101 = scmp.ne.s32.totalorder %s89, %s90
    %p102 = scmp.eq.s32.totalorder %s17, 1
    %p103 = por %p101, %p102
    %p105 = scmp.ne.s32.totalorder %s90, %s104
    %p106 = scmp.eq.s32.totalorder %s17, 0
    %p107 = por %p105, %p106
    %s109 = sadd.s32 %s108, 1
    %p112 = scmp.eq.s32.totalorder %s11, 1
    %p113 = scmp.ne.s32.totalorder %s108, %s110
    %p114 = scmp.eq.s32.totalorder %s11, 0
    %p115 = por %p113, %p114
    %p116 = scmp.ne.s32.totalorder %s108, %s110
    %p117 = scmp.eq.s32.totalorder %s16, 1
    %p118 = por %p116, %p117
    %p119 = scmp.ne.s32.totalorder %s110, %s111
    %p120 = scmp.eq.s32.totalorder %s16, 0
    %p121 = por %p119, %p120
    %p122 = scmp.ne.s32.totalorder %s110, %s111
    %p123 = scmp.eq.s32.totalorder %s17, 1
    %p124 = por %p122, %p123
    %p126 = scmp.ne.s32.totalorder %s111, %s125
    %p127 = scmp.eq.s32.totalorder %s17, 0
    %p128 = por %p126, %p127
    %s129 = ssub.s32 %s11, %s18
    %p130 = scmp.eq.s32.totalorder %s129, 0
    %s132 = sadd.s32 %s131, 1
    %s133 = scalar_select %p130, %s131, %s132
    %p136 = pneg %p130
    %p137 = scmp.eq.s32.totalorder %s11, 1
    %p138 = por %p136, %p137
    %p139 = scmp.ne.s32.totalorder %s131, %s134
    %p140 = scmp.eq.s32.totalorder %s11, 0
    %p141 = por %p139, %p140
    %p142 = scmp.ne.s32.totalorder %s131, %s134
    %p143 = scmp.eq.s32.totalorder %s16, 1
    %p144 = por %p142, %p143
    %p145 = scmp.ne.s32.totalorder %s134, %s135
    %p146 = scmp.eq.s32.totalorder %s16, 0
    %p147 = por %p145, %p146
    %p148 = scmp.ne.s32.totalorder %s134, %s135
    %p149 = scmp.eq.s32.totalorder %s17, 1
    %p150 = por %p148, %p149
    %p152 = scmp.ne.s32.totalorder %s135, %s151
    %p153 = scmp.eq.s32.totalorder %s17, 0
    %p154 = por %p152, %p153
    %p155 = scmp.le.s32.totalorder 1, %s11
    %p156 = scmp.lt.s32.totalorder %s11, 3
    %p157 = pnand %p155, %p156
    %p158 = pneg %p157
    // Predicated region
    $region9: #{decoder_forward.5} parent=5 // pred_check
      _
    $region10: #{decoder_forward.5} parent=5 // pred_check_branch
      %160 = sbr.rel (%p157) target = $region12
    $region11: #{decoder_forward.5} parent=5 // pred_region
      %s161 = ssub.s32 %s11, 1
      // Predicated region
      $region13: #{decoder_forward.5} parent=11 // pred_check
        %p162 = pneg %p58
      $region14: #{decoder_forward.5} parent=11 // pred_check_branch
        %164 = sbr.rel (%p162) target = $region16
      $region15: #{decoder_forward.5} parent=11 // pred_region
        _
      $region16: #{decoder_forward.5} parent=11 // pred_fallthru
        _
      // Predicated region
      $region17: #{decoder_forward.5} parent=11 // pred_check
        %p165 = pneg %p79
      $region18: #{decoder_forward.5} parent=11 // pred_check_branch
        %167 = sbr.rel (%p165) target = $region20
      $region19: #{decoder_forward.5} parent=11 // pred_region
        _
      $region20: #{decoder_forward.5} parent=11 // pred_fallthru
        _
      // Predicated region
      $region21: #{decoder_forward.5} parent=11 // pred_check
        %p168 = pneg %p100
      $region22: #{decoder_forward.5} parent=11 // pred_check_branch
        %170 = sbr.rel (%p168) target = $region24
      $region23: #{decoder_forward.5} parent=11 // pred_region
        _
      $region24: #{decoder_forward.5} parent=11 // pred_fallthru
        _
      // Predicated region
      $region25: #{decoder_forward.5} parent=11 // pred_check
        %p171 = pneg %p121
      $region26: #{decoder_forward.5} parent=11 // pred_check_branch
        %173 = sbr.rel (%p171) target = $region28
      $region27: #{decoder_forward.5} parent=11 // pred_region
        _
      $region28: #{decoder_forward.5} parent=11 // pred_fallthru
        _
    $region12: #{decoder_forward.5} parent=5 // pred_fallthru
      _
    %p174 = scmp.lt.s32.totalorder %s11, 2
    // Predicated region
    $region29: #{decoder_forward.5} parent=5 // pred_check
      %p175 = pneg %p174
    $region30: #{decoder_forward.5} parent=5 // pred_check_branch
      %177 = sbr.rel (%p175) target = $region32
    $region31: #{decoder_forward.5} parent=5 // pred_region
      // Predicated region
      $region33: #{decoder_forward.5} parent=31 // pred_check
        %p178 = pneg %p31
      $region34: #{decoder_forward.5} parent=31 // pred_check_branch
        %180 = sbr.rel (%p178) target = $region36
      $region35: #{decoder_forward.5} parent=31 // pred_region
        %p181 = scmp.lt.s32.totalorder %s11, 1
        %s182 = scalar_select %p181, %s11, 1
        %s183 = smul.addr %s182, 8
        %s184 = scalar_lea.vmem %s0, %s183
      $region36: #{decoder_forward.5} parent=31 // pred_fallthru
        _
    $region32: #{decoder_forward.5} parent=5 // pred_fallthru
      _
    %p185 = scmp.le.s32.totalorder 1, %s11
    %p186 = scmp.lt.s32.totalorder %s11, 3
    %p187 = pnand %p185, %p186
    %p188 = pneg %p187
    // Predicated region
    $region37: #{decoder_forward.5} parent=5 // pred_check
      _
    $region38: #{decoder_forward.5} parent=5 // pred_check_branch
      %190 = sbr.rel (%p187) target = $region40
    $region39: #{decoder_forward.5} parent=5 // pred_region
      %s191 = ssub.s32 %s11, 1
      %p192 = scmp.lt.s32.totalorder %s16, 1
      %s193 = scalar_select %p192, %s16, 1
      %s194 = smul.addr %s193, 8
      %s195 = scalar_lea.vmem %s0, %s194
      %p196 = pneg %p37
      %p197 = pneg %p34
      %p198 = pneg %p58
      %p199 = pneg %p55
      %p200 = pneg %p79
      %p201 = pneg %p76
      %p202 = pneg %p100
      %p203 = pneg %p97
      %p204 = pneg %p121
      %p205 = pneg %p118
      %p206 = pneg %p147
      %p207 = pneg %p144
      %p208 = scmp.lt.s32.totalorder %s16, 1
      %s209 = scalar_select %p208, %s16, 1
      %s210 = smul.addr %s209, 8
      %s211 = scalar_lea.vmem %s5, %s210
      %p212 = scmp.lt.s32.totalorder %s16, 1
      %s213 = scalar_select %p212, %s16, 1
      %s214 = smul.addr %s213, 8
      %s215 = scalar_lea.vmem %s0, %s214
      %p216 = scmp.lt.s32.totalorder %s16, 1
      %s217 = scalar_select %p216, %s16, 1
      %s218 = smul.addr %s217, 8
      %s219 = scalar_lea.vmem %s5, %s218
      %v221 = vld [vmem:[%s215] sm:$0xff]
      %vm222 = vcmask 261120
      %v223 = vsel %vm222, %v221, 0.0
      %224 = vadd.xlane.f32.xlu0 %v223
      %v225 = vpop.xlane.xlu0 %224
      %v226 = vrcp.pop 32.0
      %v227 = vmul.f32 %v225, %v226
      %v228 = vsub.f32 %v221, %v227
      %v229 = vmul.f32 %v228, %v228
      %v230 = vsel %vm222, %v229, 0.0
      %231 = vadd.xlane.f32.xlu0 %v230
      %v232 = vpop.xlane.xlu0 %231
      %v233 = vmul.f32 %v232, %v226
      %v234 = vadd.f32 %v233, 1e-05
      %v235 = vrsqrt.pop %v234
      %v236 = vmul.f32 %v228, %v235
      %v237 = vld [vmem:[%s1] sm:$0x1]
      %v239 = vlaneseq
      %v240 = vshrl.u32 %v239, 7
      %v241 = vsub.s32 0, %v240
      %v242 = vrot.slane %v237, %v241
      %v244 = vmul.f32 %v236, %v242
      %v245 = vld [vmem:[%s2] sm:$0x1]
      %v247 = vlaneseq
      %v248 = vshrl.u32 %v247, 7
      %v249 = vsub.s32 0, %v248
      %v250 = vrot.slane %v245, %v249
      %v252 = vadd.f32 %v244, %v250
      %v253 = vpack.c.bf16 %v252, %v252
      %v254 = vld [vmem:[%s3] sm:$0xf]
      %v255 = vld [vmem:[%s3 + $0x4] sm:$0xf]
      %v256 = vld [vmem:[%s3 + $0x8] sm:$0xf]
      %v257 = vld [vmem:[%s3 + $0xc] sm:$0xf]
      %v262 = vunpack.c.l.b16 %v254
      %v263 = vunpack.c.l.b16 %v255
      %v264 = vunpack.c.l.b16 %v256
      %v265 = vunpack.c.l.b16 %v257
      %v266 = vpack.c.b16 %v263, %v262
      %v267 = vpack.c.b16 %v265, %v264
      %v271 = vsel %vm222, %v253, 0
      %273 = vmatprep.subr.bf16.mxu0 0
      %274 = vmatpush1.bf16.msra.mxu0 %v266
      %275 = vmatprep.subr.bf16.mxu0 0
      %276 = vmatpush1.bf16.msra.mxu0 %v267
      %277 = vmatprep.subr.bf16.mxu0 0
      %278 = vmatpush1.bf16.msra.mxu0 0
      %279 = vmatprep.subr.bf16.mxu0 0
      %280 = vmatpush1.bf16.msra.mxu0 0
      %281 = vmatprep.subr.bf16.mxu0 0
      %282 = vmatpush1.bf16.msra.mxu0 0
      %283 = vmatprep.subr.bf16.mxu0 0
      %284 = vmatpush1.bf16.msra.mxu0 0
      %285 = vmatprep.subr.bf16.mxu0 0
      %286 = vmatpush1.bf16.msra.mxu0 0
      %287 = vmatprep.subr.bf16.mxu0 0
      %288 = vmatpush1.bf16.msra.mxu0 0
      %289 = vmatprep.subr.bf16.mxu0 0
      %290 = vmatpush1.bf16.msra.mxu0 0
      %291 = vmatprep.subr.bf16.mxu0 0
      %292 = vmatpush1.bf16.msra.mxu0 0
      %293 = vmatprep.subr.bf16.mxu0 0
      %294 = vmatpush1.bf16.msra.mxu0 0
      %295 = vmatprep.subr.bf16.mxu0 0
      %296 = vmatpush1.bf16.msra.mxu0 0
      %297 = vmatprep.subr.bf16.mxu0 0
      %298 = vmatpush1.bf16.msra.mxu0 0
      %299 = vmatprep.subr.bf16.mxu0 0
      %300 = vmatpush1.bf16.msra.mxu0 0
      %301 = vmatprep.subr.bf16.mxu0 0
      %302 = vmatpush1.bf16.msra.mxu0 0
      %303 = vmatprep.subr.bf16.mxu0 0
      %304 = vmatpush1.bf16.msra.mxu0 0
      %305 = vmatprep.mubr.bf16.mxu0 0
      %306 = vmatmul.mubr.bf16.gmra.mrb[0].mxu0 %v271
      %v307 = vpop.f32.mrb[0].mxu0
      %v308 = vadd.f32 0.0, %v307
      %v309 = vpop.f32.mrb[0].mxu0
      %v310 = vpop.f32.mrb[0].mxu0
      %v311 = vpop.f32.mrb[0].mxu0
      %312 = vdwg.mxu0
      %vm313 = vcmask 31744
      %v314 = vsel %vm313, %v308, 0.0
      %v315 = vrot.slane %v314, 4
      %v316 = vadd.f32 %v314, %v315
      %v317 = vrot.slane %v316, 2
      %v318 = vadd.f32 %v316, %v317
      %v319 = vrot.slane %v318, 1
      %v320 = vadd.f32 %v318, %v319
      %v321 = vrcp.pop 8.0
      %v322 = vmul.f32 %v320, %v321
      %v323 = vsub.f32 %v308, %v322
      %v324 = vld [vmem:[%s4] sm:$0x1]
      %v326 = vlaneseq
      %v327 = vshrl.u32 %v326, 7
      %v328 = vsub.s32 0, %v327
      %v329 = vrot.slane %v324, %v328
      %v331 = vadd.f32 %v323, %v329
      %332 = vst.msk [vmem:[%s219] sm:$0xff] %vm313, %v331
      %p333 = scmp.lt.s32.totalorder %s16, 1
      %s334 = scalar_select %p333, %s16, 1
      %s335 = smul.addr %s334, 8
      %s336 = scalar_lea.vmem %s5, %s335
      // Predicated region
      $region41: #{decoder_forward.5} parent=39 // pred_check
        %p337 = pneg %p144
      $region42: #{decoder_forward.5} parent=39 // pred_check_branch
        %339 = sbr.rel (%p337) target = $region44
      $region43: #{decoder_forward.5} parent=39 // pred_region
        _
      $region44: #{decoder_forward.5} parent=39 // pred_fallthru
        _
    $region40: #{decoder_forward.5} parent=5 // pred_fallthru
      _
    %p340 = scmp.le.s32.totalorder 2, %s11
    // Predicated region
    $region45: #{decoder_forward.5} parent=5 // pred_check
      %p341 = pneg %p340
    $region46: #{decoder_forward.5} parent=5 // pred_check_branch
      %343 = sbr.rel (%p341) target = $region48
    $region47: #{decoder_forward.5} parent=5 // pred_region
      %s344 = ssub.s32 %s11, 2
      // Predicated region
      $region49: #{decoder_forward.5} parent=47 // pred_check
        %p345 = pneg %p150
      $region50: #{decoder_forward.5} parent=47 // pred_check_branch
        %347 = sbr.rel (%p345) target = $region52
      $region51: #{decoder_forward.5} parent=47 // pred_region
        %p348 = scmp.lt.s32.totalorder %s17, 1
        %s349 = scalar_select %p348, %s17, 1
        %s350 = smul.addr %s349, 8
        %s351 = scalar_lea.vmem %s5, %s350
      $region52: #{decoder_forward.5} parent=47 // pred_fallthru
        _
    $region48: #{decoder_forward.5} parent=5 // pred_fallthru
      _
  $region6: #{decoder_forward.5} parent=0 // loop_footer
    %s15 = sadd.s32 1, %s11
  $region7: #{decoder_forward.5} parent=0 // loop_footer_branch
    %10 = sbr.rel target = $region3
  $region8: #{decoder_forward.5} parent=0 // loop_exit
    _

// kernel: decoder_forward.3
$region0: #{decoder_forward.3}
  #allocation0 [shape = 'u32[]', space=smem, size = 0x4, offset = 0x4, fixed_abs, tag = 'smem constant byte address 0x4 - core index']
  #allocation1 [shape = 'u32[144,128]{1,0:T(1,128)}', space=vmem, size = 0x12000, scoped, tag = 'internal scratch']
  %s0 = inlined_call_operand.vmem [shape: f32[2,8,32], index: 0, kind: input, shape index: {}]
  %s1 = inlined_call_operand.vmem [shape: f32[2,16,32], index: 1, kind: input, shape index: {}]
  %s2 = inlined_call_operand.vmem [shape: f32[2,8,4], index: 2, kind: input, shape index: {}, may-alias: {2,17}]
  %s3 = inlined_call_operand.vmem [shape: bf16[32,96], index: 3, kind: input, shape index: {}]
  %s4 = inlined_call_operand.vmem [shape: f32[1,96], index: 4, kind: input, shape index: {}]
  %s5 = inlined_call_operand.vmem [shape: bf16[32,32], index: 5, kind: input, shape index: {}]
  %s6 = inlined_call_operand.vmem [shape: f32[1,32], index: 6, kind: input, shape index: {}]
  %s7 = inlined_call_operand.vmem [shape: bf16[32,32], index: 7, kind: input, shape index: {}]
  %s8 = inlined_call_operand.vmem [shape: f32[1,32], index: 8, kind: input, shape index: {}]
  %s9 = inlined_call_operand.vmem [shape: bf16[32,64], index: 9, kind: input, shape index: {}]
  %s10 = inlined_call_operand.vmem [shape: f32[1,64], index: 10, kind: input, shape index: {}]
  %s11 = inlined_call_operand.vmem [shape: bf16[32,32], index: 11, kind: input, shape index: {}]
  %s12 = inlined_call_operand.vmem [shape: f32[1,32], index: 12, kind: input, shape index: {}]
  %s13 = inlined_call_operand.vmem [shape: bf16[32,64], index: 13, kind: input, shape index: {}]
  %s14 = inlined_call_operand.vmem [shape: bf16[64,32], index: 14, kind: input, shape index: {}]
  %s15 = inlined_call_operand.vmem [shape: bf16[96,4], index: 15, kind: input, shape index: {}]
  %s16 = inlined_call_operand.vmem [shape: f32[2,8,32], index: 16, kind: output, shape index: {0}]
  %s17 = inlined_call_operand.vmem [shape: f32[2,8,4], index: 17, kind: output, shape index: {1}, may-alias: {2,17}]
  %18 = xla_tuple %s16, %s17
  %s19 = sld [smem:[#allocation0]]
  $region105: #{decoder_forward.3} parent=0
    _
  %s21 = ssub.s32 1, %s19
  %s22 = scalar_select 0, %s21, %s19
  loop: start=0, step=1, limit=4
  $region2: #{decoder_forward.3} parent=0 // loop_pre_header
    _
  $region3: #{decoder_forward.3} parent=0 // loop_header
    %s24 = sphi 0, %s28
    %p25 = scmp.ge.s32.totalorder %s24, 4
    %s34 = sphi 0, %s36
    %s37 = sphi 0, %s34
    %s38 = sphi 0, %s37
    %s54 = sphi 0, %s38
    %s60 = sphi 0, %s62
    %s63 = sphi 0, %s60
    %s64 = sphi 0, %s63
    %s80 = sphi 0, %s64
    %s86 = sphi 0, %s88
    %s89 = sphi 0, %s86
    %s90 = sphi 0, %s89
    %s106 = sphi 0, %s90
    %s110 = sphi 0, %s110
    %s112 = sphi 0, %s110
    %s113 = sphi 0, %s112
    %s127 = sphi 0, %s113
    %s131 = sphi 0, %s131
    %s133 = sphi 0, %s131
    %s134 = sphi 0, %s133
    %s148 = sphi 0, %s134
    %s152 = sphi 0, %s152
    %s154 = sphi 0, %s152
    %s155 = sphi 0, %s154
    %s169 = sphi 0, %s155
    %s173 = sphi 0, %s173
    %s175 = sphi 0, %s173
    %s176 = sphi 0, %s175
    %s190 = sphi 0, %s176
    %s194 = sphi 0, %s194
    %s196 = sphi 0, %s194
    %s197 = sphi 0, %s196
    %s211 = sphi 0, %s197
    %s215 = sphi 0, %s215
    %s217 = sphi 0, %s215
    %s218 = sphi 0, %s217
    %s232 = sphi 0, %s218
    %s236 = sphi 0, %s236
    %s238 = sphi 0, %s236
    %s239 = sphi 0, %s238
    %s253 = sphi 0, %s239
    %s257 = sphi 0, %s257
    %s259 = sphi 0, %s257
    %s260 = sphi 0, %s259
    %s274 = sphi 0, %s260
    %s278 = sphi 0, %s278
    %s280 = sphi 0, %s278
    %s281 = sphi 0, %s280
    %s295 = sphi 0, %s281
    %s299 = sphi 0, %s299
    %s301 = sphi 0, %s299
    %s302 = sphi 0, %s301
    %s316 = sphi 0, %s302
    %s320 = sphi 0, %s320
    %s322 = sphi 0, %s320
    %s323 = sphi 0, %s322
    %s337 = sphi 0, %s323
    %s341 = sphi 0, %s341
    %s343 = sphi 0, %s341
    %s344 = sphi 0, %s343
    %s358 = sphi 0, %s344
    %s362 = sphi 0, %s362
    %s364 = sphi 0, %s362
    %s365 = sphi 0, %s364
    %s379 = sphi 0, %s365
    %s385 = sphi 0, %s387
    %s388 = sphi 0, %s385
    %s389 = sphi 0, %s388
    %s405 = sphi 0, %s389
    %s411 = sphi 0, %s413
    %s414 = sphi 0, %s411
    %s415 = sphi 0, %s414
    %s431 = sphi 0, %s415
  $region4: #{decoder_forward.3} parent=0 // loop_header_branch
    %27 = sbr.rel (%p25) target = $region8
  $region5: #{decoder_forward.3} parent=0 // loop_body
    %s29 = ssub.s32 %s24, 1
    %s30 = ssub.s32 %s24, 2
    %s31 = sadd.s32 %s24, 1
    %s32 = ssub.s32 %s24, %s31
    %p33 = scmp.eq.s32.totalorder %s32, 0
    %s35 = sadd.s32 %s34, 1
    %s36 = scalar_select %p33, %s34, %s35
    %p39 = pneg %p33
    %p40 = scmp.eq.s32.totalorder %s24, 1
    %p41 = por %p39, %p40
    %p42 = scmp.ne.s32.totalorder %s34, %s37
    %p43 = scmp.eq.s32.totalorder %s24, 0
    %p44 = por %p42, %p43
    %p45 = scmp.ne.s32.totalorder %s34, %s37
    %p46 = scmp.eq.s32.totalorder %s29, 1
    %p47 = por %p45, %p46
    %p48 = scmp.ne.s32.totalorder %s37, %s38
    %p49 = scmp.eq.s32.totalorder %s29, 0
    %p50 = por %p48, %p49
    %p51 = scmp.ne.s32.totalorder %s37, %s38
    %p52 = scmp.eq.s32.totalorder %s30, 1
    %p53 = por %p51, %p52
    %p55 = scmp.ne.s32.totalorder %s38, %s54
    %p56 = scmp.eq.s32.totalorder %s30, 0
    %p57 = por %p55, %p56
    %s58 = ssub.s32 %s24, %s31
    %p59 = scmp.eq.s32.totalorder %s58, 0
    %s61 = sadd.s32 %s60, 1
    %s62 = scalar_select %p59, %s60, %s61
    %p65 = pneg %p59
    %p66 = scmp.eq.s32.totalorder %s24, 1
    %p67 = por %p65, %p66
    %p68 = scmp.ne.s32.totalorder %s60, %s63
    %p69 = scmp.eq.s32.totalorder %s24, 0
    %p70 = por %p68, %p69
    %p71 = scmp.ne.s32.totalorder %s60, %s63
    %p72 = scmp.eq.s32.totalorder %s29, 1
    %p73 = por %p71, %p72
    %p74 = scmp.ne.s32.totalorder %s63, %s64
    %p75 = scmp.eq.s32.totalorder %s29, 0
    %p76 = por %p74, %p75
    %p77 = scmp.ne.s32.totalorder %s63, %s64
    %p78 = scmp.eq.s32.totalorder %s30, 1
    %p79 = por %p77, %p78
    %p81 = scmp.ne.s32.totalorder %s64, %s80
    %p82 = scmp.eq.s32.totalorder %s30, 0
    %p83 = por %p81, %p82
    %s84 = ssub.s32 %s24, %s31
    %p85 = scmp.eq.s32.totalorder %s84, 0
    %s87 = sadd.s32 %s86, 1
    %s88 = scalar_select %p85, %s86, %s87
    %p91 = pneg %p85
    %p92 = scmp.eq.s32.totalorder %s24, 1
    %p93 = por %p91, %p92
    %p94 = scmp.ne.s32.totalorder %s86, %s89
    %p95 = scmp.eq.s32.totalorder %s24, 0
    %p96 = por %p94, %p95
    %p97 = scmp.ne.s32.totalorder %s86, %s89
    %p98 = scmp.eq.s32.totalorder %s29, 1
    %p99 = por %p97, %p98
    %p100 = scmp.ne.s32.totalorder %s89, %s90
    %p101 = scmp.eq.s32.totalorder %s29, 0
    %p102 = por %p100, %p101
    %p103 = scmp.ne.s32.totalorder %s89, %s90
    %p104 = scmp.eq.s32.totalorder %s30, 1
    %p105 = por %p103, %p104
    %p107 = scmp.ne.s32.totalorder %s90, %s106
    %p108 = scmp.eq.s32.totalorder %s30, 0
    %p109 = por %p107, %p108
    %s111 = sadd.s32 %s110, 1
    %p114 = scmp.eq.s32.totalorder %s24, 1
    %p115 = scmp.ne.s32.totalorder %s110, %s112
    %p116 = scmp.eq.s32.totalorder %s24, 0
    %p117 = por %p115, %p116
    %p118 = scmp.ne.s32.totalorder %s110, %s112
    %p119 = scmp.eq.s32.totalorder %s29, 1
    %p120 = por %p118, %p119
    %p121 = scmp.ne.s32.totalorder %s112, %s113
    %p122 = scmp.eq.s32.totalorder %s29, 0
    %p123 = por %p121, %p122
    %p124 = scmp.ne.s32.totalorder %s112, %s113
    %p125 = scmp.eq.s32.totalorder %s30, 1
    %p126 = por %p124, %p125
    %p128 = scmp.ne.s32.totalorder %s113, %s127
    %p129 = scmp.eq.s32.totalorder %s30, 0
    %p130 = por %p128, %p129
    %s132 = sadd.s32 %s131, 1
    %p135 = scmp.eq.s32.totalorder %s24, 1
    %p136 = scmp.ne.s32.totalorder %s131, %s133
    %p137 = scmp.eq.s32.totalorder %s24, 0
    %p138 = por %p136, %p137
    %p139 = scmp.ne.s32.totalorder %s131, %s133
    %p140 = scmp.eq.s32.totalorder %s29, 1
    %p141 = por %p139, %p140
    %p142 = scmp.ne.s32.totalorder %s133, %s134
    %p143 = scmp.eq.s32.totalorder %s29, 0
    %p144 = por %p142, %p143
    %p145 = scmp.ne.s32.totalorder %s133, %s134
    %p146 = scmp.eq.s32.totalorder %s30, 1
    %p147 = por %p145, %p146
    %p149 = scmp.ne.s32.totalorder %s134, %s148
    %p150 = scmp.eq.s32.totalorder %s30, 0
    %p151 = por %p149, %p150
    %s153 = sadd.s32 %s152, 1
    %p156 = scmp.eq.s32.totalorder %s24, 1
    %p157 = scmp.ne.s32.totalorder %s152, %s154
    %p158 = scmp.eq.s32.totalorder %s24, 0
    %p159 = por %p157, %p158
    %p160 = scmp.ne.s32.totalorder %s152, %s154
    %p161 = scmp.eq.s32.totalorder %s29, 1
    %p162 = por %p160, %p161
    %p163 = scmp.ne.s32.totalorder %s154, %s155
    %p164 = scmp.eq.s32.totalorder %s29, 0
    %p165 = por %p163, %p164
    %p166 = scmp.ne.s32.totalorder %s154, %s155
    %p167 = scmp.eq.s32.totalorder %s30, 1
    %p168 = por %p166, %p167
    %p170 = scmp.ne.s32.totalorder %s155, %s169
    %p171 = scmp.eq.s32.totalorder %s30, 0
    %p172 = por %p170, %p171
    %s174 = sadd.s32 %s173, 1
    %p177 = scmp.eq.s32.totalorder %s24, 1
    %p178 = scmp.ne.s32.totalorder %s173, %s175
    %p179 = scmp.eq.s32.totalorder %s24, 0
    %p180 = por %p178, %p179
    %p181 = scmp.ne.s32.totalorder %s173, %s175
    %p182 = scmp.eq.s32.totalorder %s29, 1
    %p183 = por %p181, %p182
    %p184 = scmp.ne.s32.totalorder %s175, %s176
    %p185 = scmp.eq.s32.totalorder %s29, 0
    %p186 = por %p184, %p185
    %p187 = scmp.ne.s32.totalorder %s175, %s176
    %p188 = scmp.eq.s32.totalorder %s30, 1
    %p189 = por %p187, %p188
    %p191 = scmp.ne.s32.totalorder %s176, %s190
    %p192 = scmp.eq.s32.totalorder %s30, 0
    %p193 = por %p191, %p192
    %s195 = sadd.s32 %s194, 1
    %p198 = scmp.eq.s32.totalorder %s24, 1
    %p199 = scmp.ne.s32.totalorder %s194, %s196
    %p200 = scmp.eq.s32.totalorder %s24, 0
    %p201 = por %p199, %p200
    %p202 = scmp.ne.s32.totalorder %s194, %s196
    %p203 = scmp.eq.s32.totalorder %s29, 1
    %p204 = por %p202, %p203
    %p205 = scmp.ne.s32.totalorder %s196, %s197
    %p206 = scmp.eq.s32.totalorder %s29, 0
    %p207 = por %p205, %p206
    %p208 = scmp.ne.s32.totalorder %s196, %s197
    %p209 = scmp.eq.s32.totalorder %s30, 1
    %p210 = por %p208, %p209
    %p212 = scmp.ne.s32.totalorder %s197, %s211
    %p213 = scmp.eq.s32.totalorder %s30, 0
    %p214 = por %p212, %p213
    %s216 = sadd.s32 %s215, 1
    %p219 = scmp.eq.s32.totalorder %s24, 1
    %p220 = scmp.ne.s32.totalorder %s215, %s217
    %p221 = scmp.eq.s32.totalorder %s24, 0
    %p222 = por %p220, %p221
    %p223 = scmp.ne.s32.totalorder %s215, %s217
    %p224 = scmp.eq.s32.totalorder %s29, 1
    %p225 = por %p223, %p224
    %p226 = scmp.ne.s32.totalorder %s217, %s218
    %p227 = scmp.eq.s32.totalorder %s29, 0
    %p228 = por %p226, %p227
    %p229 = scmp.ne.s32.totalorder %s217, %s218
    %p230 = scmp.eq.s32.totalorder %s30, 1
    %p231 = por %p229, %p230
    %p233 = scmp.ne.s32.totalorder %s218, %s232
    %p234 = scmp.eq.s32.totalorder %s30, 0
    %p235 = por %p233, %p234
    %s237 = sadd.s32 %s236, 1
    %p240 = scmp.eq.s32.totalorder %s24, 1
    %p241 = scmp.ne.s32.totalorder %s236, %s238
    %p242 = scmp.eq.s32.totalorder %s24, 0
    %p243 = por %p241, %p242
    %p244 = scmp.ne.s32.totalorder %s236, %s238
    %p245 = scmp.eq.s32.totalorder %s29, 1
    %p246 = por %p244, %p245
    %p247 = scmp.ne.s32.totalorder %s238, %s239
    %p248 = scmp.eq.s32.totalorder %s29, 0
    %p249 = por %p247, %p248
    %p250 = scmp.ne.s32.totalorder %s238, %s239
    %p251 = scmp.eq.s32.totalorder %s30, 1
    %p252 = por %p250, %p251
    %p254 = scmp.ne.s32.totalorder %s239, %s253
    %p255 = scmp.eq.s32.totalorder %s30, 0
    %p256 = por %p254, %p255
    %s258 = sadd.s32 %s257, 1
    %p261 = scmp.eq.s32.totalorder %s24, 1
    %p262 = scmp.ne.s32.totalorder %s257, %s259
    %p263 = scmp.eq.s32.totalorder %s24, 0
    %p264 = por %p262, %p263
    %p265 = scmp.ne.s32.totalorder %s257, %s259
    %p266 = scmp.eq.s32.totalorder %s29, 1
    %p267 = por %p265, %p266
    %p268 = scmp.ne.s32.totalorder %s259, %s260
    %p269 = scmp.eq.s32.totalorder %s29, 0
    %p270 = por %p268, %p269
    %p271 = scmp.ne.s32.totalorder %s259, %s260
    %p272 = scmp.eq.s32.totalorder %s30, 1
    %p273 = por %p271, %p272
    %p275 = scmp.ne.s32.totalorder %s260, %s274
    %p276 = scmp.eq.s32.totalorder %s30, 0
    %p277 = por %p275, %p276
    %s279 = sadd.s32 %s278, 1
    %p282 = scmp.eq.s32.totalorder %s24, 1
    %p283 = scmp.ne.s32.totalorder %s278, %s280
    %p284 = scmp.eq.s32.totalorder %s24, 0
    %p285 = por %p283, %p284
    %p286 = scmp.ne.s32.totalorder %s278, %s280
    %p287 = scmp.eq.s32.totalorder %s29, 1
    %p288 = por %p286, %p287
    %p289 = scmp.ne.s32.totalorder %s280, %s281
    %p290 = scmp.eq.s32.totalorder %s29, 0
    %p291 = por %p289, %p290
    %p292 = scmp.ne.s32.totalorder %s280, %s281
    %p293 = scmp.eq.s32.totalorder %s30, 1
    %p294 = por %p292, %p293
    %p296 = scmp.ne.s32.totalorder %s281, %s295
    %p297 = scmp.eq.s32.totalorder %s30, 0
    %p298 = por %p296, %p297
    %s300 = sadd.s32 %s299, 1
    %p303 = scmp.eq.s32.totalorder %s24, 1
    %p304 = scmp.ne.s32.totalorder %s299, %s301
    %p305 = scmp.eq.s32.totalorder %s24, 0
    %p306 = por %p304, %p305
    %p307 = scmp.ne.s32.totalorder %s299, %s301
    %p308 = scmp.eq.s32.totalorder %s29, 1
    %p309 = por %p307, %p308
    %p310 = scmp.ne.s32.totalorder %s301, %s302
    %p311 = scmp.eq.s32.totalorder %s29, 0
    %p312 = por %p310, %p311
    %p313 = scmp.ne.s32.totalorder %s301, %s302
    %p314 = scmp.eq.s32.totalorder %s30, 1
    %p315 = por %p313, %p314
    %p317 = scmp.ne.s32.totalorder %s302, %s316
    %p318 = scmp.eq.s32.totalorder %s30, 0
    %p319 = por %p317, %p318
    %s321 = sadd.s32 %s320, 1
    %p324 = scmp.eq.s32.totalorder %s24, 1
    %p325 = scmp.ne.s32.totalorder %s320, %s322
    %p326 = scmp.eq.s32.totalorder %s24, 0
    %p327 = por %p325, %p326
    %p328 = scmp.ne.s32.totalorder %s320, %s322
    %p329 = scmp.eq.s32.totalorder %s29, 1
    %p330 = por %p328, %p329
    %p331 = scmp.ne.s32.totalorder %s322, %s323
    %p332 = scmp.eq.s32.totalorder %s29, 0
    %p333 = por %p331, %p332
    %p334 = scmp.ne.s32.totalorder %s322, %s323
    %p335 = scmp.eq.s32.totalorder %s30, 1
    %p336 = por %p334, %p335
    %p338 = scmp.ne.s32.totalorder %s323, %s337
    %p339 = scmp.eq.s32.totalorder %s30, 0
    %p340 = por %p338, %p339
    %s342 = sadd.s32 %s341, 1
    %p345 = scmp.eq.s32.totalorder %s24, 1
    %p346 = scmp.ne.s32.totalorder %s341, %s343
    %p347 = scmp.eq.s32.totalorder %s24, 0
    %p348 = por %p346, %p347
    %p349 = scmp.ne.s32.totalorder %s341, %s343
    %p350 = scmp.eq.s32.totalorder %s29, 1
    %p351 = por %p349, %p350
    %p352 = scmp.ne.s32.totalorder %s343, %s344
    %p353 = scmp.eq.s32.totalorder %s29, 0
    %p354 = por %p352, %p353
    %p355 = scmp.ne.s32.totalorder %s343, %s344
    %p356 = scmp.eq.s32.totalorder %s30, 1
    %p357 = por %p355, %p356
    %p359 = scmp.ne.s32.totalorder %s344, %s358
    %p360 = scmp.eq.s32.totalorder %s30, 0
    %p361 = por %p359, %p360
    %s363 = sadd.s32 %s362, 1
    %p366 = scmp.eq.s32.totalorder %s24, 1
    %p367 = scmp.ne.s32.totalorder %s362, %s364
    %p368 = scmp.eq.s32.totalorder %s24, 0
    %p369 = por %p367, %p368
    %p370 = scmp.ne.s32.totalorder %s362, %s364
    %p371 = scmp.eq.s32.totalorder %s29, 1
    %p372 = por %p370, %p371
    %p373 = scmp.ne.s32.totalorder %s364, %s365
    %p374 = scmp.eq.s32.totalorder %s29, 0
    %p375 = por %p373, %p374
    %p376 = scmp.ne.s32.totalorder %s364, %s365
    %p377 = scmp.eq.s32.totalorder %s30, 1
    %p378 = por %p376, %p377
    %p380 = scmp.ne.s32.totalorder %s365, %s379
    %p381 = scmp.eq.s32.totalorder %s30, 0
    %p382 = por %p380, %p381
    %s383 = ssub.s32 %s24, %s31
    %p384 = scmp.eq.s32.totalorder %s383, 0
    %s386 = sadd.s32 %s385, 1
    %s387 = scalar_select %p384, %s385, %s386
    %p390 = pneg %p384
    %p391 = scmp.eq.s32.totalorder %s24, 1
    %p392 = por %p390, %p391
    %p393 = scmp.ne.s32.totalorder %s385, %s388
    %p394 = scmp.eq.s32.totalorder %s24, 0
    %p395 = por %p393, %p394
    %p396 = scmp.ne.s32.totalorder %s385, %s388
    %p397 = scmp.eq.s32.totalorder %s29, 1
    %p398 = por %p396, %p397
    %p399 = scmp.ne.s32.totalorder %s388, %s389
    %p400 = scmp.eq.s32.totalorder %s29, 0
    %p401 = por %p399, %p400
    %p402 = scmp.ne.s32.totalorder %s388, %s389
    %p403 = scmp.eq.s32.totalorder %s30, 1
    %p404 = por %p402, %p403
    %p406 = scmp.ne.s32.totalorder %s389, %s405
    %p407 = scmp.eq.s32.totalorder %s30, 0
    %p408 = por %p406, %p407
    %s409 = ssub.s32 %s24, %s31
    %p410 = scmp.eq.s32.totalorder %s409, 0
    %s412 = sadd.s32 %s411, 1
    %s413 = scalar_select %p410, %s411, %s412
    %p416 = pneg %p410
    %p417 = scmp.eq.s32.totalorder %s24, 1
    %p418 = por %p416, %p417
    %p419 = scmp.ne.s32.totalorder %s411, %s414
    %p420 = scmp.eq.s32.totalorder %s24, 0
    %p421 = por %p419, %p420
    %p422 = scmp.ne.s32.totalorder %s411, %s414
    %p423 = scmp.eq.s32.totalorder %s29, 1
    %p424 = por %p422, %p423
    %p425 = scmp.ne.s32.totalorder %s414, %s415
    %p426 = scmp.eq.s32.totalorder %s29, 0
    %p427 = por %p425, %p426
    %p428 = scmp.ne.s32.totalorder %s414, %s415
    %p429 = scmp.eq.s32.totalorder %s30, 1
    %p430 = por %p428, %p429
    %p432 = scmp.ne.s32.totalorder %s415, %s431
    %p433 = scmp.eq.s32.totalorder %s30, 0
    %p434 = por %p432, %p433
    %p435 = scmp.le.s32.totalorder 1, %s24
    %p436 = scmp.lt.s32.totalorder %s24, 3
    %p437 = pnand %p435, %p436
    %p438 = pneg %p437
    // Predicated region
    $region9: #{decoder_forward.3} parent=5 // pred_check
      _
    $region10: #{decoder_forward.3} parent=5 // pred_check_branch
      %440 = sbr.rel (%p437) target = $region12
    $region11: #{decoder_forward.3} parent=5 // pred_region
      %s441 = ssub.s32 %s24, 1
      // Predicated region
      $region13: #{decoder_forward.3} parent=11 // pred_check
        %p442 = pneg %p123
      $region14: #{decoder_forward.3} parent=11 // pred_check_branch
        %444 = sbr.rel (%p442) target = $region16
      $region15: #{decoder_forward.3} parent=11 // pred_region
        _
      $region16: #{decoder_forward.3} parent=11 // pred_fallthru
        _
      // Predicated region
      $region17: #{decoder_forward.3} parent=11 // pred_check
        %p445 = pneg %p144
      $region18: #{decoder_forward.3} parent=11 // pred_check_branch
        %447 = sbr.rel (%p445) target = $region20
      $region19: #{decoder_forward.3} parent=11 // pred_region
        _
      $region20: #{decoder_forward.3} parent=11 // pred_fallthru
        _
      // Predicated region
      $region21: #{decoder_forward.3} parent=11 // pred_check
        %p448 = pneg %p165
      $region22: #{decoder_forward.3} parent=11 // pred_check_branch
        %450 = sbr.rel (%p448) target = $region24
      $region23: #{decoder_forward.3} parent=11 // pred_region
        _
      $region24: #{decoder_forward.3} parent=11 // pred_fallthru
        _
      // Predicated region
      $region25: #{decoder_forward.3} parent=11 // pred_check
        %p451 = pneg %p186
      $region26: #{decoder_forward.3} parent=11 // pred_check_branch
        %453 = sbr.rel (%p451) target = $region28
      $region27: #{decoder_forward.3} parent=11 // pred_region
        _
      $region28: #{decoder_forward.3} parent=11 // pred_fallthru
        _
      // Predicated region
      $region29: #{decoder_forward.3} parent=11 // pred_check
        %p454 = pneg %p207
      $region30: #{decoder_forward.3} parent=11 // pred_check_branch
        %456 = sbr.rel (%p454) target = $region32
      $region31: #{decoder_forward.3} parent=11 // pred_region
        _
      $region32: #{decoder_forward.3} parent=11 // pred_fallthru
        _
      // Predicated region
      $region33: #{decoder_forward.3} parent=11 // pred_check
        %p457 = pneg %p228
      $region34: #{decoder_forward.3} parent=11 // pred_check_branch
        %459 = sbr.rel (%p457) target = $region36
      $region35: #{decoder_forward.3} parent=11 // pred_region
        _
      $region36: #{decoder_forward.3} parent=11 // pred_fallthru
        _
      // Predicated region
      $region37: #{decoder_forward.3} parent=11 // pred_check
        %p460 = pneg %p249
      $region38: #{decoder_forward.3} parent=11 // pred_check_branch
        %462 = sbr.rel (%p460) target = $region40
      $region39: #{decoder_forward.3} parent=11 // pred_region
        _
      $region40: #{decoder_forward.3} parent=11 // pred_fallthru
        _
      // Predicated region
      $region41: #{decoder_forward.3} parent=11 // pred_check
        %p463 = pneg %p270
      $region42: #{decoder_forward.3} parent=11 // pred_check_branch
        %465 = sbr.rel (%p463) target = $region44
      $region43: #{decoder_forward.3} parent=11 // pred_region
        _
      $region44: #{decoder_forward.3} parent=11 // pred_fallthru
        _
      // Predicated region
      $region45: #{decoder_forward.3} parent=11 // pred_check
        %p466 = pneg %p291
      $region46: #{decoder_forward.3} parent=11 // pred_check_branch
        %468 = sbr.rel (%p466) target = $region48
      $region47: #{decoder_forward.3} parent=11 // pred_region
        _
      $region48: #{decoder_forward.3} parent=11 // pred_fallthru
        _
      // Predicated region
      $region49: #{decoder_forward.3} parent=11 // pred_check
        %p469 = pneg %p312
      $region50: #{decoder_forward.3} parent=11 // pred_check_branch
        %471 = sbr.rel (%p469) target = $region52
      $region51: #{decoder_forward.3} parent=11 // pred_region
        _
      $region52: #{decoder_forward.3} parent=11 // pred_fallthru
        _
      // Predicated region
      $region53: #{decoder_forward.3} parent=11 // pred_check
        %p472 = pneg %p333
      $region54: #{decoder_forward.3} parent=11 // pred_check_branch
        %474 = sbr.rel (%p472) target = $region56
      $region55: #{decoder_forward.3} parent=11 // pred_region
        _
      $region56: #{decoder_forward.3} parent=11 // pred_fallthru
        _
      // Predicated region
      $region57: #{decoder_forward.3} parent=11 // pred_check
        %p475 = pneg %p354
      $region58: #{decoder_forward.3} parent=11 // pred_check_branch
        %477 = sbr.rel (%p475) target = $region60
      $region59: #{decoder_forward.3} parent=11 // pred_region
        _
      $region60: #{decoder_forward.3} parent=11 // pred_fallthru
        _
      // Predicated region
      $region61: #{decoder_forward.3} parent=11 // pred_check
        %p478 = pneg %p375
      $region62: #{decoder_forward.3} parent=11 // pred_check_branch
        %480 = sbr.rel (%p478) target = $region64
      $region63: #{decoder_forward.3} parent=11 // pred_region
        _
      $region64: #{decoder_forward.3} parent=11 // pred_fallthru
        _
    $region12: #{decoder_forward.3} parent=5 // pred_fallthru
      _
    %p481 = scmp.lt.s32.totalorder %s24, 2
    // Predicated region
    $region65: #{decoder_forward.3} parent=5 // pred_check
      %p482 = pneg %p481
    $region66: #{decoder_forward.3} parent=5 // pred_check_branch
      %484 = sbr.rel (%p482) target = $region68
    $region67: #{decoder_forward.3} parent=5 // pred_region
      // Predicated region
      $region69: #{decoder_forward.3} parent=67 // pred_check
        %p485 = pneg %p44
      $region70: #{decoder_forward.3} parent=67 // pred_check_branch
        %487 = sbr.rel (%p485) target = $region72
      $region71: #{decoder_forward.3} parent=67 // pred_region
        %p488 = scmp.lt.s32.totalorder %s24, 1
        %s489 = scalar_select %p488, %s24, 1
        %s490 = smul.addr %s489, 8
        %s491 = scalar_lea.vmem %s0, %s490
      $region72: #{decoder_forward.3} parent=67 // pred_fallthru
        _
      // Predicated region
      $region73: #{decoder_forward.3} parent=67 // pred_check
        %p492 = pneg %p70
      $region74: #{decoder_forward.3} parent=67 // pred_check_branch
        %494 = sbr.rel (%p492) target = $region76
      $region75: #{decoder_forward.3} parent=67 // pred_region
        %p495 = scmp.lt.s32.totalorder %s24, 1
        %s496 = scalar_select %p495, %s24, 1
        %s497 = smul.addr %s496, 2
        %s498 = smul.addr %s497, 8
        %s499 = scalar_lea.vmem %s1, %s498
      $region76: #{decoder_forward.3} parent=67 // pred_fallthru
        _
      // Predicated region
      $region77: #{decoder_forward.3} parent=67 // pred_check
        %p500 = pneg %p96
      $region78: #{decoder_forward.3} parent=67 // pred_check_branch
        %502 = sbr.rel (%p500) target = $region80
      $region79: #{decoder_forward.3} parent=67 // pred_region
        %p503 = scmp.lt.s32.totalorder %s24, 1
        %s504 = scalar_select %p503, %s24, 1
        %s505 = smul.addr %s504, 8
        %s506 = scalar_lea.vmem %s2, %s505
      $region80: #{decoder_forward.3} parent=67 // pred_fallthru
        _
    $region68: #{decoder_forward.3} parent=5 // pred_fallthru
      _
    %p507 = scmp.le.s32.totalorder 1, %s24
    %p508 = scmp.lt.s32.totalorder %s24, 3
    %p509 = pnand %p507, %p508
    %p510 = pneg %p509
    // Predicated region
    $region81: #{decoder_forward.3} parent=5 // pred_check
      _
    $region82: #{decoder_forward.3} parent=5 // pred_check_branch
      %512 = sbr.rel (%p509) target = $region84
    $region83: #{decoder_forward.3} parent=5 // pred_region
      %s513 = ssub.s32 %s24, 1
      %p514 = scmp.lt.s32.totalorder %s29, 1
      %s515 = scalar_select %p514, %s29, 1
      %s516 = smul.addr %s515, 8
      %s517 = scalar_lea.vmem %s0, %s516
      %p518 = pneg %p50
      %p519 = pneg %p47
      %p520 = scmp.lt.s32.totalorder %s29, 1
      %s521 = scalar_select %p520, %s29, 1
      %s522 = smul.addr %s521, 2
      %s523 = smul.addr %s522, 8
      %s524 = scalar_lea.vmem %s1, %s523
      %p525 = pneg %p76
      %p526 = pneg %p73
      %p527 = scmp.lt.s32.totalorder %s29, 1
      %s528 = scalar_select %p527, %s29, 1
      %s529 = smul.addr %s528, 8
      %s530 = scalar_lea.vmem %s2, %s529
      %p531 = pneg %p102
      %p532 = pneg %p99
      %p533 = pneg %p123
      %p534 = pneg %p120
      %p535 = pneg %p144
      %p536 = pneg %p141
      %p537 = pneg %p165
      %p538 = pneg %p162
      %p539 = pneg %p186
      %p540 = pneg %p183
      %p541 = pneg %p207
      %p542 = pneg %p204
      %p543 = pneg %p228
      %p544 = pneg %p225
      %p545 = pneg %p249
      %p546 = pneg %p246
      %p547 = pneg %p270
      %p548 = pneg %p267
      %p549 = pneg %p291
      %p550 = pneg %p288
      %p551 = pneg %p312
      %p552 = pneg %p309
      %p553 = pneg %p333
      %p554 = pneg %p330
      %p555 = pneg %p354
      %p556 = pneg %p351
      %p557 = pneg %p375
      %p558 = pneg %p372
      %p559 = pneg %p401
      %p560 = pneg %p398
      %p561 = scmp.lt.s32.totalorder %s29, 1
      %s562 = scalar_select %p561, %s29, 1
      %s563 = smul.addr %s562, 8
      %s564 = scalar_lea.vmem %s16, %s563
      %p565 = pneg %p427
      %p566 = pneg %p424
      %p567 = scmp.lt.s32.totalorder %s29, 1
      %s568 = scalar_select %p567, %s29, 1
      %s569 = smul.addr %s568, 8
      %s570 = scalar_lea.vmem %s17, %s569
      %p571 = scmp.lt.s32.totalorder %s29, 1
      %s572 = scalar_select %p571, %s29, 1
      %s573 = smul.addr %s572, 8
      %s574 = scalar_lea.vmem %s0, %s573
      %p575 = scmp.lt.s32.totalorder %s29, 1
      %s576 = scalar_select %p575, %s29, 1
      %s577 = smul.addr %s576, 2
      %s578 = smul.addr %s577, 8
      %s579 = scalar_lea.vmem %s1, %s578
      %p580 = scmp.lt.s32.totalorder %s29, 1
      %s581 = scalar_select %p580, %s29, 1
      %s582 = smul.addr %s581, 8
      %s583 = scalar_lea.vmem %s2, %s582
      %p584 = scmp.lt.s32.totalorder %s29, 1
      %s585 = scalar_select %p584, %s29, 1
      %s586 = smul.addr %s585, 8
      %s587 = scalar_lea.vmem %s16, %s586
      %p588 = scmp.lt.s32.totalorder %s29, 1
      %s589 = scalar_select %p588, %s29, 1
      %s590 = smul.addr %s589, 8
      %s591 = scalar_lea.vmem %s17, %s590
      %v593 = vld [vmem:[%s574] sm:$0xff]
      %v594 = vld [vmem:[%s579] sm:$0xff]
      %v595 = vld [vmem:[%s579 + $0x8] sm:$0xff]
      %v596 = vpack.c.bf16 %v593, %v593
      %v597 = vld [vmem:[%s3] sm:$0xf]
      %v598 = vld [vmem:[%s3 + $0x4] sm:$0xf]
      %v599 = vld [vmem:[%s3 + $0x8] sm:$0xf]
      %v600 = vld [vmem:[%s3 + $0xc] sm:$0xf]
      %v601 = vld [vmem:[%s4] sm:$0x1]
      %v603 = vlaneseq
      %v604 = vshrl.u32 %v603, 7
      %v605 = vsub.s32 0, %v604
      %v606 = vrot.slane %v601, %v605
      %v612 = vunpack.c.l.b16 %v597
      %v613 = vunpack.c.l.b16 %v598
      %v614 = vunpack.c.l.b16 %v599
      %v615 = vunpack.c.l.b16 %v600
      %v616 = vpack.c.b16 %v613, %v612
      %v617 = vpack.c.b16 %v615, %v614
      %vm620 = vcmask 261120
      %v622 = vsel %vm620, %v596, 0
      %624 = vmatprep.subr.bf16.mxu0 0
      %625 = vmatpush1.bf16.msra.mxu0 %v616
      %626 = vmatprep.subr.bf16.mxu0 0
      %627 = vmatpush1.bf16.msra.mxu0 %v617
      %628 = vmatprep.subr.bf16.mxu0 0
      %629 = vmatpush1.bf16.msra.mxu0 0
      %630 = vmatprep.subr.bf16.mxu0 0
      %631 = vmatpush1.bf16.msra.mxu0 0
      %632 = vmatprep.subr.bf16.mxu0 0
      %633 = vmatpush1.bf16.msra.mxu0 0
      %634 = vmatprep.subr.bf16.mxu0 0
      %635 = vmatpush1.bf16.msra.mxu0 0
      %636 = vmatprep.subr.bf16.mxu0 0
      %637 = vmatpush1.bf16.msra.mxu0 0
      %638 = vmatprep.subr.bf16.mxu0 0
      %639 = vmatpush1.bf16.msra.mxu0 0
      %640 = vmatprep.subr.bf16.mxu0 0
      %641 = vmatpush1.bf16.msra.mxu0 0
      %642 = vmatprep.subr.bf16.mxu0 0
      %643 = vmatpush1.bf16.msra.mxu0 0
      %644 = vmatprep.subr.bf16.mxu0 0
      %645 = vmatpush1.bf16.msra.mxu0 0
      %646 = vmatprep.subr.bf16.mxu0 0
      %647 = vmatpush1.bf16.msra.mxu0 0
      %648 = vmatprep.subr.bf16.mxu0 0
      %649 = vmatpush1.bf16.msra.mxu0 0
      %650 = vmatprep.subr.bf16.mxu0 0
      %651 = vmatpush1.bf16.msra.mxu0 0
      %652 = vmatprep.subr.bf16.mxu0 0
      %653 = vmatpush1.bf16.msra.mxu0 0
      %654 = vmatprep.subr.bf16.mxu0 0
      %655 = vmatpush1.bf16.msra.mxu0 0
      %656 = vmatprep.mubr.bf16.mxu0 0
      %657 = vmatmul.mubr.bf16.gmra.mrb[0].mxu0 %v622
      %v658 = vpop.f32.mrb[0].mxu0
      %v659 = vadd.f32 %v606, %v658
      %v660 = vpop.f32.mrb[0].mxu0
      %v661 = vpop.f32.mrb[0].mxu0
      %v662 = vpop.f32.mrb[0].mxu0
      %663 = vdwg.mxu0
      %v664 = vmul.f32 %v659, 0.35355338
      %v665 = vpack.c.bf16 %v664, %v664
      %v666 = vpack.c.bf16 %v659, %v659
      %668 = vrot.lane.b32.xlu0 %v666, 96
      %v669 = vpop.permute.xlu0 %668
      %vm670 = vcmask 64512
      %v672 = vsel %vm670, %v665, 0
      %v675 = vsel %vm670, %v669, 0
      %677 = vmatprep.subr.bf16.mxu0 0
      %678 = vmatpush1.bf16.xpose.msra.mxu0 %v675
      %679 = vmatprep.subr.bf16.mxu0 0
      %680 = vmatpush1.bf16.xpose.msra.mxu0 0
      %681 = vmatprep.subr.bf16.mxu0 0
      %682 = vmatpush1.bf16.xpose.msra.mxu0 0
      %683 = vmatprep.subr.bf16.mxu0 0
      %684 = vmatpush1.bf16.xpose.msra.mxu0 0
      %685 = vmatprep.subr.bf16.mxu0 0
      %686 = vmatpush1.bf16.xpose.msra.mxu0 0
      %687 = vmatprep.subr.bf16.mxu0 0
      %688 = vmatpush1.bf16.xpose.msra.mxu0 0
      %689 = vmatprep.subr.bf16.mxu0 0
      %690 = vmatpush1.bf16.xpose.msra.mxu0 0
      %691 = vmatprep.subr.bf16.mxu0 0
      %692 = vmatpush1.bf16.xpose.msra.mxu0 0
      %693 = vmatprep.subr.bf16.mxu0 0
      %694 = vmatpush1.bf16.xpose.msra.mxu0 0
      %695 = vmatprep.subr.bf16.mxu0 0
      %696 = vmatpush1.bf16.xpose.msra.mxu0 0
      %697 = vmatprep.subr.bf16.mxu0 0
      %698 = vmatpush1.bf16.xpose.msra.mxu0 0
      %699 = vmatprep.subr.bf16.mxu0 0
      %700 = vmatpush1.bf16.xpose.msra.mxu0 0
      %701 = vmatprep.subr.bf16.mxu0 0
      %702 = vmatpush1.bf16.xpose.msra.mxu0 0
      %703 = vmatprep.subr.bf16.mxu0 0
      %704 = vmatpush1.bf16.xpose.msra.mxu0 0
      %705 = vmatprep.subr.bf16.mxu0 0
      %706 = vmatpush1.bf16.xpose.msra.mxu0 0
      %707 = vmatprep.subr.bf16.mxu0 0
      %708 = vmatpush1.bf16.xpose.msra.mxu0 0
      %709 = vmatprep.mubr.bf16.mxu0 0
      %710 = vmatmul.mubr.bf16.gmra.mrb[0].mxu0 %v672
      %v711 = vpop.f32.mrb[0].mxu0
      %v712 = vadd.f32 0.0, %v711
      %v713 = vpop.f32.mrb[0].mxu0
      %v714 = vpop.f32.mrb[0].mxu0
      %v715 = vpop.f32.mrb[0].mxu0
      %716 = vdwg.mxu0
      %v717 = vsel %vm670, %v712, -inf
      %718 = vmax.xlane.f32.xlu0 %v717
      %v719 = vpop.xlane.xlu0 %718
      %v720 = vsub.f32 %v712, %v719
      %v721 = vmul.f32 %v720, 1.442695
      %v722 = vpow.pop %v721
      %v723 = vsel %vm670, %v722, 0.0
      %724 = vadd.xlane.f32.xlu0 %v723
      %v725 = vpop.xlane.xlu0 %724
      %v726 = vrcp.pop %v725
      %v727 = vmul.f32 %v722, %v726
      %v728 = vpack.c.bf16 %v727, %v727
      %729 = vrot.lane.b32.xlu0 %v666, 64
      %v730 = vpop.permute.xlu0 %729
      %v732 = vsel %vm670, %v728, 0
      %vm734 = vcmask 1043456
      %v736 = vsel %vm734, %v730, 0
      %738 = vmatprep.subr.bf16.mxu0 0
      %739 = vmatpush1.bf16.msra.mxu0 %v736
      %740 = vmatprep.subr.bf16.mxu0 0
      %741 = vmatpush1.bf16.msra.mxu0 0
      %742 = vmatprep.subr.bf16.mxu0 0
      %743 = vmatpush1.bf16.msra.mxu0 0
      %744 = vmatprep.subr.bf16.mxu0 0
      %745 = vmatpush1.bf16.msra.mxu0 0
      %746 = vmatprep.subr.bf16.mxu0 0
      %747 = vmatpush1.bf16.msra.mxu0 0
      %748 = vmatprep.subr.bf16.mxu0 0
      %749 = vmatpush1.bf16.msra.mxu0 0
      %750 = vmatprep.subr.bf16.mxu0 0
      %751 = vmatpush1.bf16.msra.mxu0 0
      %752 = vmatprep.subr.bf16.mxu0 0
      %753 = vmatpush1.bf16.msra.mxu0 0
      %754 = vmatprep.subr.bf16.mxu0 0
      %755 = vmatpush1.bf16.msra.mxu0 0
      %756 = vmatprep.subr.bf16.mxu0 0
      %757 = vmatpush1.bf16.msra.mxu0 0
      %758 = vmatprep.subr.bf16.mxu0 0
      %759 = vmatpush1.bf16.msra.mxu0 0
      %760 = vmatprep.subr.bf16.mxu0 0
      %761 = vmatpush1.bf16.msra.mxu0 0
      %762 = vmatprep.subr.bf16.mxu0 0
      %763 = vmatpush1.bf16.msra.mxu0 0
      %764 = vmatprep.subr.bf16.mxu0 0
      %765 = vmatpush1.bf16.msra.mxu0 0
      %766 = vmatprep.subr.bf16.mxu0 0
      %767 = vmatpush1.bf16.msra.mxu0 0
      %768 = vmatprep.subr.bf16.mxu0 0
      %769 = vmatpush1.bf16.msra.mxu0 0
      %770 = vmatprep.mubr.bf16.mxu0 0
      %771 = vmatmul.mubr.bf16.gmra.mrb[0].mxu0 %v732
      %v772 = vpop.f32.mrb[0].mxu0
      %v773 = vadd.f32 0.0, %v772
      %v774 = vpop.f32.mrb[0].mxu0
      %v775 = vpop.f32.mrb[0].mxu0
      %v776 = vpop.f32.mrb[0].mxu0
      %777 = vdwg.mxu0
      %779 = vrot.lane.b32.xlu0 %v665, 120
      %v780 = vpop.permute.xlu0 %779
      %781 = vrot.lane.b32.xlu0 %v666, 88
      %v782 = vpop.permute.xlu0 %781
      %v784 = vsel %vm670, %v780, 0
      %v787 = vsel %vm670, %v782, 0
      %789 = vmatprep.subr.bf16.mxu0 0
      %790 = vmatpush1.bf16.xpose.msra.mxu0 %v787
      %791 = vmatprep.subr.bf16.mxu0 0
      %792 = vmatpush1.bf16.xpose.msra.mxu0 0
      %793 = vmatprep.subr.bf16.mxu0 0
      %794 = vmatpush1.bf16.xpose.msra.mxu0 0
      %795 = vmatprep.subr.bf16.mxu0 0
      %796 = vmatpush1.bf16.xpose.msra.mxu0 0
      %797 = vmatprep.subr.bf16.mxu0 0
      %798 = vmatpush1.bf16.xpose.msra.mxu0 0
      %799 = vmatprep.subr.bf16.mxu0 0
      %800 = vmatpush1.bf16.xpose.msra.mxu0 0
      %801 = vmatprep.subr.bf16.mxu0 0
      %802 = vmatpush1.bf16.xpose.msra.mxu0 0
      %803 = vmatprep.subr.bf16.mxu0 0
      %804 = vmatpush1.bf16.xpose.msra.mxu0 0
      %805 = vmatprep.subr.bf16.mxu0 0
      %806 = vmatpush1.bf16.xpose.msra.mxu0 0
      %807 = vmatprep.subr.bf16.mxu0 0
      %808 = vmatpush1.bf16.xpose.msra.mxu0 0
      %809 = vmatprep.subr.bf16.mxu0 0
      %810 = vmatpush1.bf16.xpose.msra.mxu0 0
      %811 = vmatprep.subr.bf16.mxu0 0
      %812 = vmatpush1.bf16.xpose.msra.mxu0 0
      %813 = vmatprep.subr.bf16.mxu0 0
      %814 = vmatpush1.bf16.xpose.msra.mxu0 0
      %815 = vmatprep.subr.bf16.mxu0 0
      %816 = vmatpush1.bf16.xpose.msra.mxu0 0
      %817 = vmatprep.subr.bf16.mxu0 0
      %818 = vmatpush1.bf16.xpose.msra.mxu0 0
      %819 = vmatprep.subr.bf16.mxu0 0
      %820 = vmatpush1.bf16.xpose.msra.mxu0 0
      %821 = vmatprep.mubr.bf16.mxu0 0
      %822 = vmatmul.mubr.bf16.gmra.mrb[0].mxu0 %v784
      %v823 = vpop.f32.mrb[0].mxu0
      %v824 = vadd.f32 0.0, %v823
      %v825 = vpop.f32.mrb[0].mxu0
      %v826 = vpop.f32.mrb[0].mxu0
      %v827 = vpop.f32.mrb[0].mxu0
      %828 = vdwg.mxu0
      %v829 = vsel %vm670, %v824, -inf
      %830 = vmax.xlane.f32.xlu0 %v829
      %v831 = vpop.xlane.xlu0 %830
      %v832 = vsub.f32 %v824, %v831
      %v833 = vmul.f32 %v832, 1.442695
      %v834 = vpow.pop %v833
      %v835 = vsel %vm670, %v834, 0.0
      %836 = vadd.xlane.f32.xlu0 %v835
      %v837 = vpop.xlane.xlu0 %836
      %v838 = vrcp.pop %v837
      %v839 = vmul.f32 %v834, %v838
      %v840 = vpack.c.bf16 %v839, %v839
      %841 = vrot.lane.b32.xlu0 %v666, 56
      %v842 = vpop.permute.xlu0 %841
      %v844 = vsel %vm670, %v840, 0
      %v847 = vsel %vm734, %v842, 0
      %849 = vmatprep.subr.bf16.mxu0 0
      %850 = vmatpush1.bf16.msra.mxu0 %v847
      %851 = vmatprep.subr.bf16.mxu0 0
      %852 = vmatpush1.bf16.msra.mxu0 0
      %853 = vmatprep.subr.bf16.mxu0 0
      %854 = vmatpush1.bf16.msra.mxu0 0
      %855 = vmatprep.subr.bf16.mxu0 0
      %856 = vmatpush1.bf16.msra.mxu0 0
      %857 = vmatprep.subr.bf16.mxu0 0
      %858 = vmatpush1.bf16.msra.mxu0 0
      %859 = vmatprep.subr.bf16.mxu0 0
      %860 = vmatpush1.bf16.msra.mxu0 0
      %861 = vmatprep.subr.bf16.mxu0 0
      %862 = vmatpush1.bf16.msra.mxu0 0
      %863 = vmatprep.subr.bf16.mxu0 0
      %864 = vmatpush1.bf16.msra.mxu0 0
      %865 = vmatprep.subr.bf16.mxu0 0
      %866 = vmatpush1.bf16.msra.mxu0 0
      %867 = vmatprep.subr.bf16.mxu0 0
      %868 = vmatpush1.bf16.msra.mxu0 0
      %869 = vmatprep.subr.bf16.mxu0 0
      %870 = vmatpush1.bf16.msra.mxu0 0
      %871 = vmatprep.subr.bf16.mxu0 0
      %872 = vmatpush1.bf16.msra.mxu0 0
      %873 = vmatprep.subr.bf16.mxu0 0
      %874 = vmatpush1.bf16.msra.mxu0 0
      %875 = vmatprep.subr.bf16.mxu0 0
      %876 = vmatpush1.bf16.msra.mxu0 0
      %877 = vmatprep.subr.bf16.mxu0 0
      %878 = vmatpush1.bf16.msra.mxu0 0
      %879 = vmatprep.subr.bf16.mxu0 0
      %880 = vmatpush1.bf16.msra.mxu0 0
      %881 = vmatprep.mubr.bf16.mxu0 0
      %882 = vmatmul.mubr.bf16.gmra.mrb[0].mxu0 %v844
      %v883 = vpop.f32.mrb[0].mxu0
      %v884 = vadd.f32 0.0, %v883
      %v885 = vpop.f32.mrb[0].mxu0
      %v886 = vpop.f32.mrb[0].mxu0
      %v887 = vpop.f32.mrb[0].mxu0
      %888 = vdwg.mxu0
      %889 = vrot.lane.b32.xlu0 %v665, 112
      %v890 = vpop.permute.xlu0 %889
      %891 = vrot.lane.b32.xlu0 %v666, 80
      %v892 = vpop.permute.xlu0 %891
      %v894 = vsel %vm670, %v890, 0
      %v897 = vsel %vm670, %v892, 0
      %899 = vmatprep.subr.bf16.mxu0 0
      %900 = vmatpush1.bf16.xpose.msra.mxu0 %v897
      %901 = vmatprep.subr.bf16.mxu0 0
      %902 = vmatpush1.bf16.xpose.msra.mxu0 0
      %903 = vmatprep.subr.bf16.mxu0 0
      %904 = vmatpush1.bf16.xpose.msra.mxu0 0
      %905 = vmatprep.subr.bf16.mxu0 0
      %906 = vmatpush1.bf16.xpose.msra.mxu0 0
      %907 = vmatprep.subr.bf16.mxu0 0
      %908 = vmatpush1.bf16.xpose.msra.mxu0 0
      %909 = vmatprep.subr.bf16.mxu0 0
      %910 = vmatpush1.bf16.xpose.msra.mxu0 0
      %911 = vmatprep.subr.bf16.mxu0 0
      %912 = vmatpush1.bf16.xpose.msra.mxu0 0
      %913 = vmatprep.subr.bf16.mxu0 0
      %914 = vmatpush1.bf16.xpose.msra.mxu0 0
      %915 = vmatprep.subr.bf16.mxu0 0
      %916 = vmatpush1.bf16.xpose.msra.mxu0 0
      %917 = vmatprep.subr.bf16.mxu0 0
      %918 = vmatpush1.bf16.xpose.msra.mxu0 0
      %919 = vmatprep.subr.bf16.mxu0 0
      %920 = vmatpush1.bf16.xpose.msra.mxu0 0
      %921 = vmatprep.subr.bf16.mxu0 0
      %922 = vmatpush1.bf16.xpose.msra.mxu0 0
      %923 = vmatprep.subr.bf16.mxu0 0
      %924 = vmatpush1.bf16.xpose.msra.mxu0 0
      %925 = vmatprep.subr.bf16.mxu0 0
      %926 = vmatpush1.bf16.xpose.msra.mxu0 0
      %927 = vmatprep.subr.bf16.mxu0 0
      %928 = vmatpush1.bf16.xpose.msra.mxu0 0
      %929 = vmatprep.subr.bf16.mxu0 0
      %930 = vmatpush1.bf16.xpose.msra.mxu0 0
      %931 = vmatprep.mubr.bf16.mxu0 0
      %932 = vmatmul.mubr.bf16.gmra.mrb[0].mxu0 %v894
      %v933 = vpop.f32.mrb[0].mxu0
      %v934 = vadd.f32 0.0, %v933
      %v935 = vpop.f32.mrb[0].mxu0
      %v936 = vpop.f32.mrb[0].mxu0
      %v937 = vpop.f32.mrb[0].mxu0
      %938 = vdwg.mxu0
      %v939 = vsel %vm670, %v934, -inf
      %940 = vmax.xlane.f32.xlu0 %v939
      %v941 = vpop.xlane.xlu0 %940
      %v942 = vsub.f32 %v934, %v941
      %v943 = vmul.f32 %v942, 1.442695
      %v944 = vpow.pop %v943
      %v945 = vsel %vm670, %v944, 0.0
      %946 = vadd.xlane.f32.xlu0 %v945
      %v947 = vpop.xlane.xlu0 %946
      %v948 = vrcp.pop %v947
      %v949 = vmul.f32 %v944, %v948
      %v950 = vpack.c.bf16 %v949, %v949
      %951 = vrot.lane.b32.xlu0 %v666, 48
      %v952 = vpop.permute.xlu0 %951
      %v954 = vsel %vm670, %v950, 0
      %v957 = vsel %vm734, %v952, 0
      %959 = vmatprep.subr.bf16.mxu0 0
      %960 = vmatpush1.bf16.msra.mxu0 %v957
      %961 = vmatprep.subr.bf16.mxu0 0
      %962 = vmatpush1.bf16.msra.mxu0 0
      %963 = vmatprep.subr.bf16.mxu0 0
      %964 = vmatpush1.bf16.msra.mxu0 0
      %965 = vmatprep.subr.bf16.mxu0 0
      %966 = vmatpush1.bf16.msra.mxu0 0
      %967 = vmatprep.subr.bf16.mxu0 0
      %968 = vmatpush1.bf16.msra.mxu0 0
      %969 = vmatprep.subr.bf16.mxu0 0
      %970 = vmatpush1.bf16.msra.mxu0 0
      %971 = vmatprep.subr.bf16.mxu0 0
      %972 = vmatpush1.bf16.msra.mxu0 0
      %973 = vmatprep.subr.bf16.mxu0 0
      %974 = vmatpush1.bf16.msra.mxu0 0
      %975 = vmatprep.subr.bf16.mxu0 0
      %976 = vmatpush1.bf16.msra.mxu0 0
      %977 = vmatprep.subr.bf16.mxu0 0
      %978 = vmatpush1.bf16.msra.mxu0 0
      %979 = vmatprep.subr.bf16.mxu0 0
      %980 = vmatpush1.bf16.msra.mxu0 0
      %981 = vmatprep.subr.bf16.mxu0 0
      %982 = vmatpush1.bf16.msra.mxu0 0
      %983 = vmatprep.subr.bf16.mxu0 0
      %984 = vmatpush1.bf16.msra.mxu0 0
      %985 = vmatprep.subr.bf16.mxu0 0
      %986 = vmatpush1.bf16.msra.mxu0 0
      %987 = vmatprep.subr.bf16.mxu0 0
      %988 = vmatpush1.bf16.msra.mxu0 0
      %989 = vmatprep.subr.bf16.mxu0 0
      %990 = vmatpush1.bf16.msra.mxu0 0
      %991 = vmatprep.mubr.bf16.mxu0 0
      %992 = vmatmul.mubr.bf16.gmra.mrb[0].mxu0 %v954
      %v993 = vpop.f32.mrb[0].mxu0
      %v994 = vadd.f32 0.0, %v993
      %v995 = vpop.f32.mrb[0].mxu0
      %v996 = vpop.f32.mrb[0].mxu0
      %v997 = vpop.f32.mrb[0].mxu0
      %998 = vdwg.mxu0
      %999 = vrot.lane.b32.xlu0 %v665, 104
      %v1000 = vpop.permute.xlu0 %999
      %1001 = vrot.lane.b32.xlu0 %v666, 72
      %v1002 = vpop.permute.xlu0 %1001
      %v1004 = vsel %vm670, %v1000, 0
      %v1007 = vsel %vm670, %v1002, 0
      %1009 = vmatprep.subr.bf16.mxu0 0
      %1010 = vmatpush1.bf16.xpose.msra.mxu0 %v1007
      %1011 = vmatprep.subr.bf16.mxu0 0
      %1012 = vmatpush1.bf16.xpose.msra.mxu0 0
      %1013 = vmatprep.subr.bf16.mxu0 0
      %1014 = vmatpush1.bf16.xpose.msra.mxu0 0
      %1015 = vmatprep.subr.bf16.mxu0 0
      %1016 = vmatpush1.bf16.xpose.msra.mxu0 0
      %1017 = vmatprep.subr.bf16.mxu0 0
      %1018 = vmatpush1.bf16.xpose.msra.mxu0 0
      %1019 = vmatprep.subr.bf16.mxu0 0
      %1020 = vmatpush1.bf16.xpose.msra.mxu0 0
      %1021 = vmatprep.subr.bf16.mxu0 0
      %1022 = vmatpush1.bf16.xpose.msra.mxu0 0
      %1023 = vmatprep.subr.bf16.mxu0 0
      %1024 = vmatpush1.bf16.xpose.msra.mxu0 0
      %1025 = vmatprep.subr.bf16.mxu0 0
      %1026 = vmatpush1.bf16.xpose.msra.mxu0 0
      %1027 = vmatprep.subr.bf16.mxu0 0
      %1028 = vmatpush1.bf16.xpose.msra.mxu0 0
      %1029 = vmatprep.subr.bf16.mxu0 0
      %1030 = vmatpush1.bf16.xpose.msra.mxu0 0
      %1031 = vmatprep.subr.bf16.mxu0 0
      %1032 = vmatpush1.bf16.xpose.msra.mxu0 0
      %1033 = vmatprep.subr.bf16.mxu0 0
      %1034 = vmatpush1.bf16.xpose.msra.mxu0 0
      %1035 = vmatprep.subr.bf16.mxu0 0
      %1036 = vmatpush1.bf16.xpose.msra.mxu0 0
      %1037 = vmatprep.subr.bf16.mxu0 0
      %1038 = vmatpush1.bf16.xpose.msra.mxu0 0
      %1039 = vmatprep.subr.bf16.mxu0 0
      %1040 = vmatpush1.bf16.xpose.msra.mxu0 0
      %1041 = vmatprep.mubr.bf16.mxu0 0
      %1042 = vmatmul.mubr.bf16.gmra.mrb[0].mxu0 %v1004
      %v1043 = vpop.f32.mrb[0].mxu0
      %v1044 = vadd.f32 0.0, %v1043
      %v1045 = vpop.f32.mrb[0].mxu0
      %v1046 = vpop.f32.mrb[0].mxu0
      %v1047 = vpop.f32.mrb[0].mxu0
      %1048 = vdwg.mxu0
      %v1049 = vsel %vm670, %v1044, -inf
      %1050 = vmax.xlane.f32.xlu0 %v1049
      %v1051 = vpop.xlane.xlu0 %1050
      %v1052 = vsub.f32 %v1044, %v1051
      %v1053 = vmul.f32 %v1052, 1.442695
      %v1054 = vpow.pop %v1053
      %v1055 = vsel %vm670, %v1054, 0.0
      %1056 = vadd.xlane.f32.xlu0 %v1055
      %v1057 = vpop.xlane.xlu0 %1056
      %v1058 = vrcp.pop %v1057
      %v1059 = vmul.f32 %v1054, %v1058
      %v1060 = vpack.c.bf16 %v1059, %v1059
      %1061 = vrot.lane.b32.xlu0 %v666, 40
      %v1062 = vpop.permute.xlu0 %1061
      %v1064 = vsel %vm670, %v1060, 0
      %v1067 = vsel %vm734, %v1062, 0
      %1069 = vmatprep.subr.bf16.mxu0 0
      %1070 = vmatpush1.bf16.msra.mxu0 %v1067
      %1071 = vmatprep.subr.bf16.mxu0 0
      %1072 = vmatpush1.bf16.msra.mxu0 0
      %1073 = vmatprep.subr.bf16.mxu0 0
      %1074 = vmatpush1.bf16.msra.mxu0 0
      %1075 = vmatprep.subr.bf16.mxu0 0
      %1076 = vmatpush1.bf16.msra.mxu0 0
      %1077 = vmatprep.subr.bf16.mxu0 0
      %1078 = vmatpush1.bf16.msra.mxu0 0
      %1079 = vmatprep.subr.bf16.mxu0 0
      %1080 = vmatpush1.bf16.msra.mxu0 0
      %1081 = vmatprep.subr.bf16.mxu0 0
      %1082 = vmatpush1.bf16.msra.mxu0 0
      %1083 = vmatprep.subr.bf16.mxu0 0
      %1084 = vmatpush1.bf16.msra.mxu0 0
      %1085 = vmatprep.subr.bf16.mxu0 0
      %1086 = vmatpush1.bf16.msra.mxu0 0
      %1087 = vmatprep.subr.bf16.mxu0 0
      %1088 = vmatpush1.bf16.msra.mxu0 0
      %1089 = vmatprep.subr.bf16.mxu0 0
      %1090 = vmatpush1.bf16.msra.mxu0 0
      %1091 = vmatprep.subr.bf16.mxu0 0
      %1092 = vmatpush1.bf16.msra.mxu0 0
      %1093 = vmatprep.subr.bf16.mxu0 0
      %1094 = vmatpush1.bf16.msra.mxu0 0
      %1095 = vmatprep.subr.bf16.mxu0 0
      %1096 = vmatpush1.bf16.msra.mxu0 0
      %1097 = vmatprep.subr.bf16.mxu0 0
      %1098 = vmatpush1.bf16.msra.mxu0 0
      %1099 = vmatprep.subr.bf16.mxu0 0
      %1100 = vmatpush1.bf16.msra.mxu0 0
      %1101 = vmatprep.mubr.bf16.mxu0 0
      %1102 = vmatmul.mubr.bf16.gmra.mrb[0].mxu0 %v1064
      %v1103 = vpop.f32.mrb[0].mxu0
      %v1104 = vadd.f32 0.0, %v1103
      %v1105 = vpop.f32.mrb[0].mxu0
      %v1106 = vpop.f32.mrb[0].mxu0
      %v1107 = vpop.f32.mrb[0].mxu0
      %1108 = vdwg.mxu0
      %1110 = vrot.lane.b32.xlu0 %v884, 8
      %v1111 = vpop.permute.xlu0 %1110
      %1114 = vrot.lane.b32.xlu0 %v994, 16
      %v1115 = vpop.permute.xlu0 %1114
      %1118 = vrot.lane.b32.xlu0 %v1104, 24
      %v1119 = vpop.permute.xlu0 %1118
      %v1121 = vsel %vm670, %v773, %v1111
      %vm1122 = vcmask 130048
      %v1123 = vsel %vm1122, %v1121, %v1115
      %vm1124 = vcmask 195584
      %v1125 = vsel %vm1124, %v1123, %v1119
      %v1126 = vpack.c.bf16 %v1125, %v1125
      %v1127 = vld [vmem:[%s5] sm:$0xf]
      %v1128 = vld [vmem:[%s5 + $0x4] sm:$0xf]
      %v1129 = vld [vmem:[%s5 + $0x8] sm:$0xf]
      %v1130 = vld [vmem:[%s5 + $0xc] sm:$0xf]
      %v1131 = vld [vmem:[%s6] sm:$0x1]
      %v1133 = vlaneseq
      %v1134 = vshrl.u32 %v1133, 7
      %v1135 = vsub.s32 0, %v1134
      %v1136 = vrot.slane %v1131, %v1135
      %v1142 = vunpack.c.l.b16 %v1127
      %v1143 = vunpack.c.l.b16 %v1128
      %v1144 = vunpack.c.l.b16 %v1129
      %v1145 = vunpack.c.l.b16 %v1130
      %v1146 = vpack.c.b16 %v1143, %v1142
      %v1147 = vpack.c.b16 %v1145, %v1144
      %v1151 = vsel %vm620, %v1126, 0
      %1153 = vmatprep.subr.bf16.mxu0 0
      %1154 = vmatpush1.bf16.msra.mxu0 %v1146
      %1155 = vmatprep.subr.bf16.mxu0 0
      %1156 = vmatpush1.bf16.msra.mxu0 %v1147
      %1157 = vmatprep.subr.bf16.mxu0 0
      %1158 = vmatpush1.bf16.msra.mxu0 0
      %1159 = vmatprep.subr.bf16.mxu0 0
      %1160 = vmatpush1.bf16.msra.mxu0 0
      %1161 = vmatprep.subr.bf16.mxu0 0
      %1162 = vmatpush1.bf16.msra.mxu0 0
      %1163 = vmatprep.subr.bf16.mxu0 0
      %1164 = vmatpush1.bf16.msra.mxu0 0
      %1165 = vmatprep.subr.bf16.mxu0 0
      %1166 = vmatpush1.bf16.msra.mxu0 0
      %1167 = vmatprep.subr.bf16.mxu0 0
      %1168 = vmatpush1.bf16.msra.mxu0 0
      %1169 = vmatprep.subr.bf16.mxu0 0
      %1170 = vmatpush1.bf16.msra.mxu0 0
      %1171 = vmatprep.subr.bf16.mxu0 0
      %1172 = vmatpush1.bf16.msra.mxu0 0
      %1173 = vmatprep.subr.bf16.mxu0 0
      %1174 = vmatpush1.bf16.msra.mxu0 0
      %1175 = vmatprep.subr.bf16.mxu0 0
      %1176 = vmatpush1.bf16.msra.mxu0 0
      %1177 = vmatprep.subr.bf16.mxu0 0
      %1178 = vmatpush1.bf16.msra.mxu0 0
      %1179 = vmatprep.subr.bf16.mxu0 0
      %1180 = vmatpush1.bf16.msra.mxu0 0
      %1181 = vmatprep.subr.bf16.mxu0 0
      %1182 = vmatpush1.bf16.msra.mxu0 0
      %1183 = vmatprep.subr.bf16.mxu0 0
      %1184 = vmatpush1.bf16.msra.mxu0 0
      %1185 = vmatprep.mubr.bf16.mxu0 0
      %1186 = vmatmul.mubr.bf16.gmra.mrb[0].mxu0 %v1151
      %v1187 = vpop.f32.mrb[0].mxu0
      %v1188 = vadd.f32 %v1136, %v1187
      %v1189 = vpop.f32.mrb[0].mxu0
      %v1190 = vpop.f32.mrb[0].mxu0
      %v1191 = vpop.f32.mrb[0].mxu0
      %1192 = vdwg.mxu0
      %v1193 = vadd.f32 %v593, %v1188
      %v1194 = vlaneseq
      %v1195 = vshrl.u32 %v1194, 7
      %v1196 = vlaneseq
      %v1197 = vshrl.u32 %v1196, 7
      %v1198 = vsub.s32 0, %v1197
      %v1199 = vrot.slane %v1193, %v1198
      %v1200 = vlaneseq
      %v1201 = vshrl.u32 %v1200, 7
      %v1202 = vsub.s32 7, %v1201
      %v1203 = vrot.slane %v1193, %v1202
      %v1204 = vrot.slane %v1193, 1
      %vm1205 = vcmp.ge.s32.totalorder %v1195, 7
      %v1206 = vsel %vm1205, %v1203, %v1204
      %v1207 = vrot.slane %v1193, 7
      %vm1208 = vcmp.lt.s32.totalorder %v1195, 1
      %v1209 = vsel %vm1208, %v1199, %v1207
      %v1210 = vadd.f32 %v1193, %v1206
      %v1211 = vadd.f32 %v1210, %v1209
      %v1212 = vrot.slane %v1193, 2
      %vm1213 = vcmp.ge.s32.totalorder %v1195, 6
      %v1214 = vsel %vm1213, %v1203, %v1212
      %v1215 = vrot.slane %v1193, 6
      %vm1216 = vcmp.lt.s32.totalorder %v1195, 2
      %v1217 = vsel %vm1216, %v1199, %v1215
      %v1218 = vadd.f32 %v1211, %v1214
      %v1219 = vadd.f32 %v1218, %v1217
      %v1220 = vmul.f32 %v1219, 0.2
      %v1221 = vsub.f32 %v1193, %v1220
      %v1222 = vpack.c.bf16 %v1221, %v1221
      %v1223 = vld [vmem:[%s7] sm:$0xf]
      %v1224 = vld [vmem:[%s7 + $0x4] sm:$0xf]
      %v1225 = vld [vmem:[%s7 + $0x8] sm:$0xf]
      %v1226 = vld [vmem:[%s7 + $0xc] sm:$0xf]
      %v1227 = vld [vmem:[%s8] sm:$0x1]
      %v1229 = vlaneseq
      %v1230 = vshrl.u32 %v1229, 7
      %v1231 = vsub.s32 0, %v1230
      %v1232 = vrot.slane %v1227, %v1231
      %v1238 = vunpack.c.l.b16 %v1223
      %v1239 = vunpack.c.l.b16 %v1224
      %v1240 = vunpack.c.l.b16 %v1225
      %v1241 = vunpack.c.l.b16 %v1226
      %v1242 = vpack.c.b16 %v1239, %v1238
      %v1243 = vpack.c.b16 %v1241, %v1240
      %v1247 = vsel %vm620, %v1222, 0
      %1249 = vmatprep.subr.bf16.mxu0 0
      %1250 = vmatpush1.bf16.msra.mxu0 %v1242
      %1251 = vmatprep.subr.bf16.mxu0 0
      %1252 = vmatpush1.bf16.msra.mxu0 %v1243
      %1253 = vmatprep.subr.bf16.mxu0 0
      %1254 = vmatpush1.bf16.msra.mxu0 0
      %1255 = vmatprep.subr.bf16.mxu0 0
      %1256 = vmatpush1.bf16.msra.mxu0 0
      %1257 = vmatprep.subr.bf16.mxu0 0
      %1258 = vmatpush1.bf16.msra.mxu0 0
      %1259 = vmatprep.subr.bf16.mxu0 0
      %1260 = vmatpush1.bf16.msra.mxu0 0
      %1261 = vmatprep.subr.bf16.mxu0 0
      %1262 = vmatpush1.bf16.msra.mxu0 0
      %1263 = vmatprep.subr.bf16.mxu0 0
      %1264 = vmatpush1.bf16.msra.mxu0 0
      %1265 = vmatprep.subr.bf16.mxu0 0
      %1266 = vmatpush1.bf16.msra.mxu0 0
      %1267 = vmatprep.subr.bf16.mxu0 0
      %1268 = vmatpush1.bf16.msra.mxu0 0
      %1269 = vmatprep.subr.bf16.mxu0 0
      %1270 = vmatpush1.bf16.msra.mxu0 0
      %1271 = vmatprep.subr.bf16.mxu0 0
      %1272 = vmatpush1.bf16.msra.mxu0 0
      %1273 = vmatprep.subr.bf16.mxu0 0
      %1274 = vmatpush1.bf16.msra.mxu0 0
      %1275 = vmatprep.subr.bf16.mxu0 0
      %1276 = vmatpush1.bf16.msra.mxu0 0
      %1277 = vmatprep.subr.bf16.mxu0 0
      %1278 = vmatpush1.bf16.msra.mxu0 0
      %1279 = vmatprep.subr.bf16.mxu0 0
      %1280 = vmatpush1.bf16.msra.mxu0 0
      %1281 = vmatprep.mubr.bf16.mxu0 0
      %1282 = vmatmul.mubr.bf16.gmra.mrb[0].mxu0 %v1247
      %v1283 = vpop.f32.mrb[0].mxu0
      %v1284 = vadd.f32 %v1232, %v1283
      %v1285 = vpop.f32.mrb[0].mxu0
      %v1286 = vpop.f32.mrb[0].mxu0
      %v1287 = vpop.f32.mrb[0].mxu0
      %1288 = vdwg.mxu0
      %v1289 = vmul.f32 %v1284, 0.35355338
      %v1290 = vpack.c.bf16 %v595, %v594
      %v1291 = vld [vmem:[%s9] sm:$0xf]
      %v1292 = vld [vmem:[%s9 + $0x4] sm:$0xf]
      %v1293 = vld [vmem:[%s9 + $0x8] sm:$0xf]
      %v1294 = vld [vmem:[%s9 + $0xc] sm:$0xf]
      %v1295 = vld [vmem:[%s10] sm:$0x1]
      %v1297 = vlaneseq
      %v1298 = vshrl.u32 %v1297, 7
      %v1299 = vsub.s32 0, %v1298
      %v1300 = vrot.slane %v1295, %v1299
      %v1306 = vunpack.c.l.b16 %v1291
      %v1307 = vunpack.c.l.b16 %v1292
      %v1308 = vunpack.c.l.b16 %v1293
      %v1309 = vunpack.c.l.b16 %v1294
      %v1310 = vpack.c.b16 %v1307, %v1306
      %v1311 = vpack.c.b16 %v1309, %v1308
      %v1315 = vsel %vm620, %v1290, 0
      %1317 = vmatprep.subr.bf16.mxu0 0
      %1318 = vmatpush1.bf16.msra.mxu0 %v1310
      %1319 = vmatprep.subr.bf16.mxu0 0
      %1320 = vmatpush1.bf16.msra.mxu0 %v1311
      %1321 = vmatprep.subr.bf16.mxu0 0
      %1322 = vmatpush1.bf16.msra.mxu0 0
      %1323 = vmatprep.subr.bf16.mxu0 0
      %1324 = vmatpush1.bf16.msra.mxu0 0
      %1325 = vmatprep.subr.bf16.mxu0 0
      %1326 = vmatpush1.bf16.msra.mxu0 0
      %1327 = vmatprep.subr.bf16.mxu0 0
      %1328 = vmatpush1.bf16.msra.mxu0 0
      %1329 = vmatprep.subr.bf16.mxu0 0
      %1330 = vmatpush1.bf16.msra.mxu0 0
      %1331 = vmatprep.subr.bf16.mxu0 0
      %1332 = vmatpush1.bf16.msra.mxu0 0
      %1333 = vmatprep.subr.bf16.mxu0 0
      %1334 = vmatpush1.bf16.msra.mxu0 0
      %1335 = vmatprep.subr.bf16.mxu0 0
      %1336 = vmatpush1.bf16.msra.mxu0 0
      %1337 = vmatprep.subr.bf16.mxu0 0
      %1338 = vmatpush1.bf16.msra.mxu0 0
      %1339 = vmatprep.subr.bf16.mxu0 0
      %1340 = vmatpush1.bf16.msra.mxu0 0
      %1341 = vmatprep.subr.bf16.mxu0 0
      %1342 = vmatpush1.bf16.msra.mxu0 0
      %1343 = vmatprep.subr.bf16.mxu0 0
      %1344 = vmatpush1.bf16.msra.mxu0 0
      %1345 = vmatprep.subr.bf16.mxu0 0
      %1346 = vmatpush1.bf16.msra.mxu0 0
      %1347 = vmatprep.subr.bf16.mxu0 0
      %1348 = vmatpush1.bf16.msra.mxu0 0
      %1349 = vmatprep.mubr.bf16.mxu0 0
      %1350 = vmatmul.mubr.bf16.gmra.mrb[0].mxu0 %v1315
      %v1351 = vpop.f32.mrb[0].mxu0
      %v1352 = vadd.f32 %v1300, %v1351
      %v1353 = vpop.f32.mrb[0].mxu0
      %v1354 = vpop.f32.mrb[0].mxu0
      %v1355 = vadd.f32 %v1300, %v1354
      %v1356 = vpop.f32.mrb[0].mxu0
      %1357 = vdwg.mxu0
      %v1358 = vpack.c.bf16 %v1289, %v1289
      %v1359 = vpack.c.bf16 %v1355, %v1352
      %v1361 = vsel %vm670, %v1358, 0
      %v1364 = vsel %vm670, %v1359, 0
      %1366 = vmatprep.subr.bf16.mxu0 0
      %1367 = vmatpush1.bf16.xpose.msra.mxu0 %v1364
      %1368 = vmatprep.subr.bf16.mxu0 0
      %1369 = vmatpush1.bf16.xpose.msra.mxu0 0
      %1370 = vmatprep.subr.bf16.mxu0 0
      %1371 = vmatpush1.bf16.xpose.msra.mxu0 0
      %1372 = vmatprep.subr.bf16.mxu0 0
      %1373 = vmatpush1.bf16.xpose.msra.mxu0 0
      %1374 = vmatprep.subr.bf16.mxu0 0
      %1375 = vmatpush1.bf16.xpose.msra.mxu0 0
      %1376 = vmatprep.subr.bf16.mxu0 0
      %1377 = vmatpush1.bf16.xpose.msra.mxu0 0
      %1378 = vmatprep.subr.bf16.mxu0 0
      %1379 = vmatpush1.bf16.xpose.msra.mxu0 0
      %1380 = vmatprep.subr.bf16.mxu0 0
      %1381 = vmatpush1.bf16.xpose.msra.mxu0 0
      %1382 = vmatprep.subr.bf16.mxu0 0
      %1383 = vmatpush1.bf16.xpose.msra.mxu0 0
      %1384 = vmatprep.subr.bf16.mxu0 0
      %1385 = vmatpush1.bf16.xpose.msra.mxu0 0
      %1386 = vmatprep.subr.bf16.mxu0 0
      %1387 = vmatpush1.bf16.xpose.msra.mxu0 0
      %1388 = vmatprep.subr.bf16.mxu0 0
      %1389 = vmatpush1.bf16.xpose.msra.mxu0 0
      %1390 = vmatprep.subr.bf16.mxu0 0
      %1391 = vmatpush1.bf16.xpose.msra.mxu0 0
      %1392 = vmatprep.subr.bf16.mxu0 0
      %1393 = vmatpush1.bf16.xpose.msra.mxu0 0
      %1394 = vmatprep.subr.bf16.mxu0 0
      %1395 = vmatpush1.bf16.xpose.msra.mxu0 0
      %1396 = vmatprep.subr.bf16.mxu0 0
      %1397 = vmatpush1.bf16.xpose.msra.mxu0 0
      %1398 = vmatprep.mubr.bf16.mxu0 0
      %1399 = vmatmul.mubr.bf16.gmra.mrb[0].mxu0 %v1361
      %v1400 = vpop.f32.mrb[0].mxu0
      %v1401 = vadd.f32 0.0, %v1400
      %v1402 = vpop.f32.mrb[0].mxu0
      %v1403 = vpop.f32.mrb[0].mxu0
      %v1404 = vpop.f32.mrb[0].mxu0
      %1405 = vdwg.mxu0
      %v1406 = vsel %vm1122, %v1401, -inf
      %1407 = vmax.xlane.f32.xlu0 %v1406
      %v1408 = vpop.xlane.xlu0 %1407
      %v1409 = vsub.f32 %v1401, %v1408
      %v1410 = vmul.f32 %v1409, 1.442695
      %v1411 = vpow.pop %v1410
      %v1412 = vsel %vm1122, %v1411, 0.0
      %1413 = vadd.xlane.f32.xlu0 %v1412
      %v1414 = vpop.xlane.xlu0 %1413
      %v1415 = vrcp.pop %v1414
      %v1416 = vmul.f32 %v1411, %v1415
      %v1417 = vpack.c.bf16 %v1416, %v1416
      %1419 = vrot.lane.b32.xlu0 %v1359, 96
      %v1420 = vpop.permute.xlu0 %1419
      %v1423 = vsel %vm1122, %v1417, 0
      %1425 = vmatprep.subr.bf16.mxu0 0
      %1426 = vmatpush1.bf16.msra.mxu0 %v1420
      %1427 = vmatprep.subr.bf16.mxu0 0
      %1428 = vmatpush1.bf16.msra.mxu0 0
      %1429 = vmatprep.subr.bf16.mxu0 0
      %1430 = vmatpush1.bf16.msra.mxu0 0
      %1431 = vmatprep.subr.bf16.mxu0 0
      %1432 = vmatpush1.bf16.msra.mxu0 0
      %1433 = vmatprep.subr.bf16.mxu0 0
      %1434 = vmatpush1.bf16.msra.mxu0 0
      %1435 = vmatprep.subr.bf16.mxu0 0
      %1436 = vmatpush1.bf16.msra.mxu0 0
      %1437 = vmatprep.subr.bf16.mxu0 0
      %1438 = vmatpush1.bf16.msra.mxu0 0
      %1439 = vmatprep.subr.bf16.mxu0 0
      %1440 = vmatpush1.bf16.msra.mxu0 0
      %1441 = vmatprep.subr.bf16.mxu0 0
      %1442 = vmatpush1.bf16.msra.mxu0 0
      %1443 = vmatprep.subr.bf16.mxu0 0
      %1444 = vmatpush1.bf16.msra.mxu0 0
      %1445 = vmatprep.subr.bf16.mxu0 0
      %1446 = vmatpush1.bf16.msra.mxu0 0
      %1447 = vmatprep.subr.bf16.mxu0 0
      %1448 = vmatpush1.bf16.msra.mxu0 0
      %1449 = vmatprep.subr.bf16.mxu0 0
      %1450 = vmatpush1.bf16.msra.mxu0 0
      %1451 = vmatprep.subr.bf16.mxu0 0
      %1452 = vmatpush1.bf16.msra.mxu0 0
      %1453 = vmatprep.subr.bf16.mxu0 0
      %1454 = vmatpush1.bf16.msra.mxu0 0
      %1455 = vmatprep.subr.bf16.mxu0 0
      %1456 = vmatpush1.bf16.msra.mxu0 0
      %1457 = vmatprep.mubr.bf16.mxu0 0
      %1458 = vmatmul.mubr.bf16.gmra.mrb[0].mxu0 %v1423
      %v1459 = vpop.f32.mrb[0].mxu0
      %v1460 = vadd.f32 0.0, %v1459
      %v1461 = vpop.f32.mrb[0].mxu0
      %v1462 = vpop.f32.mrb[0].mxu0
      %v1463 = vpop.f32.mrb[0].mxu0
      %1464 = vdwg.mxu0
      %1466 = vrot.lane.b32.xlu0 %v1358, 120
      %v1467 = vpop.permute.xlu0 %1466
      %1468 = vrot.lane.b32.xlu0 %v1359, 120
      %v1469 = vpop.permute.xlu0 %1468
      %v1471 = vsel %vm670, %v1467, 0
      %v1474 = vsel %vm670, %v1469, 0
      %1476 = vmatprep.subr.bf16.mxu0 0
      %1477 = vmatpush1.bf16.xpose.msra.mxu0 %v1474
      %1478 = vmatprep.subr.bf16.mxu0 0
      %1479 = vmatpush1.bf16.xpose.msra.mxu0 0
      %1480 = vmatprep.subr.bf16.mxu0 0
      %1481 = vmatpush1.bf16.xpose.msra.mxu0 0
      %1482 = vmatprep.subr.bf16.mxu0 0
      %1483 = vmatpush1.bf16.xpose.msra.mxu0 0
      %1484 = vmatprep.subr.bf16.mxu0 0
      %1485 = vmatpush1.bf16.xpose.msra.mxu0 0
      %1486 = vmatprep.subr.bf16.mxu0 0
      %1487 = vmatpush1.bf16.xpose.msra.mxu0 0
      %1488 = vmatprep.subr.bf16.mxu0 0
      %1489 = vmatpush1.bf16.xpose.msra.mxu0 0
      %1490 = vmatprep.subr.bf16.mxu0 0
      %1491 = vmatpush1.bf16.xpose.msra.mxu0 0
      %1492 = vmatprep.subr.bf16.mxu0 0
      %1493 = vmatpush1.bf16.xpose.msra.mxu0 0
      %1494 = vmatprep.subr.bf16.mxu0 0
      %1495 = vmatpush1.bf16.xpose.msra.mxu0 0
      %1496 = vmatprep.subr.bf16.mxu0 0
      %1497 = vmatpush1.bf16.xpose.msra.mxu0 0
      %1498 = vmatprep.subr.bf16.mxu0 0
      %1499 = vmatpush1.bf16.xpose.msra.mxu0 0
      %1500 = vmatprep.subr.bf16.mxu0 0
      %1501 = vmatpush1.bf16.xpose.msra.mxu0 0
      %1502 = vmatprep.subr.bf16.mxu0 0
      %1503 = vmatpush1.bf16.xpose.msra.mxu0 0
      %1504 = vmatprep.subr.bf16.mxu0 0
      %1505 = vmatpush1.bf16.xpose.msra.mxu0 0
      %1506 = vmatprep.subr.bf16.mxu0 0
      %1507 = vmatpush1.bf16.xpose.msra.mxu0 0
      %1508 = vmatprep.mubr.bf16.mxu0 0
      %1509 = vmatmul.mubr.bf16.gmra.mrb[0].mxu0 %v1471
      %v1510 = vpop.f32.mrb[0].mxu0
      %v1511 = vadd.f32 0.0, %v1510
      %v1512 = vpop.f32.mrb[0].mxu0
      %v1513 = vpop.f32.mrb[0].mxu0
      %v1514 = vpop.f32.mrb[0].mxu0
      %1515 = vdwg.mxu0
      %v1516 = vsel %vm1122, %v1511, -inf
      %1517 = vmax.xlane.f32.xlu0 %v1516
      %v1518 = vpop.xlane.xlu0 %1517
      %v1519 = vsub.f32 %v1511, %v1518
      %v1520 = vmul.f32 %v1519, 1.442695
      %v1521 = vpow.pop %v1520
      %v1522 = vsel %vm1122, %v1521, 0.0
      %1523 = vadd.xlane.f32.xlu0 %v1522
      %v1524 = vpop.xlane.xlu0 %1523
      %v1525 = vrcp.pop %v1524
      %v1526 = vmul.f32 %v1521, %v1525
      %v1527 = vpack.c.bf16 %v1526, %v1526
      %1528 = vrot.lane.b32.xlu0 %v1359, 88
      %v1529 = vpop.permute.xlu0 %1528
      %v1532 = vsel %vm1122, %v1527, 0
      %1534 = vmatprep.subr.bf16.mxu0 0
      %1535 = vmatpush1.bf16.msra.mxu0 %v1529
      %1536 = vmatprep.subr.bf16.mxu0 0
      %1537 = vmatpush1.bf16.msra.mxu0 0
      %1538 = vmatprep.subr.bf16.mxu0 0
      %1539 = vmatpush1.bf16.msra.mxu0 0
      %1540 = vmatprep.subr.bf16.mxu0 0
      %1541 = vmatpush1.bf16.msra.mxu0 0
      %1542 = vmatprep.subr.bf16.mxu0 0
      %1543 = vmatpush1.bf16.msra.mxu0 0
      %1544 = vmatprep.subr.bf16.mxu0 0
      %1545 = vmatpush1.bf16.msra.mxu0 0
      %1546 = vmatprep.subr.bf16.mxu0 0
      %1547 = vmatpush1.bf16.msra.mxu0 0
      %1548 = vmatprep.subr.bf16.mxu0 0
      %1549 = vmatpush1.bf16.msra.mxu0 0
      %1550 = vmatprep.subr.bf16.mxu0 0
      %1551 = vmatpush1.bf16.msra.mxu0 0
      %1552 = vmatprep.subr.bf16.mxu0 0
      %1553 = vmatpush1.bf16.msra.mxu0 0
      %1554 = vmatprep.subr.bf16.mxu0 0
      %1555 = vmatpush1.bf16.msra.mxu0 0
      %1556 = vmatprep.subr.bf16.mxu0 0
      %1557 = vmatpush1.bf16.msra.mxu0 0
      %1558 = vmatprep.subr.bf16.mxu0 0
      %1559 = vmatpush1.bf16.msra.mxu0 0
      %1560 = vmatprep.subr.bf16.mxu0 0
      %1561 = vmatpush1.bf16.msra.mxu0 0
      %1562 = vmatprep.subr.bf16.mxu0 0
      %1563 = vmatpush1.bf16.msra.mxu0 0
      %1564 = vmatprep.subr.bf16.mxu0 0
      %1565 = vmatpush1.bf16.msra.mxu0 0
      %1566 = vmatprep.mubr.bf16.mxu0 0
      %1567 = vmatmul.mubr.bf16.gmra.mrb[0].mxu0 %v1532
      %v1568 = vpop.f32.mrb[0].mxu0
      %v1569 = vadd.f32 0.0, %v1568
      %v1570 = vpop.f32.mrb[0].mxu0
      %v1571 = vpop.f32.mrb[0].mxu0
      %v1572 = vpop.f32.mrb[0].mxu0
      %1573 = vdwg.mxu0
      %1574 = vrot.lane.b32.xlu0 %v1358, 112
      %v1575 = vpop.permute.xlu0 %1574
      %1576 = vrot.lane.b32.xlu0 %v1359, 112
      %v1577 = vpop.permute.xlu0 %1576
      %v1579 = vsel %vm670, %v1575, 0
      %v1582 = vsel %vm670, %v1577, 0
      %1584 = vmatprep.subr.bf16.mxu0 0
      %1585 = vmatpush1.bf16.xpose.msra.mxu0 %v1582
      %1586 = vmatprep.subr.bf16.mxu0 0
      %1587 = vmatpush1.bf16.xpose.msra.mxu0 0
      %1588 = vmatprep.subr.bf16.mxu0 0
      %1589 = vmatpush1.bf16.xpose.msra.mxu0 0
      %1590 = vmatprep.subr.bf16.mxu0 0
      %1591 = vmatpush1.bf16.xpose.msra.mxu0 0
      %1592 = vmatprep.subr.bf16.mxu0 0
      %1593 = vmatpush1.bf16.xpose.msra.mxu0 0
      %1594 = vmatprep.subr.bf16.mxu0 0
      %1595 = vmatpush1.bf16.xpose.msra.mxu0 0
      %1596 = vmatprep.subr.bf16.mxu0 0
      %1597 = vmatpush1.bf16.xpose.msra.mxu0 0
      %1598 = vmatprep.subr.bf16.mxu0 0
      %1599 = vmatpush1.bf16.xpose.msra.mxu0 0
      %1600 = vmatprep.subr.bf16.mxu0 0
      %1601 = vmatpush1.bf16.xpose.msra.mxu0 0
      %1602 = vmatprep.subr.bf16.mxu0 0
      %1603 = vmatpush1.bf16.xpose.msra.mxu0 0
      %1604 = vmatprep.subr.bf16.mxu0 0
      %1605 = vmatpush1.bf16.xpose.msra.mxu0 0
      %1606 = vmatprep.subr.bf16.mxu0 0
      %1607 = vmatpush1.bf16.xpose.msra.mxu0 0
      %1608 = vmatprep.subr.bf16.mxu0 0
      %1609 = vmatpush1.bf16.xpose.msra.mxu0 0
      %1610 = vmatprep.subr.bf16.mxu0 0
      %1611 = vmatpush1.bf16.xpose.msra.mxu0 0
      %1612 = vmatprep.subr.bf16.mxu0 0
      %1613 = vmatpush1.bf16.xpose.msra.mxu0 0
      %1614 = vmatprep.subr.bf16.mxu0 0
      %1615 = vmatpush1.bf16.xpose.msra.mxu0 0
      %1616 = vmatprep.mubr.bf16.mxu0 0
      %1617 = vmatmul.mubr.bf16.gmra.mrb[0].mxu0 %v1579
      %v1618 = vpop.f32.mrb[0].mxu0
      %v1619 = vadd.f32 0.0, %v1618
      %v1620 = vpop.f32.mrb[0].mxu0
      %v1621 = vpop.f32.mrb[0].mxu0
      %v1622 = vpop.f32.mrb[0].mxu0
      %1623 = vdwg.mxu0
      %v1624 = vsel %vm1122, %v1619, -inf
      %1625 = vmax.xlane.f32.xlu0 %v1624
      %v1626 = vpop.xlane.xlu0 %1625
      %v1627 = vsub.f32 %v1619, %v1626
      %v1628 = vmul.f32 %v1627, 1.442695
      %v1629 = vpow.pop %v1628
      %v1630 = vsel %vm1122, %v1629, 0.0
      %1631 = vadd.xlane.f32.xlu0 %v1630
      %v1632 = vpop.xlane.xlu0 %1631
      %v1633 = vrcp.pop %v1632
      %v1634 = vmul.f32 %v1629, %v1633
      %v1635 = vpack.c.bf16 %v1634, %v1634
      %1636 = vrot.lane.b32.xlu0 %v1359, 80
      %v1637 = vpop.permute.xlu0 %1636
      %v1640 = vsel %vm1122, %v1635, 0
      %1642 = vmatprep.subr.bf16.mxu0 0
      %1643 = vmatpush1.bf16.msra.mxu0 %v1637
      %1644 = vmatprep.subr.bf16.mxu0 0
      %1645 = vmatpush1.bf16.msra.mxu0 0
      %1646 = vmatprep.subr.bf16.mxu0 0
      %1647 = vmatpush1.bf16.msra.mxu0 0
      %1648 = vmatprep.subr.bf16.mxu0 0
      %1649 = vmatpush1.bf16.msra.mxu0 0
      %1650 = vmatprep.subr.bf16.mxu0 0
      %1651 = vmatpush1.bf16.msra.mxu0 0
      %1652 = vmatprep.subr.bf16.mxu0 0
      %1653 = vmatpush1.bf16.msra.mxu0 0
      %1654 = vmatprep.subr.bf16.mxu0 0
      %1655 = vmatpush1.bf16.msra.mxu0 0
      %1656 = vmatprep.subr.bf16.mxu0 0
      %1657 = vmatpush1.bf16.msra.mxu0 0
      %1658 = vmatprep.subr.bf16.mxu0 0
      %1659 = vmatpush1.bf16.msra.mxu0 0
      %1660 = vmatprep.subr.bf16.mxu0 0
      %1661 = vmatpush1.bf16.msra.mxu0 0
      %1662 = vmatprep.subr.bf16.mxu0 0
      %1663 = vmatpush1.bf16.msra.mxu0 0
      %1664 = vmatprep.subr.bf16.mxu0 0
      %1665 = vmatpush1.bf16.msra.mxu0 0
      %1666 = vmatprep.subr.bf16.mxu0 0
      %1667 = vmatpush1.bf16.msra.mxu0 0
      %1668 = vmatprep.subr.bf16.mxu0 0
      %1669 = vmatpush1.bf16.msra.mxu0 0
      %1670 = vmatprep.subr.bf16.mxu0 0
      %1671 = vmatpush1.bf16.msra.mxu0 0
      %1672 = vmatprep.subr.bf16.mxu0 0
      %1673 = vmatpush1.bf16.msra.mxu0 0
      %1674 = vmatprep.mubr.bf16.mxu0 0
      %1675 = vmatmul.mubr.bf16.gmra.mrb[0].mxu0 %v1640
      %v1676 = vpop.f32.mrb[0].mxu0
      %v1677 = vadd.f32 0.0, %v1676
      %v1678 = vpop.f32.mrb[0].mxu0
      %v1679 = vpop.f32.mrb[0].mxu0
      %v1680 = vpop.f32.mrb[0].mxu0
      %1681 = vdwg.mxu0
      %1682 = vrot.lane.b32.xlu0 %v1358, 104
      %v1683 = vpop.permute.xlu0 %1682
      %1684 = vrot.lane.b32.xlu0 %v1359, 104
      %v1685 = vpop.permute.xlu0 %1684
      %v1687 = vsel %vm670, %v1683, 0
      %v1690 = vsel %vm670, %v1685, 0
      %1692 = vmatprep.subr.bf16.mxu0 0
      %1693 = vmatpush1.bf16.xpose.msra.mxu0 %v1690
      %1694 = vmatprep.subr.bf16.mxu0 0
      %1695 = vmatpush1.bf16.xpose.msra.mxu0 0
      %1696 = vmatprep.subr.bf16.mxu0 0
      %1697 = vmatpush1.bf16.xpose.msra.mxu0 0
      %1698 = vmatprep.subr.bf16.mxu0 0
      %1699 = vmatpush1.bf16.xpose.msra.mxu0 0
      %1700 = vmatprep.subr.bf16.mxu0 0
      %1701 = vmatpush1.bf16.xpose.msra.mxu0 0
      %1702 = vmatprep.subr.bf16.mxu0 0
      %1703 = vmatpush1.bf16.xpose.msra.mxu0 0
      %1704 = vmatprep.subr.bf16.mxu0 0
      %1705 = vmatpush1.bf16.xpose.msra.mxu0 0
      %1706 = vmatprep.subr.bf16.mxu0 0
      %1707 = vmatpush1.bf16.xpose.msra.mxu0 0
      %1708 = vmatprep.subr.bf16.mxu0 0
      %1709 = vmatpush1.bf16.xpose.msra.mxu0 0
      %1710 = vmatprep.subr.bf16.mxu0 0
      %1711 = vmatpush1.bf16.xpose.msra.mxu0 0
      %1712 = vmatprep.subr.bf16.mxu0 0
      %1713 = vmatpush1.bf16.xpose.msra.mxu0 0
      %1714 = vmatprep.subr.bf16.mxu0 0
      %1715 = vmatpush1.bf16.xpose.msra.mxu0 0
      %1716 = vmatprep.subr.bf16.mxu0 0
      %1717 = vmatpush1.bf16.xpose.msra.mxu0 0
      %1718 = vmatprep.subr.bf16.mxu0 0
      %1719 = vmatpush1.bf16.xpose.msra.mxu0 0
      %1720 = vmatprep.subr.bf16.mxu0 0
      %1721 = vmatpush1.bf16.xpose.msra.mxu0 0
      %1722 = vmatprep.subr.bf16.mxu0 0
      %1723 = vmatpush1.bf16.xpose.msra.mxu0 0
      %1724 = vmatprep.mubr.bf16.mxu0 0
      %1725 = vmatmul.mubr.bf16.gmra.mrb[0].mxu0 %v1687
      %v1726 = vpop.f32.mrb[0].mxu0
      %v1727 = vadd.f32 0.0, %v1726
      %v1728 = vpop.f32.mrb[0].mxu0
      %v1729 = vpop.f32.mrb[0].mxu0
      %v1730 = vpop.f32.mrb[0].mxu0
      %1731 = vdwg.mxu0
      %v1732 = vsel %vm1122, %v1727, -inf
      %1733 = vmax.xlane.f32.xlu0 %v1732
      %v1734 = vpop.xlane.xlu0 %1733
      %v1735 = vsub.f32 %v1727, %v1734
      %v1736 = vmul.f32 %v1735, 1.442695
      %v1737 = vpow.pop %v1736
      %v1738 = vsel %vm1122, %v1737, 0.0
      %1739 = vadd.xlane.f32.xlu0 %v1738
      %v1740 = vpop.xlane.xlu0 %1739
      %v1741 = vrcp.pop %v1740
      %v1742 = vmul.f32 %v1737, %v1741
      %v1743 = vpack.c.bf16 %v1742, %v1742
      %1744 = vrot.lane.b32.xlu0 %v1359, 72
      %v1745 = vpop.permute.xlu0 %1744
      %v1748 = vsel %vm1122, %v1743, 0
      %1750 = vmatprep.subr.bf16.mxu0 0
      %1751 = vmatpush1.bf16.msra.mxu0 %v1745
      %1752 = vmatprep.subr.bf16.mxu0 0
      %1753 = vmatpush1.bf16.msra.mxu0 0
      %1754 = vmatprep.subr.bf16.mxu0 0
      %1755 = vmatpush1.bf16.msra.mxu0 0
      %1756 = vmatprep.subr.bf16.mxu0 0
      %1757 = vmatpush1.bf16.msra.mxu0 0
      %1758 = vmatprep.subr.bf16.mxu0 0
      %1759 = vmatpush1.bf16.msra.mxu0 0
      %1760 = vmatprep.subr.bf16.mxu0 0
      %1761 = vmatpush1.bf16.msra.mxu0 0
      %1762 = vmatprep.subr.bf16.mxu0 0
      %1763 = vmatpush1.bf16.msra.mxu0 0
      %1764 = vmatprep.subr.bf16.mxu0 0
      %1765 = vmatpush1.bf16.msra.mxu0 0
      %1766 = vmatprep.subr.bf16.mxu0 0
      %1767 = vmatpush1.bf16.msra.mxu0 0
      %1768 = vmatprep.subr.bf16.mxu0 0
      %1769 = vmatpush1.bf16.msra.mxu0 0
      %1770 = vmatprep.subr.bf16.mxu0 0
      %1771 = vmatpush1.bf16.msra.mxu0 0
      %1772 = vmatprep.subr.bf16.mxu0 0
      %1773 = vmatpush1.bf16.msra.mxu0 0
      %1774 = vmatprep.subr.bf16.mxu0 0
      %1775 = vmatpush1.bf16.msra.mxu0 0
      %1776 = vmatprep.subr.bf16.mxu0 0
      %1777 = vmatpush1.bf16.msra.mxu0 0
      %1778 = vmatprep.subr.bf16.mxu0 0
      %1779 = vmatpush1.bf16.msra.mxu0 0
      %1780 = vmatprep.subr.bf16.mxu0 0
      %1781 = vmatpush1.bf16.msra.mxu0 0
      %1782 = vmatprep.mubr.bf16.mxu0 0
      %1783 = vmatmul.mubr.bf16.gmra.mrb[0].mxu0 %v1748
      %v1784 = vpop.f32.mrb[0].mxu0
      %v1785 = vadd.f32 0.0, %v1784
      %v1786 = vpop.f32.mrb[0].mxu0
      %v1787 = vpop.f32.mrb[0].mxu0
      %v1788 = vpop.f32.mrb[0].mxu0
      %1789 = vdwg.mxu0
      %1791 = vrot.lane.b32.xlu0 %v1569, 8
      %v1792 = vpop.permute.xlu0 %1791
      %1795 = vrot.lane.b32.xlu0 %v1677, 16
      %v1796 = vpop.permute.xlu0 %1795
      %1799 = vrot.lane.b32.xlu0 %v1785, 24
      %v1800 = vpop.permute.xlu0 %1799
      %v1802 = vsel %vm670, %v1460, %v1792
      %v1803 = vsel %vm1122, %v1802, %v1796
      %v1804 = vsel %vm1124, %v1803, %v1800
      %v1805 = vpack.c.bf16 %v1804, %v1804
      %v1806 = vld [vmem:[%s11] sm:$0xf]
      %v1807 = vld [vmem:[%s11 + $0x4] sm:$0xf]
      %v1808 = vld [vmem:[%s11 + $0x8] sm:$0xf]
      %v1809 = vld [vmem:[%s11 + $0xc] sm:$0xf]
      %v1810 = vld [vmem:[%s12] sm:$0x1]
      %v1812 = vlaneseq
      %v1813 = vshrl.u32 %v1812, 7
      %v1814 = vsub.s32 0, %v1813
      %v1815 = vrot.slane %v1810, %v1814
      %v1821 = vunpack.c.l.b16 %v1806
      %v1822 = vunpack.c.l.b16 %v1807
      %v1823 = vunpack.c.l.b16 %v1808
      %v1824 = vunpack.c.l.b16 %v1809
      %v1825 = vpack.c.b16 %v1822, %v1821
      %v1826 = vpack.c.b16 %v1824, %v1823
      %v1830 = vsel %vm620, %v1805, 0
      %1832 = vmatprep.subr.bf16.mxu0 0
      %1833 = vmatpush1.bf16.msra.mxu0 %v1825
      %1834 = vmatprep.subr.bf16.mxu0 0
      %1835 = vmatpush1.bf16.msra.mxu0 %v1826
      %1836 = vmatprep.subr.bf16.mxu0 0
      %1837 = vmatpush1.bf16.msra.mxu0 0
      %1838 = vmatprep.subr.bf16.mxu0 0
      %1839 = vmatpush1.bf16.msra.mxu0 0
      %1840 = vmatprep.subr.bf16.mxu0 0
      %1841 = vmatpush1.bf16.msra.mxu0 0
      %1842 = vmatprep.subr.bf16.mxu0 0
      %1843 = vmatpush1.bf16.msra.mxu0 0
      %1844 = vmatprep.subr.bf16.mxu0 0
      %1845 = vmatpush1.bf16.msra.mxu0 0
      %1846 = vmatprep.subr.bf16.mxu0 0
      %1847 = vmatpush1.bf16.msra.mxu0 0
      %1848 = vmatprep.subr.bf16.mxu0 0
      %1849 = vmatpush1.bf16.msra.mxu0 0
      %1850 = vmatprep.subr.bf16.mxu0 0
      %1851 = vmatpush1.bf16.msra.mxu0 0
      %1852 = vmatprep.subr.bf16.mxu0 0
      %1853 = vmatpush1.bf16.msra.mxu0 0
      %1854 = vmatprep.subr.bf16.mxu0 0
      %1855 = vmatpush1.bf16.msra.mxu0 0
      %1856 = vmatprep.subr.bf16.mxu0 0
      %1857 = vmatpush1.bf16.msra.mxu0 0
      %1858 = vmatprep.subr.bf16.mxu0 0
      %1859 = vmatpush1.bf16.msra.mxu0 0
      %1860 = vmatprep.subr.bf16.mxu0 0
      %1861 = vmatpush1.bf16.msra.mxu0 0
      %1862 = vmatprep.subr.bf16.mxu0 0
      %1863 = vmatpush1.bf16.msra.mxu0 0
      %1864 = vmatprep.mubr.bf16.mxu0 0
      %1865 = vmatmul.mubr.bf16.gmra.mrb[0].mxu0 %v1830
      %v1866 = vpop.f32.mrb[0].mxu0
      %v1867 = vadd.f32 %v1815, %v1866
      %v1868 = vpop.f32.mrb[0].mxu0
      %v1869 = vpop.f32.mrb[0].mxu0
      %v1870 = vpop.f32.mrb[0].mxu0
      %1871 = vdwg.mxu0
      %v1872 = vadd.f32 %v1221, %v1867
      %v1873 = vlaneseq
      %v1874 = vshrl.u32 %v1873, 7
      %v1875 = vsub.s32 0, %v1874
      %v1876 = vrot.slane %v1872, %v1875
      %v1877 = vlaneseq
      %v1878 = vshrl.u32 %v1877, 7
      %v1879 = vsub.s32 7, %v1878
      %v1880 = vrot.slane %v1872, %v1879
      %v1881 = vrot.slane %v1872, 1
      %v1882 = vsel %vm1205, %v1880, %v1881
      %v1883 = vrot.slane %v1872, 7
      %v1884 = vsel %vm1208, %v1876, %v1883
      %v1885 = vadd.f32 %v1872, %v1882
      %v1886 = vadd.f32 %v1885, %v1884
      %v1887 = vrot.slane %v1872, 2
      %v1888 = vsel %vm1213, %v1880, %v1887
      %v1889 = vrot.slane %v1872, 6
      %v1890 = vsel %vm1216, %v1876, %v1889
      %v1891 = vadd.f32 %v1886, %v1888
      %v1892 = vadd.f32 %v1891, %v1890
      %v1893 = vmul.f32 %v1892, 0.2
      %v1894 = vsub.f32 %v1872, %v1893
      %v1895 = vadd.f32 %v1220, %v1893
      %v1896 = vpack.c.bf16 %v1894, %v1894
      %v1897 = vld [vmem:[%s13] sm:$0xf]
      %v1898 = vld [vmem:[%s13 + $0x4] sm:$0xf]
      %v1899 = vld [vmem:[%s13 + $0x8] sm:$0xf]
      %v1900 = vld [vmem:[%s13 + $0xc] sm:$0xf]
      %v1905 = vunpack.c.l.b16 %v1897
      %v1906 = vunpack.c.l.b16 %v1898
      %v1907 = vunpack.c.l.b16 %v1899
      %v1908 = vunpack.c.l.b16 %v1900
      %v1909 = vpack.c.b16 %v1906, %v1905
      %v1910 = vpack.c.b16 %v1908, %v1907
      %v1914 = vsel %vm620, %v1896, 0
      %1916 = vmatprep.subr.bf16.mxu0 0
      %1917 = vmatpush1.bf16.msra.mxu0 %v1909
      %1918 = vmatprep.subr.bf16.mxu0 0
      %1919 = vmatpush1.bf16.msra.mxu0 %v1910
      %1920 = vmatprep.subr.bf16.mxu0 0
      %1921 = vmatpush1.bf16.msra.mxu0 0
      %1922 = vmatprep.subr.bf16.mxu0 0
      %1923 = vmatpush1.bf16.msra.mxu0 0
      %1924 = vmatprep.subr.bf16.mxu0 0
      %1925 = vmatpush1.bf16.msra.mxu0 0
      %1926 = vmatprep.subr.bf16.mxu0 0
      %1927 = vmatpush1.bf16.msra.mxu0 0
      %1928 = vmatprep.subr.bf16.mxu0 0
      %1929 = vmatpush1.bf16.msra.mxu0 0
      %1930 = vmatprep.subr.bf16.mxu0 0
      %1931 = vmatpush1.bf16.msra.mxu0 0
      %1932 = vmatprep.subr.bf16.mxu0 0
      %1933 = vmatpush1.bf16.msra.mxu0 0
      %1934 = vmatprep.subr.bf16.mxu0 0
      %1935 = vmatpush1.bf16.msra.mxu0 0
      %1936 = vmatprep.subr.bf16.mxu0 0
      %1937 = vmatpush1.bf16.msra.mxu0 0
      %1938 = vmatprep.subr.bf16.mxu0 0
      %1939 = vmatpush1.bf16.msra.mxu0 0
      %1940 = vmatprep.subr.bf16.mxu0 0
      %1941 = vmatpush1.bf16.msra.mxu0 0
      %1942 = vmatprep.subr.bf16.mxu0 0
      %1943 = vmatpush1.bf16.msra.mxu0 0
      %1944 = vmatprep.subr.bf16.mxu0 0
      %1945 = vmatpush1.bf16.msra.mxu0 0
      %1946 = vmatprep.subr.bf16.mxu0 0
      %1947 = vmatpush1.bf16.msra.mxu0 0
      %1948 = vmatprep.mubr.bf16.mxu0 0
      %1949 = vmatmul.mubr.bf16.gmra.mrb[0].mxu0 %v1914
      %v1950 = vpop.f32.mrb[0].mxu0
      %v1951 = vadd.f32 0.0, %v1950
      %v1952 = vpop.f32.mrb[0].mxu0
      %v1953 = vpop.f32.mrb[0].mxu0
      %v1954 = vpop.f32.mrb[0].mxu0
      %1955 = vdwg.mxu0
      %v1956 = vmax.f32 %v1951, 0.0
      %v1957 = vpack.c.bf16 %v1956, %v1956
      %v1958 = vld [vmem:[%s14] sm:$0xf]
      %v1959 = vld [vmem:[%s14 + $0x4] sm:$0xf]
      %v1960 = vld [vmem:[%s14 + $0x8] sm:$0xf]
      %v1961 = vld [vmem:[%s14 + $0xc] sm:$0xf]
      %v1962 = vld [vmem:[%s14 + $0x10] sm:$0xf]
      %v1963 = vld [vmem:[%s14 + $0x14] sm:$0xf]
      %v1964 = vld [vmem:[%s14 + $0x18] sm:$0xf]
      %v1965 = vld [vmem:[%s14 + $0x1c] sm:$0xf]
      %v1974 = vunpack.c.l.b16 %v1958
      %v1975 = vunpack.c.l.b16 %v1959
      %v1976 = vunpack.c.l.b16 %v1960
      %v1977 = vunpack.c.l.b16 %v1961
      %v1978 = vunpack.c.l.b16 %v1962
      %v1979 = vunpack.c.l.b16 %v1963
      %v1980 = vunpack.c.l.b16 %v1964
      %v1981 = vunpack.c.l.b16 %v1965
      %v1982 = vpack.c.b16 %v1975, %v1974
      %v1983 = vpack.c.b16 %v1977, %v1976
      %v1984 = vpack.c.b16 %v1979, %v1978
      %v1985 = vpack.c.b16 %v1981, %v1980
      %vm1990 = vcmask 523264
      %v1992 = vsel %vm1990, %v1957, 0
      %1994 = vmatprep.subr.bf16.mxu0 0
      %1995 = vmatpush1.bf16.msra.mxu0 %v1982
      %1996 = vmatprep.subr.bf16.mxu0 0
      %1997 = vmatpush1.bf16.msra.mxu0 %v1983
      %1998 = vmatprep.subr.bf16.mxu0 0
      %1999 = vmatpush1.bf16.msra.mxu0 %v1984
      %2000 = vmatprep.subr.bf16.mxu0 0
      %2001 = vmatpush1.bf16.msra.mxu0 %v1985
      %2002 = vmatprep.subr.bf16.mxu0 0
      %2003 = vmatpush1.bf16.msra.mxu0 0
      %2004 = vmatprep.subr.bf16.mxu0 0
      %2005 = vmatpush1.bf16.msra.mxu0 0
      %2006 = vmatprep.subr.bf16.mxu0 0
      %2007 = vmatpush1.bf16.msra.mxu0 0
      %2008 = vmatprep.subr.bf16.mxu0 0
      %2009 = vmatpush1.bf16.msra.mxu0 0
      %2010 = vmatprep.subr.bf16.mxu0 0
      %2011 = vmatpush1.bf16.msra.mxu0 0
      %2012 = vmatprep.subr.bf16.mxu0 0
      %2013 = vmatpush1.bf16.msra.mxu0 0
      %2014 = vmatprep.subr.bf16.mxu0 0
      %2015 = vmatpush1.bf16.msra.mxu0 0
      %2016 = vmatprep.subr.bf16.mxu0 0
      %2017 = vmatpush1.bf16.msra.mxu0 0
      %2018 = vmatprep.subr.bf16.mxu0 0
      %2019 = vmatpush1.bf16.msra.mxu0 0
      %2020 = vmatprep.subr.bf16.mxu0 0
      %2021 = vmatpush1.bf16.msra.mxu0 0
      %2022 = vmatprep.subr.bf16.mxu0 0
      %2023 = vmatpush1.bf16.msra.mxu0 0
      %2024 = vmatprep.subr.bf16.mxu0 0
      %2025 = vmatpush1.bf16.msra.mxu0 0
      %2026 = vmatprep.mubr.bf16.mxu0 0
      %2027 = vmatmul.mubr.bf16.gmra.mrb[0].mxu0 %v1992
      %v2028 = vpop.f32.mrb[0].mxu0
      %v2029 = vadd.f32 0.0, %v2028
      %v2030 = vpop.f32.mrb[0].mxu0
      %v2031 = vpop.f32.mrb[0].mxu0
      %v2032 = vpop.f32.mrb[0].mxu0
      %2033 = vdwg.mxu0
      %v2034 = vadd.f32 %v1894, %v2029
      %v2035 = vlaneseq
      %v2036 = vshrl.u32 %v2035, 7
      %v2037 = vsub.s32 0, %v2036
      %v2038 = vrot.slane %v2034, %v2037
      %v2039 = vlaneseq
      %v2040 = vshrl.u32 %v2039, 7
      %v2041 = vsub.s32 7, %v2040
      %v2042 = vrot.slane %v2034, %v2041
      %v2043 = vrot.slane %v2034, 1
      %v2044 = vsel %vm1205, %v2042, %v2043
      %v2045 = vrot.slane %v2034, 7
      %v2046 = vsel %vm1208, %v2038, %v2045
      %v2047 = vadd.f32 %v2034, %v2044
      %v2048 = vadd.f32 %v2047, %v2046
      %v2049 = vrot.slane %v2034, 2
      %v2050 = vsel %vm1213, %v2042, %v2049
      %v2051 = vrot.slane %v2034, 6
      %v2052 = vsel %vm1216, %v2038, %v2051
      %v2053 = vadd.f32 %v2048, %v2050
      %v2054 = vadd.f32 %v2053, %v2052
      %v2055 = vmul.f32 %v2054, 0.2
      %v2056 = vsub.f32 %v2034, %v2055
      %v2057 = vadd.f32 %v1895, %v2055
      %v2058 = vrot.slane %v2057, 7
      %v2059 = vrot.slane %v2057, 1
      %2061 = vrot.lane.b32.xlu0 %v2057, 32
      %v2062 = vpop.permute.xlu0 %2061
      %2065 = vrot.lane.b32.xlu0 %v2059, 64
      %v2066 = vpop.permute.xlu0 %2065
      %v2068 = vsel %vm620, %v2058, %v2062
      %v2069 = vsel %vm1990, %v2068, %v2066
      %v2070 = vpack.c.bf16 %v2069, %v2069
      %v2071 = vld [vmem:[%s15] sm:$0xf]
      %v2072 = vld [vmem:[%s15 + $0x4] sm:$0xf]
      %v2073 = vld [vmem:[%s15 + $0x8] sm:$0xf]
      %v2074 = vld [vmem:[%s15 + $0xc] sm:$0xf]
      %v2075 = vld [vmem:[%s15 + $0x10] sm:$0xf]
      %v2076 = vld [vmem:[%s15 + $0x14] sm:$0xf]
      %v2077 = vld [vmem:[%s15 + $0x18] sm:$0xf]
      %v2078 = vld [vmem:[%s15 + $0x1c] sm:$0xf]
      %v2079 = vld [vmem:[%s15 + $0x20] sm:$0xf]
      %v2080 = vld [vmem:[%s15 + $0x24] sm:$0xf]
      %v2081 = vld [vmem:[%s15 + $0x28] sm:$0xf]
      %v2082 = vld [vmem:[%s15 + $0x2c] sm:$0xf]
      %v2095 = vunpack.c.l.b16 %v2071
      %v2096 = vunpack.c.l.b16 %v2072
      %v2097 = vunpack.c.l.b16 %v2073
      %v2098 = vunpack.c.l.b16 %v2074
      %v2099 = vunpack.c.l.b16 %v2075
      %v2100 = vunpack.c.l.b16 %v2076
      %v2101 = vunpack.c.l.b16 %v2077
      %v2102 = vunpack.c.l.b16 %v2078
      %v2103 = vunpack.c.l.b16 %v2079
      %v2104 = vunpack.c.l.b16 %v2080
      %v2105 = vunpack.c.l.b16 %v2081
      %v2106 = vunpack.c.l.b16 %v2082
      %v2107 = vpack.c.b16 %v2096, %v2095
      %v2108 = vpack.c.b16 %v2098, %v2097
      %v2109 = vpack.c.b16 %v2100, %v2099
      %v2110 = vpack.c.b16 %v2102, %v2101
      %v2111 = vpack.c.b16 %v2104, %v2103
      %v2112 = vpack.c.b16 %v2106, %v2105
      %vm2119 = vcmask 785408
      %v2121 = vsel %vm2119, %v2070, 0
      %2123 = vmatprep.subr.bf16.mxu0 0
      %2124 = vmatpush1.bf16.msra.mxu0 %v2107
      %2125 = vmatprep.subr.bf16.mxu0 0
      %2126 = vmatpush1.bf16.msra.mxu0 %v2108
      %2127 = vmatprep.subr.bf16.mxu0 0
      %2128 = vmatpush1.bf16.msra.mxu0 %v2109
      %2129 = vmatprep.subr.bf16.mxu0 0
      %2130 = vmatpush1.bf16.msra.mxu0 %v2110
      %2131 = vmatprep.subr.bf16.mxu0 0
      %2132 = vmatpush1.bf16.msra.mxu0 %v2111
      %2133 = vmatprep.subr.bf16.mxu0 0
      %2134 = vmatpush1.bf16.msra.mxu0 %v2112
      %2135 = vmatprep.subr.bf16.mxu0 0
      %2136 = vmatpush1.bf16.msra.mxu0 0
      %2137 = vmatprep.subr.bf16.mxu0 0
      %2138 = vmatpush1.bf16.msra.mxu0 0
      %2139 = vmatprep.subr.bf16.mxu0 0
      %2140 = vmatpush1.bf16.msra.mxu0 0
      %2141 = vmatprep.subr.bf16.mxu0 0
      %2142 = vmatpush1.bf16.msra.mxu0 0
      %2143 = vmatprep.subr.bf16.mxu0 0
      %2144 = vmatpush1.bf16.msra.mxu0 0
      %2145 = vmatprep.subr.bf16.mxu0 0
      %2146 = vmatpush1.bf16.msra.mxu0 0
      %2147 = vmatprep.subr.bf16.mxu0 0
      %2148 = vmatpush1.bf16.msra.mxu0 0
      %2149 = vmatprep.subr.bf16.mxu0 0
      %2150 = vmatpush1.bf16.msra.mxu0 0
      %2151 = vmatprep.subr.bf16.mxu0 0
      %2152 = vmatpush1.bf16.msra.mxu0 0
      %2153 = vmatprep.subr.bf16.mxu0 0
      %2154 = vmatpush1.bf16.msra.mxu0 0
      %2155 = vmatprep.mubr.bf16.mxu0 0
      %2156 = vmatmul.mubr.bf16.gmra.mrb[0].mxu0 %v2121
      %v2157 = vpop.f32.mrb[0].mxu0
      %v2158 = vadd.f32 0.0, %v2157
      %v2159 = vpop.f32.mrb[0].mxu0
      %v2160 = vpop.f32.mrb[0].mxu0
      %v2161 = vpop.f32.mrb[0].mxu0
      %2162 = vdwg.mxu0
      %2163 = vst.msk [vmem:[%s587] sm:$0xff] %vm620, %v2056
      %v2164 = vld [vmem:[%s583] sm:$0xff]
      %v2165 = vadd.f32 %v2164, %v2158
      %vm2166 = vcmask 31744
      %2167 = vst.msk [vmem:[%s591] sm:$0xff] %vm2166, %v2165
      %p2168 = scmp.lt.s32.totalorder %s29, 1
      %s2169 = scalar_select %p2168, %s29, 1
      %s2170 = smul.addr %s2169, 8
      %s2171 = scalar_lea.vmem %s16, %s2170
      %p2172 = scmp.lt.s32.totalorder %s29, 1
      %s2173 = scalar_select %p2172, %s29, 1
      %s2174 = smul.addr %s2173, 8
      %s2175 = scalar_lea.vmem %s17, %s2174
      // Predicated region
      $region85: #{decoder_forward.3} parent=83 // pred_check
        %p2176 = pneg %p398
      $region86: #{decoder_forward.3} parent=83 // pred_check_branch
        %2178 = sbr.rel (%p2176) target = $region88
      $region87: #{decoder_forward.3} parent=83 // pred_region
        _
      $region88: #{decoder_forward.3} parent=83 // pred_fallthru
        _
      // Predicated region
      $region89: #{decoder_forward.3} parent=83 // pred_check
        %p2179 = pneg %p424
      $region90: #{decoder_forward.3} parent=83 // pred_check_branch
        %2181 = sbr.rel (%p2179) target = $region92
      $region91: #{decoder_forward.3} parent=83 // pred_region
        _
      $region92: #{decoder_forward.3} parent=83 // pred_fallthru
        _
    $region84: #{decoder_forward.3} parent=5 // pred_fallthru
      _
    %p2182 = scmp.le.s32.totalorder 2, %s24
    // Predicated region
    $region93: #{decoder_forward.3} parent=5 // pred_check
      %p2183 = pneg %p2182
    $region94: #{decoder_forward.3} parent=5 // pred_check_branch
      %2185 = sbr.rel (%p2183) target = $region96
    $region95: #{decoder_forward.3} parent=5 // pred_region
      %s2186 = ssub.s32 %s24, 2
      // Predicated region
      $region97: #{decoder_forward.3} parent=95 // pred_check
        %p2187 = pneg %p404
      $region98: #{decoder_forward.3} parent=95 // pred_check_branch
        %2189 = sbr.rel (%p2187) target = $region100
      $region99: #{decoder_forward.3} parent=95 // pred_region
        %p2190 = scmp.lt.s32.totalorder %s30, 1
        %s2191 = scalar_select %p2190, %s30, 1
        %s2192 = smul.addr %s2191, 8
        %s2193 = scalar_lea.vmem %s16, %s2192
      $region100: #{decoder_forward.3} parent=95 // pred_fallthru
        _
      // Predicated region
      $region101: #{decoder_forward.3} parent=95 // pred_check
        %p2194 = pneg %p430
      $region102: #{decoder_forward.3} parent=95 // pred_check_branch
        %2196 = sbr.rel (%p2194) target = $region104
      $region103: #{decoder_forward.3} parent=95 // pred_region
        %p2197 = scmp.lt.s32.totalorder %s30, 1
        %s2198 = scalar_select %p2197, %s30, 1
        %s2199 = smul.addr %s2198, 8
        %s2200 = scalar_lea.vmem %s17, %s2199
      $region104: #{decoder_forward.3} parent=95 // pred_fallthru
        _
    $region96: #{decoder_forward.3} parent=5 // pred_fallthru
      _
  $region6: #{decoder_forward.3} parent=0 // loop_footer
    %s28 = sadd.s32 1, %s24
  $region7: #{decoder_forward.3} parent=0 // loop_footer_branch
    %23 = sbr.rel target = $region3
  $region8: #{decoder_forward.3} parent=0 // loop_exit
    _

</llo_original>
